<compile_context>
chip_gen: v7x
topology: tpu7x:2x2x1
jax: 0.10.0
libtpu: 0.0.40
codegen_flags: <defaults>
</compile_context>

<pallas_src>
import math
import functools

import jax
import jax.numpy as jnp
from jax.experimental import pallas as pl
from jax.experimental.pallas import tpu as pltpu

CLS_TOKEN = ord('?')            # 63

# ---- configuration (small, consistent with the module) ----
VOCAB = 128
D_MODEL = 32
D_FF = 64
NUM_HEADS = 4
HEAD_DIM = D_MODEL // NUM_HEADS
HALF = HEAD_DIM // 2
NUM_LAYERS = 2
NUM_ACTIONS = 8
OUT_PAD = 128                   # lane-dense classifier output, sliced in wrapper
SEQ_IN = 7                      # raw input tokens
S = SEQ_IN + 1                  # context length after CLS prepend
MAX_TB = 16                     # sequences per grid block (16*8 = 128 rows)
EPS = float(jnp.finfo(jnp.float32).eps)   # nn.RMSNorm(eps=None) -> finfo eps


def _rmsnorm(x, g):
    ms = jnp.mean(x * x, axis=-1, keepdims=True)
    return x * jax.lax.rsqrt(ms + EPS) * g


# ------------------------- fully fused forward kernel -------------------------
def fused_forward_kernel(tok_ref, embed_ref, wqkv_ref, bqkv_ref, wo_ref, bo_ref,
                         gat_ref, gff_ref, w1_ref, b1_ref, wsw_ref, w2_ref,
                         b2_ref, gfin_ref, wc_ref, bc_ref, cos_ref, sin_ref,
                         out_ref, *, tb):
    rows = tb * S
    f32 = jnp.float32

    # ---- embedding gather as one-hot MXU matmul: (rows,128)@(128,32) ----
    tok = tok_ref[...]                                              # (rows, 1) i32
    lane = jax.lax.broadcasted_iota(jnp.int32, (rows, VOCAB), 1)
    onehot = (lane == tok).astype(f32)
    x = jnp.dot(onehot, embed_ref[...], preferred_element_type=f32)
    x = x * (1.0 / math.sqrt(D_MODEL))           # reference: x / sqrt(d_model)

    cosf = cos_ref[...]                          # (rows, D) per-head tiled cos
    sinf = sin_ref[...]                          # (rows, D) sign-folded sin
    scale = 1.0 / math.sqrt(HEAD_DIM)

    for l in range(NUM_LAYERS):                  # static unroll over layers
        # --- pre-attention RMSNorm + fused [q|k|v|q_swap|k_swap] projection ---
        ln = _rmsnorm(x, gat_ref[l])
        qkv = jnp.dot(ln, wqkv_ref[l], preferred_element_type=f32) + bqkv_ref[l]
        q = qkv[:, 0:D_MODEL] * cosf + qkv[:, 3 * D_MODEL:4 * D_MODEL] * sinf
        k = qkv[:, D_MODEL:2 * D_MODEL] * cosf + qkv[:, 4 * D_MODEL:5 * D_MODEL] * sinf
        v = qkv[:, 2 * D_MODEL:3 * D_MODEL]

        # --- per-sequence non-causal attention (no cross-batch mask needed) ---
        q3 = q.reshape(tb, S, D_MODEL)
        k3 = k.reshape(tb, S, D_MODEL)
        v3 = v.reshape(tb, S, D_MODEL)
        wo_l = wo_ref[l]
        attn = None
        for h in range(NUM_HEADS):               # static unroll over heads
            sl = slice(h * HEAD_DIM, (h + 1) * HEAD_DIM)
            s = jnp.einsum('bqd,bkd->bqk', q3[..., sl], k3[..., sl],
                           preferred_element_type=f32) * scale
            m = jnp.max(s, axis=-1, keepdims=True)
            p = jnp.exp(s - m)
            p = p * pl.reciprocal(jnp.sum(p, axis=-1, keepdims=True), approx=True)
            o = jnp.einsum('bqk,bkd->bqd', p, v3[..., sl],
                           preferred_element_type=f32)
            # fold this head straight into the output projection (no concat)
            contrib = jnp.dot(o.reshape(rows, HEAD_DIM), wo_l[sl, :],
                              preferred_element_type=f32)
            attn = contrib if attn is None else attn + contrib
        attn = attn + bo_ref[l]

        # --- residual + post-attention RMSNorm.  Matches the reference:
        #     h2 = RMSNorm(x + attn);  out = h2 + FFN(h2) ---
        h2 = _rmsnorm(x + attn, gff_ref[l])

        # --- FeedForward: fc1 -> SwiGLU -> fc2 ---
        a = jnp.dot(h2, w1_ref[l], preferred_element_type=f32) + b1_ref[l]
        sw = jnp.dot(a, wsw_ref[l], preferred_element_type=f32)
        u = sw[:, :D_FF]
        g = sw[:, D_FF:]
        silu = g * pl.reciprocal(1.0 + jnp.exp(-g), approx=True)
        f = jnp.dot(u * silu, w2_ref[l], preferred_element_type=f32) + b2_ref[l]
        x = h2 + f

    # --- final encoder RMSNorm (row-wise => CLS rows only) + classifier ---
    cls = x.reshape(tb, S, D_MODEL)[:, 0, :]                        # (tb, D)
    n = _rmsnorm(cls, gfin_ref[...])
    out_ref[...] = jnp.dot(n, wc_ref[...], preferred_element_type=f32) + bc_ref[...]


# --------------------------- pallas_call wrapper ---------------------------
def _build_forward(padded_batch, tb):
    rows = tb * S
    grid = (padded_batch // tb,)

    def const_spec(shape):
        return pl.BlockSpec(shape, lambda i, _r=len(shape): (0,) * _r)

    in_specs = [
        pl.BlockSpec((rows, 1), lambda i: (i, 0)),                   # tokens
        const_spec((VOCAB, D_MODEL)),                                # embed
        const_spec((NUM_LAYERS, D_MODEL, 5 * D_MODEL)),              # wqkv5
        const_spec((NUM_LAYERS, 1, 5 * D_MODEL)),                    # bqkv5
        const_spec((NUM_LAYERS, D_MODEL, D_MODEL)),                  # wo
        const_spec((NUM_LAYERS, 1, D_MODEL)),                        # bo
        const_spec((NUM_LAYERS, 1, D_MODEL)),                        # g_att
        const_spec((NUM_LAYERS, 1, D_MODEL)),                        # g_ffn
        const_spec((NUM_LAYERS, D_MODEL, D_FF)),                     # w1
        const_spec((NUM_LAYERS, 1, D_FF)),                           # b1
        const_spec((NUM_LAYERS, D_FF, 2 * D_FF)),                    # wsw
        const_spec((NUM_LAYERS, D_FF, D_MODEL)),                     # w2
        const_spec((NUM_LAYERS, 1, D_MODEL)),                        # b2
        const_spec((1, D_MODEL)),                                    # g_final
        const_spec((D_MODEL, OUT_PAD)),                              # wc (padded)
        const_spec((1, OUT_PAD)),                                    # bc (padded)
        const_spec((rows, D_MODEL)),                                 # cos
        const_spec((rows, D_MODEL)),                                 # sin
    ]
    out_spec = pl.BlockSpec((tb, OUT_PAD), lambda i: (i, 0))
    return pl.pallas_call(
        functools.partial(fused_forward_kernel, tb=tb),
        out_shape=jax.ShapeDtypeStruct((padded_batch, OUT_PAD), jnp.float32),
        grid=grid,
        in_specs=in_specs,
        out_specs=out_spec,
        compiler_params=pltpu.CompilerParams(
            dimension_semantics=("parallel",)),
    )


# --------------------------- parameters & RoPE tables ---------------------------
def _swap_halves(w):
    # per-head half swap on the last (output) dim; sign lives in the sin table
    r = w.reshape(w.shape[:-1] + (NUM_HEADS, HEAD_DIM))
    r = jnp.concatenate([r[..., HALF:], r[..., :HALF]], axis=-1)
    return r.reshape(w.shape)


def init_params(key):
    def nrm(k, shape):
        return 0.02 * jax.random.normal(k, shape, dtype=jnp.float32)

    keys = jax.random.split(key, NUM_LAYERS + 2)
    embed = nrm(keys[0], (VOCAB, D_MODEL))

    wqkv, bqkv, wo, bo, g_att, g_ffn = [], [], [], [], [], []
    w1, b1, wsw, w2, b2 = [], [], [], [], []
    for l in range(NUM_LAYERS):
        ks = jax.random.split(keys[1 + l], 13)
        wq = nrm(ks[0], (D_MODEL, D_MODEL))
        wk = nrm(ks[1], (D_MODEL, D_MODEL))
        wv = nrm(ks[2], (D_MODEL, D_MODEL))
        bq = nrm(ks[3], (1, D_MODEL))
        bk = nrm(ks[4], (1, D_MODEL))
        bv = nrm(ks[5], (1, D_MODEL))
        # fused projection: [Wq | Wk | Wv | Wq@P | Wk@P]  (RoPE half-swap folded)
        wqkv.append(jnp.concatenate(
            [wq, wk, wv, _swap_halves(wq), _swap_halves(wk)], axis=1))
        bqkv.append(jnp.concatenate(
            [bq, bk, bv, _swap_halves(bq), _swap_halves(bk)], axis=1))
        wo.append(nrm(ks[6], (D_MODEL, D_MODEL)))
        bo.append(nrm(ks[7], (1, D_MODEL)))
        g_att.append(jnp.ones((1, D_MODEL), jnp.float32))
        g_ffn.append(jnp.ones((1, D_MODEL), jnp.float32))
        w1.append(nrm(ks[8], (D_MODEL, D_FF)))
        b1.append(nrm(ks[9], (1, D_FF)))
        wsw.append(nrm(ks[10], (D_FF, 2 * D_FF)))        # SwiGLU, bias=False
        w2.append(nrm(ks[11], (D_FF, D_MODEL)))
        b2.append(nrm(ks[12], (1, D_MODEL)))

    kh = jax.random.split(keys[-1], 2)
    wc = nrm(kh[0], (D_MODEL, NUM_ACTIONS))
    bc = nrm(kh[1], (1, NUM_ACTIONS))
    return dict(
        embed=embed,
        wqkv=jnp.stack(wqkv), bqkv=jnp.stack(bqkv),
        wo=jnp.stack(wo), bo=jnp.stack(bo),
        g_att=jnp.stack(g_att), g_ffn=jnp.stack(g_ffn),
        w1=jnp.stack(w1), b1=jnp.stack(b1),
        wsw=jnp.stack(wsw), w2=jnp.stack(w2), b2=jnp.stack(b2),
        g_final=jnp.ones((1, D_MODEL), jnp.float32),
        wc=jnp.pad(wc, ((0, 0), (0, OUT_PAD - NUM_ACTIONS))),
        bc=jnp.pad(bc, ((0, 0), (0, OUT_PAD - NUM_ACTIONS))),
    )


def _rope_tables(tb):
    # xformers RotaryEmbedding convention: theta=10000, rotate_half.
    inv_freq = 1.0 / (10000.0 ** (jnp.arange(0, HEAD_DIM, 2, dtype=jnp.float32)
                                  / HEAD_DIM))
    t = jnp.arange(S, dtype=jnp.float32)
    freqs = jnp.outer(t, inv_freq)                       # (S, hd/2)
    emb = jnp.concatenate([freqs, freqs], axis=-1)       # (S, hd)
    cos = jnp.cos(emb)
    sin = jnp.sin(emb)
    # sign folded so that half_swap(x) * sin_signed == rotate_half(x) * sin
    sin_signed = jnp.concatenate([-sin[:, :HALF], sin[:, HALF:]], axis=-1)
    cosf = jnp.tile(jnp.tile(cos, (1, NUM_HEADS)), (tb, 1))         # (tb*S, D)
    sinf = jnp.tile(jnp.tile(sin_signed, (1, NUM_HEADS)), (tb, 1))  # (tb*S, D)
    return cosf, sinf


# --------------------------- full forward ---------------------------
def policy_forward(tokens, params):
    batch = tokens.shape[0]
    if batch <= MAX_TB:
        tb, padded_batch = batch, batch
    else:
        tb = MAX_TB
        padded_batch = ((batch + tb - 1) // tb) * tb

    cls = jnp.full((batch, 1), CLS_TOKEN, dtype=jnp.int32)
    toks = jnp.concatenate([cls, tokens.astype(jnp.int32)], axis=-1)    # (B, S)
    if padded_batch != batch:
        toks = jnp.concatenate(
            [toks, jnp.zeros((padded_batch - batch, S), jnp.int32)], axis=0)
    toks = toks.reshape(padded_batch * S, 1)

    cosf, sinf = _rope_tables(tb)
    fwd = _build_forward(padded_batch, tb)
    out = fwd(toks, params["embed"], params["wqkv"], params["bqkv"],
              params["wo"], params["bo"], params["g_att"], params["g_ffn"],
              params["w1"], params["b1"], params["wsw"], params["w2"],
              params["b2"], params["g_final"], params["wc"], params["bc"],
              cosf, sinf)
    return out[:batch, :NUM_ACTIONS]


if __name__ == "__main__":
    key = jax.random.PRNGKey(0)
    kp, kt = jax.random.split(key)
    params = init_params(kp)
    tokens = jax.random.randint(kt, (2, SEQ_IN), 0, VOCAB, dtype=jnp.int32)

    logits = jax.jit(policy_forward)(tokens, params)
    jax.block_until_ready(logits)
    assert logits.shape == (2, NUM_ACTIONS)
    assert bool(jnp.all(jnp.isfinite(logits)))
    print("KERNEL_OK")
</pallas_src>

<mosaic_0001>
module attributes {stable_mosaic.version = 11 : i64} {
  func.func @fused_forward_kernel(%arg0: i32, %arg1: memref<16x1xi32, #tpu.memory_space<vmem>>, %arg2: memref<128x32xf32, #tpu.memory_space<vmem>>, %arg3: memref<2x32x160xf32, #tpu.memory_space<vmem>>, %arg4: memref<2x1x160xf32, #tpu.memory_space<vmem>>, %arg5: memref<2x32x32xf32, #tpu.memory_space<vmem>>, %arg6: memref<2x1x32xf32, #tpu.memory_space<vmem>>, %arg7: memref<2x1x32xf32, #tpu.memory_space<vmem>>, %arg8: memref<2x1x32xf32, #tpu.memory_space<vmem>>, %arg9: memref<2x32x64xf32, #tpu.memory_space<vmem>>, %arg10: memref<2x1x64xf32, #tpu.memory_space<vmem>>, %arg11: memref<2x64x128xf32, #tpu.memory_space<vmem>>, %arg12: memref<2x64x32xf32, #tpu.memory_space<vmem>>, %arg13: memref<2x1x32xf32, #tpu.memory_space<vmem>>, %arg14: memref<1x32xf32, #tpu.memory_space<vmem>>, %arg15: memref<32x128xf32, #tpu.memory_space<vmem>>, %arg16: memref<1x128xf32, #tpu.memory_space<vmem>>, %arg17: memref<16x32xf32, #tpu.memory_space<vmem>>, %arg18: memref<16x32xf32, #tpu.memory_space<vmem>>, %arg19: memref<2x128xf32, #tpu.memory_space<vmem>>) attributes {dimension_semantics = [#tpu.dimension_semantics<parallel>], iteration_bounds = array<i64: 1>, scalar_prefetch = 0 : i64, scratch_operands = 0 : i64, tpu.core_type = #tpu.core_type<tc>, window_params = [{transform_indices = @transform_0, window_bounds = array<i64: 16, 1>}, {pipeline_mode = #tpu.pipeline_mode<synchronous>, transform_indices = @transform_1, window_bounds = array<i64: 128, 32>}, {pipeline_mode = #tpu.pipeline_mode<synchronous>, transform_indices = @transform_2, window_bounds = array<i64: 2, 32, 160>}, {pipeline_mode = #tpu.pipeline_mode<synchronous>, transform_indices = @transform_3, window_bounds = array<i64: 2, 1, 160>}, {pipeline_mode = #tpu.pipeline_mode<synchronous>, transform_indices = @transform_4, window_bounds = array<i64: 2, 32, 32>}, {pipeline_mode = #tpu.pipeline_mode<synchronous>, transform_indices = @transform_5, window_bounds = array<i64: 2, 1, 32>}, {pipeline_mode = #tpu.pipeline_mode<synchronous>, transform_indices = @transform_6, window_bounds = array<i64: 2, 1, 32>}, {pipeline_mode = #tpu.pipeline_mode<synchronous>, transform_indices = @transform_7, window_bounds = array<i64: 2, 1, 32>}, {pipeline_mode = #tpu.pipeline_mode<synchronous>, transform_indices = @transform_8, window_bounds = array<i64: 2, 32, 64>}, {pipeline_mode = #tpu.pipeline_mode<synchronous>, transform_indices = @transform_9, window_bounds = array<i64: 2, 1, 64>}, {pipeline_mode = #tpu.pipeline_mode<synchronous>, transform_indices = @transform_10, window_bounds = array<i64: 2, 64, 128>}, {pipeline_mode = #tpu.pipeline_mode<synchronous>, transform_indices = @transform_11, window_bounds = array<i64: 2, 64, 32>}, {pipeline_mode = #tpu.pipeline_mode<synchronous>, transform_indices = @transform_12, window_bounds = array<i64: 2, 1, 32>}, {pipeline_mode = #tpu.pipeline_mode<synchronous>, transform_indices = @transform_13, window_bounds = array<i64: 1, 32>}, {pipeline_mode = #tpu.pipeline_mode<synchronous>, transform_indices = @transform_14, window_bounds = array<i64: 32, 128>}, {pipeline_mode = #tpu.pipeline_mode<synchronous>, transform_indices = @transform_15, window_bounds = array<i64: 1, 128>}, {pipeline_mode = #tpu.pipeline_mode<synchronous>, transform_indices = @transform_16, window_bounds = array<i64: 16, 32>}, {pipeline_mode = #tpu.pipeline_mode<synchronous>, transform_indices = @transform_17, window_bounds = array<i64: 16, 32>}, {transform_indices = @transform_18, window_bounds = array<i64: 2, 128>}]} {
    %c0 = arith.constant 0 : index
    %c0_0 = arith.constant 0 : index
    %0 = vector.load %arg1[%c0, %c0_0] : memref<16x1xi32, #tpu.memory_space<vmem>>, vector<16x1xi32>
    %1 = tpu.iota {dimensions = array<i32: 1>} : vector<16x128xi32>
    %2 = vector.broadcast %0 : vector<16x1xi32> to vector<16x128xi32>
    %3 = arith.cmpi eq, %1, %2 : vector<16x128xi32>
    %4 = arith.extui %3 : vector<16x128xi1> to vector<16x128xi32>
    %5 = arith.sitofp %4 : vector<16x128xi32> to vector<16x128xf32>
    %c0_1 = arith.constant 0 : index
    %c0_2 = arith.constant 0 : index
    %6 = vector.load %arg2[%c0_1, %c0_2] : memref<128x32xf32, #tpu.memory_space<vmem>>, vector<128x32xf32>
    %cst = arith.constant dense<0.000000e+00> : vector<16x32xf32>
    %7 = tpu.matmul %5, %6, %cst {dimension_numbers = #tpu.dot_dimension_numbers<[1], [0], [0], [1], [0, 0, 1, 1], [], []>} : vector<16x128xf32>, vector<128x32xf32>, vector<16x32xf32> -> vector<16x32xf32>
    %cst_3 = arith.constant 0.176776692 : f32
    %8 = vector.broadcast %cst_3 : f32 to vector<16x32xf32>
    %9 = arith.mulf %7, %8 : vector<16x32xf32>
    %c0_4 = arith.constant 0 : index
    %c0_5 = arith.constant 0 : index
    %10 = vector.load %arg17[%c0_4, %c0_5] : memref<16x32xf32, #tpu.memory_space<vmem>>, vector<16x32xf32>
    %c0_6 = arith.constant 0 : index
    %c0_7 = arith.constant 0 : index
    %11 = vector.load %arg18[%c0_6, %c0_7] : memref<16x32xf32, #tpu.memory_space<vmem>>, vector<16x32xf32>
    %c0_8 = arith.constant 0 : index
    %c0_9 = arith.constant 0 : index
    %c0_10 = arith.constant 0 : index
    %12 = vector.load %arg7[%c0_8, %c0_9, %c0_10] : memref<2x1x32xf32, #tpu.memory_space<vmem>>, vector<1x1x32xf32>
    %13 = vector.shape_cast %12 : vector<1x1x32xf32> to vector<1x32xf32>
    %14 = arith.mulf %9, %9 : vector<16x32xf32>
    %cst_11 = arith.constant dense<0.000000e+00> : vector<16xf32>
    %15 = vector.multi_reduction <add>, %14, %cst_11 [1] : vector<16x32xf32> to vector<16xf32>
    %16 = vector.shape_cast %15 : vector<16xf32> to vector<16x1xf32>
    %cst_12 = arith.constant 3.200000e+01 : f32
    %17 = vector.broadcast %cst_12 : f32 to vector<16x1xf32>
    %18 = arith.divf %16, %17 : vector<16x1xf32>
    %cst_13 = arith.constant 1.1920929E-7 : f32
    %19 = vector.broadcast %cst_13 : f32 to vector<16x1xf32>
    %20 = arith.addf %18, %19 : vector<16x1xf32>
    %21 = math.rsqrt %20 : vector<16x1xf32>
    %22 = vector.broadcast %21 : vector<16x1xf32> to vector<16x32xf32>
    %23 = arith.mulf %9, %22 : vector<16x32xf32>
    %24 = vector.broadcast %13 : vector<1x32xf32> to vector<16x32xf32>
    %25 = arith.mulf %23, %24 : vector<16x32xf32>
    %c0_14 = arith.constant 0 : index
    %c0_15 = arith.constant 0 : index
    %c0_16 = arith.constant 0 : index
    %26 = vector.load %arg3[%c0_14, %c0_15, %c0_16] : memref<2x32x160xf32, #tpu.memory_space<vmem>>, vector<1x32x160xf32>
    %27 = vector.shape_cast %26 : vector<1x32x160xf32> to vector<32x160xf32>
    %cst_17 = arith.constant dense<0.000000e+00> : vector<16x160xf32>
    %28 = tpu.matmul %25, %27, %cst_17 {dimension_numbers = #tpu.dot_dimension_numbers<[1], [0], [0], [1], [0, 0, 1, 1], [], []>} : vector<16x32xf32>, vector<32x160xf32>, vector<16x160xf32> -> vector<16x160xf32>
    %c0_18 = arith.constant 0 : index
    %c0_19 = arith.constant 0 : index
    %c0_20 = arith.constant 0 : index
    %29 = vector.load %arg4[%c0_18, %c0_19, %c0_20] : memref<2x1x160xf32, #tpu.memory_space<vmem>>, vector<1x1x160xf32>
    %30 = vector.shape_cast %29 : vector<1x1x160xf32> to vector<1x160xf32>
    %31 = vector.broadcast %30 : vector<1x160xf32> to vector<16x160xf32>
    %32 = arith.addf %28, %31 : vector<16x160xf32>
    %33 = vector.extract_strided_slice %32 {offsets = [0, 0], sizes = [16, 32], strides = [1, 1]} : vector<16x160xf32> to vector<16x32xf32>
    %34 = arith.mulf %33, %10 : vector<16x32xf32>
    %35 = vector.extract_strided_slice %32 {offsets = [0, 96], sizes = [16, 32], strides = [1, 1]} : vector<16x160xf32> to vector<16x32xf32>
    %36 = arith.mulf %35, %11 : vector<16x32xf32>
    %37 = arith.addf %34, %36 : vector<16x32xf32>
    %38 = vector.extract_strided_slice %32 {offsets = [0, 32], sizes = [16, 32], strides = [1, 1]} : vector<16x160xf32> to vector<16x32xf32>
    %39 = arith.mulf %38, %10 : vector<16x32xf32>
    %40 = vector.extract_strided_slice %32 {offsets = [0, 128], sizes = [16, 32], strides = [1, 1]} : vector<16x160xf32> to vector<16x32xf32>
    %41 = arith.mulf %40, %11 : vector<16x32xf32>
    %42 = arith.addf %39, %41 : vector<16x32xf32>
    %43 = vector.extract_strided_slice %32 {offsets = [0, 64], sizes = [16, 32], strides = [1, 1]} : vector<16x160xf32> to vector<16x32xf32>
    %44 = vector.shape_cast %37 : vector<16x32xf32> to vector<2x8x32xf32>
    %45 = vector.shape_cast %42 : vector<16x32xf32> to vector<2x8x32xf32>
    %46 = vector.shape_cast %43 : vector<16x32xf32> to vector<2x8x32xf32>
    %c0_21 = arith.constant 0 : index
    %c0_22 = arith.constant 0 : index
    %c0_23 = arith.constant 0 : index
    %47 = vector.load %arg5[%c0_21, %c0_22, %c0_23] : memref<2x32x32xf32, #tpu.memory_space<vmem>>, vector<1x32x32xf32>
    %48 = vector.shape_cast %47 : vector<1x32x32xf32> to vector<32x32xf32>
    %49 = vector.extract_strided_slice %44 {offsets = [0, 0, 0], sizes = [2, 8, 8], strides = [1, 1, 1]} : vector<2x8x32xf32> to vector<2x8x8xf32>
    %50 = vector.extract_strided_slice %45 {offsets = [0, 0, 0], sizes = [2, 8, 8], strides = [1, 1, 1]} : vector<2x8x32xf32> to vector<2x8x8xf32>
    "tpu.trace_start"() <{level = 10 : i32, message = "bqd,bkd->bqk"}> : () -> ()
    %cst_24 = arith.constant dense<0.000000e+00> : vector<2x8x8xf32>
    %51 = tpu.matmul %49, %50, %cst_24 {dimension_numbers = #tpu.dot_dimension_numbers<[2], [2], [1], [1], [0, 0, 0, 1, 1, 1], [0], [0]>} : vector<2x8x8xf32>, vector<2x8x8xf32>, vector<2x8x8xf32> -> vector<2x8x8xf32>
    "tpu.trace_stop"() : () -> ()
    %cst_25 = arith.constant 0.353553385 : f32
    %52 = vector.broadcast %cst_25 : f32 to vector<2x8x8xf32>
    %53 = arith.mulf %51, %52 : vector<2x8x8xf32>
    %cst_26 = arith.constant dense<0xFF800000> : vector<2x8xf32>
    %54 = vector.multi_reduction <maximumf>, %53, %cst_26 [2] : vector<2x8x8xf32> to vector<2x8xf32>
    %55 = vector.shape_cast %54 : vector<2x8xf32> to vector<2x8x1xf32>
    %56 = vector.broadcast %55 : vector<2x8x1xf32> to vector<2x8x8xf32>
    %57 = arith.subf %53, %56 : vector<2x8x8xf32>
    %58 = math.exp %57 : vector<2x8x8xf32>
    %cst_27 = arith.constant dense<0.000000e+00> : vector<2x8xf32>
    %59 = vector.multi_reduction <add>, %58, %cst_27 [2] : vector<2x8x8xf32> to vector<2x8xf32>
    %60 = vector.shape_cast %59 : vector<2x8xf32> to vector<2x8x1xf32>
    %61 = tpu.reciprocal %60 {approx = true} : vector<2x8x1xf32> -> vector<2x8x1xf32>
    %62 = vector.broadcast %61 : vector<2x8x1xf32> to vector<2x8x8xf32>
    %63 = arith.mulf %58, %62 : vector<2x8x8xf32>
    %64 = vector.extract_strided_slice %46 {offsets = [0, 0, 0], sizes = [2, 8, 8], strides = [1, 1, 1]} : vector<2x8x32xf32> to vector<2x8x8xf32>
    "tpu.trace_start"() <{level = 10 : i32, message = "bqk,bkd->bqd"}> : () -> ()
    %cst_28 = arith.constant dense<0.000000e+00> : vector<2x8x8xf32>
    %65 = tpu.matmul %63, %64, %cst_28 {dimension_numbers = #tpu.dot_dimension_numbers<[2], [1], [1], [2], [0, 0, 0, 1, 1, 2], [0], [0]>} : vector<2x8x8xf32>, vector<2x8x8xf32>, vector<2x8x8xf32> -> vector<2x8x8xf32>
    "tpu.trace_stop"() : () -> ()
    %66 = vector.shape_cast %65 : vector<2x8x8xf32> to vector<16x8xf32>
    %67 = vector.extract_strided_slice %48 {offsets = [0, 0], sizes = [8, 32], strides = [1, 1]} : vector<32x32xf32> to vector<8x32xf32>
    %cst_29 = arith.constant dense<0.000000e+00> : vector<16x32xf32>
    %68 = tpu.matmul %66, %67, %cst_29 {dimension_numbers = #tpu.dot_dimension_numbers<[1], [0], [0], [1], [0, 0, 1, 1], [], []>} : vector<16x8xf32>, vector<8x32xf32>, vector<16x32xf32> -> vector<16x32xf32>
    %69 = vector.extract_strided_slice %44 {offsets = [0, 0, 8], sizes = [2, 8, 8], strides = [1, 1, 1]} : vector<2x8x32xf32> to vector<2x8x8xf32>
    %70 = vector.extract_strided_slice %45 {offsets = [0, 0, 8], sizes = [2, 8, 8], strides = [1, 1, 1]} : vector<2x8x32xf32> to vector<2x8x8xf32>
    "tpu.trace_start"() <{level = 10 : i32, message = "bqd,bkd->bqk"}> : () -> ()
    %cst_30 = arith.constant dense<0.000000e+00> : vector<2x8x8xf32>
    %71 = tpu.matmul %69, %70, %cst_30 {dimension_numbers = #tpu.dot_dimension_numbers<[2], [2], [1], [1], [0, 0, 0, 1, 1, 1], [0], [0]>} : vector<2x8x8xf32>, vector<2x8x8xf32>, vector<2x8x8xf32> -> vector<2x8x8xf32>
    "tpu.trace_stop"() : () -> ()
    %cst_31 = arith.constant 0.353553385 : f32
    %72 = vector.broadcast %cst_31 : f32 to vector<2x8x8xf32>
    %73 = arith.mulf %71, %72 : vector<2x8x8xf32>
    %cst_32 = arith.constant dense<0xFF800000> : vector<2x8xf32>
    %74 = vector.multi_reduction <maximumf>, %73, %cst_32 [2] : vector<2x8x8xf32> to vector<2x8xf32>
    %75 = vector.shape_cast %74 : vector<2x8xf32> to vector<2x8x1xf32>
    %76 = vector.broadcast %75 : vector<2x8x1xf32> to vector<2x8x8xf32>
    %77 = arith.subf %73, %76 : vector<2x8x8xf32>
    %78 = math.exp %77 : vector<2x8x8xf32>
    %cst_33 = arith.constant dense<0.000000e+00> : vector<2x8xf32>
    %79 = vector.multi_reduction <add>, %78, %cst_33 [2] : vector<2x8x8xf32> to vector<2x8xf32>
    %80 = vector.shape_cast %79 : vector<2x8xf32> to vector<2x8x1xf32>
    %81 = tpu.reciprocal %80 {approx = true} : vector<2x8x1xf32> -> vector<2x8x1xf32>
    %82 = vector.broadcast %81 : vector<2x8x1xf32> to vector<2x8x8xf32>
    %83 = arith.mulf %78, %82 : vector<2x8x8xf32>
    %84 = vector.extract_strided_slice %46 {offsets = [0, 0, 8], sizes = [2, 8, 8], strides = [1, 1, 1]} : vector<2x8x32xf32> to vector<2x8x8xf32>
    "tpu.trace_start"() <{level = 10 : i32, message = "bqk,bkd->bqd"}> : () -> ()
    %cst_34 = arith.constant dense<0.000000e+00> : vector<2x8x8xf32>
    %85 = tpu.matmul %83, %84, %cst_34 {dimension_numbers = #tpu.dot_dimension_numbers<[2], [1], [1], [2], [0, 0, 0, 1, 1, 2], [0], [0]>} : vector<2x8x8xf32>, vector<2x8x8xf32>, vector<2x8x8xf32> -> vector<2x8x8xf32>
    "tpu.trace_stop"() : () -> ()
    %86 = vector.shape_cast %85 : vector<2x8x8xf32> to vector<16x8xf32>
    %87 = vector.extract_strided_slice %48 {offsets = [8, 0], sizes = [8, 32], strides = [1, 1]} : vector<32x32xf32> to vector<8x32xf32>
    %cst_35 = arith.constant dense<0.000000e+00> : vector<16x32xf32>
    %88 = tpu.matmul %86, %87, %cst_35 {dimension_numbers = #tpu.dot_dimension_numbers<[1], [0], [0], [1], [0, 0, 1, 1], [], []>} : vector<16x8xf32>, vector<8x32xf32>, vector<16x32xf32> -> vector<16x32xf32>
    %89 = arith.addf %68, %88 : vector<16x32xf32>
    %90 = vector.extract_strided_slice %44 {offsets = [0, 0, 16], sizes = [2, 8, 8], strides = [1, 1, 1]} : vector<2x8x32xf32> to vector<2x8x8xf32>
    %91 = vector.extract_strided_slice %45 {offsets = [0, 0, 16], sizes = [2, 8, 8], strides = [1, 1, 1]} : vector<2x8x32xf32> to vector<2x8x8xf32>
    "tpu.trace_start"() <{level = 10 : i32, message = "bqd,bkd->bqk"}> : () -> ()
    %cst_36 = arith.constant dense<0.000000e+00> : vector<2x8x8xf32>
    %92 = tpu.matmul %90, %91, %cst_36 {dimension_numbers = #tpu.dot_dimension_numbers<[2], [2], [1], [1], [0, 0, 0, 1, 1, 1], [0], [0]>} : vector<2x8x8xf32>, vector<2x8x8xf32>, vector<2x8x8xf32> -> vector<2x8x8xf32>
    "tpu.trace_stop"() : () -> ()
    %cst_37 = arith.constant 0.353553385 : f32
    %93 = vector.broadcast %cst_37 : f32 to vector<2x8x8xf32>
    %94 = arith.mulf %92, %93 : vector<2x8x8xf32>
    %cst_38 = arith.constant dense<0xFF800000> : vector<2x8xf32>
    %95 = vector.multi_reduction <maximumf>, %94, %cst_38 [2] : vector<2x8x8xf32> to vector<2x8xf32>
    %96 = vector.shape_cast %95 : vector<2x8xf32> to vector<2x8x1xf32>
    %97 = vector.broadcast %96 : vector<2x8x1xf32> to vector<2x8x8xf32>
    %98 = arith.subf %94, %97 : vector<2x8x8xf32>
    %99 = math.exp %98 : vector<2x8x8xf32>
    %cst_39 = arith.constant dense<0.000000e+00> : vector<2x8xf32>
    %100 = vector.multi_reduction <add>, %99, %cst_39 [2] : vector<2x8x8xf32> to vector<2x8xf32>
    %101 = vector.shape_cast %100 : vector<2x8xf32> to vector<2x8x1xf32>
    %102 = tpu.reciprocal %101 {approx = true} : vector<2x8x1xf32> -> vector<2x8x1xf32>
    %103 = vector.broadcast %102 : vector<2x8x1xf32> to vector<2x8x8xf32>
    %104 = arith.mulf %99, %103 : vector<2x8x8xf32>
    %105 = vector.extract_strided_slice %46 {offsets = [0, 0, 16], sizes = [2, 8, 8], strides = [1, 1, 1]} : vector<2x8x32xf32> to vector<2x8x8xf32>
    "tpu.trace_start"() <{level = 10 : i32, message = "bqk,bkd->bqd"}> : () -> ()
    %cst_40 = arith.constant dense<0.000000e+00> : vector<2x8x8xf32>
    %106 = tpu.matmul %104, %105, %cst_40 {dimension_numbers = #tpu.dot_dimension_numbers<[2], [1], [1], [2], [0, 0, 0, 1, 1, 2], [0], [0]>} : vector<2x8x8xf32>, vector<2x8x8xf32>, vector<2x8x8xf32> -> vector<2x8x8xf32>
    "tpu.trace_stop"() : () -> ()
    %107 = vector.shape_cast %106 : vector<2x8x8xf32> to vector<16x8xf32>
    %108 = vector.extract_strided_slice %48 {offsets = [16, 0], sizes = [8, 32], strides = [1, 1]} : vector<32x32xf32> to vector<8x32xf32>
    %cst_41 = arith.constant dense<0.000000e+00> : vector<16x32xf32>
    %109 = tpu.matmul %107, %108, %cst_41 {dimension_numbers = #tpu.dot_dimension_numbers<[1], [0], [0], [1], [0, 0, 1, 1], [], []>} : vector<16x8xf32>, vector<8x32xf32>, vector<16x32xf32> -> vector<16x32xf32>
    %110 = arith.addf %89, %109 : vector<16x32xf32>
    %111 = vector.extract_strided_slice %44 {offsets = [0, 0, 24], sizes = [2, 8, 8], strides = [1, 1, 1]} : vector<2x8x32xf32> to vector<2x8x8xf32>
    %112 = vector.extract_strided_slice %45 {offsets = [0, 0, 24], sizes = [2, 8, 8], strides = [1, 1, 1]} : vector<2x8x32xf32> to vector<2x8x8xf32>
    "tpu.trace_start"() <{level = 10 : i32, message = "bqd,bkd->bqk"}> : () -> ()
    %cst_42 = arith.constant dense<0.000000e+00> : vector<2x8x8xf32>
    %113 = tpu.matmul %111, %112, %cst_42 {dimension_numbers = #tpu.dot_dimension_numbers<[2], [2], [1], [1], [0, 0, 0, 1, 1, 1], [0], [0]>} : vector<2x8x8xf32>, vector<2x8x8xf32>, vector<2x8x8xf32> -> vector<2x8x8xf32>
    "tpu.trace_stop"() : () -> ()
    %cst_43 = arith.constant 0.353553385 : f32
    %114 = vector.broadcast %cst_43 : f32 to vector<2x8x8xf32>
    %115 = arith.mulf %113, %114 : vector<2x8x8xf32>
    %cst_44 = arith.constant dense<0xFF800000> : vector<2x8xf32>
    %116 = vector.multi_reduction <maximumf>, %115, %cst_44 [2] : vector<2x8x8xf32> to vector<2x8xf32>
    %117 = vector.shape_cast %116 : vector<2x8xf32> to vector<2x8x1xf32>
    %118 = vector.broadcast %117 : vector<2x8x1xf32> to vector<2x8x8xf32>
    %119 = arith.subf %115, %118 : vector<2x8x8xf32>
    %120 = math.exp %119 : vector<2x8x8xf32>
    %cst_45 = arith.constant dense<0.000000e+00> : vector<2x8xf32>
    %121 = vector.multi_reduction <add>, %120, %cst_45 [2] : vector<2x8x8xf32> to vector<2x8xf32>
    %122 = vector.shape_cast %121 : vector<2x8xf32> to vector<2x8x1xf32>
    %123 = tpu.reciprocal %122 {approx = true} : vector<2x8x1xf32> -> vector<2x8x1xf32>
    %124 = vector.broadcast %123 : vector<2x8x1xf32> to vector<2x8x8xf32>
    %125 = arith.mulf %120, %124 : vector<2x8x8xf32>
    %126 = vector.extract_strided_slice %46 {offsets = [0, 0, 24], sizes = [2, 8, 8], strides = [1, 1, 1]} : vector<2x8x32xf32> to vector<2x8x8xf32>
    "tpu.trace_start"() <{level = 10 : i32, message = "bqk,bkd->bqd"}> : () -> ()
    %cst_46 = arith.constant dense<0.000000e+00> : vector<2x8x8xf32>
    %127 = tpu.matmul %125, %126, %cst_46 {dimension_numbers = #tpu.dot_dimension_numbers<[2], [1], [1], [2], [0, 0, 0, 1, 1, 2], [0], [0]>} : vector<2x8x8xf32>, vector<2x8x8xf32>, vector<2x8x8xf32> -> vector<2x8x8xf32>
    "tpu.trace_stop"() : () -> ()
    %128 = vector.shape_cast %127 : vector<2x8x8xf32> to vector<16x8xf32>
    %129 = vector.extract_strided_slice %48 {offsets = [24, 0], sizes = [8, 32], strides = [1, 1]} : vector<32x32xf32> to vector<8x32xf32>
    %cst_47 = arith.constant dense<0.000000e+00> : vector<16x32xf32>
    %130 = tpu.matmul %128, %129, %cst_47 {dimension_numbers = #tpu.dot_dimension_numbers<[1], [0], [0], [1], [0, 0, 1, 1], [], []>} : vector<16x8xf32>, vector<8x32xf32>, vector<16x32xf32> -> vector<16x32xf32>
    %131 = arith.addf %110, %130 : vector<16x32xf32>
    %c0_48 = arith.constant 0 : index
    %c0_49 = arith.constant 0 : index
    %c0_50 = arith.constant 0 : index
    %132 = vector.load %arg6[%c0_48, %c0_49, %c0_50] : memref<2x1x32xf32, #tpu.memory_space<vmem>>, vector<1x1x32xf32>
    %133 = vector.shape_cast %132 : vector<1x1x32xf32> to vector<1x32xf32>
    %134 = vector.broadcast %133 : vector<1x32xf32> to vector<16x32xf32>
    %135 = arith.addf %131, %134 : vector<16x32xf32>
    %136 = arith.addf %9, %135 : vector<16x32xf32>
    %c0_51 = arith.constant 0 : index
    %c0_52 = arith.constant 0 : index
    %c0_53 = arith.constant 0 : index
    %137 = vector.load %arg8[%c0_51, %c0_52, %c0_53] : memref<2x1x32xf32, #tpu.memory_space<vmem>>, vector<1x1x32xf32>
    %138 = vector.shape_cast %137 : vector<1x1x32xf32> to vector<1x32xf32>
    %139 = arith.mulf %136, %136 : vector<16x32xf32>
    %cst_54 = arith.constant dense<0.000000e+00> : vector<16xf32>
    %140 = vector.multi_reduction <add>, %139, %cst_54 [1] : vector<16x32xf32> to vector<16xf32>
    %141 = vector.shape_cast %140 : vector<16xf32> to vector<16x1xf32>
    %cst_55 = arith.constant 3.200000e+01 : f32
    %142 = vector.broadcast %cst_55 : f32 to vector<16x1xf32>
    %143 = arith.divf %141, %142 : vector<16x1xf32>
    %cst_56 = arith.constant 1.1920929E-7 : f32
    %144 = vector.broadcast %cst_56 : f32 to vector<16x1xf32>
    %145 = arith.addf %143, %144 : vector<16x1xf32>
    %146 = math.rsqrt %145 : vector<16x1xf32>
    %147 = vector.broadcast %146 : vector<16x1xf32> to vector<16x32xf32>
    %148 = arith.mulf %136, %147 : vector<16x32xf32>
    %149 = vector.broadcast %138 : vector<1x32xf32> to vector<16x32xf32>
    %150 = arith.mulf %148, %149 : vector<16x32xf32>
    %c0_57 = arith.constant 0 : index
    %c0_58 = arith.constant 0 : index
    %c0_59 = arith.constant 0 : index
    %151 = vector.load %arg9[%c0_57, %c0_58, %c0_59] : memref<2x32x64xf32, #tpu.memory_space<vmem>>, vector<1x32x64xf32>
    %152 = vector.shape_cast %151 : vector<1x32x64xf32> to vector<32x64xf32>
    %cst_60 = arith.constant dense<0.000000e+00> : vector<16x64xf32>
    %153 = tpu.matmul %150, %152, %cst_60 {dimension_numbers = #tpu.dot_dimension_numbers<[1], [0], [0], [1], [0, 0, 1, 1], [], []>} : vector<16x32xf32>, vector<32x64xf32>, vector<16x64xf32> -> vector<16x64xf32>
    %c0_61 = arith.constant 0 : index
    %c0_62 = arith.constant 0 : index
    %c0_63 = arith.constant 0 : index
    %154 = vector.load %arg10[%c0_61, %c0_62, %c0_63] : memref<2x1x64xf32, #tpu.memory_space<vmem>>, vector<1x1x64xf32>
    %155 = vector.shape_cast %154 : vector<1x1x64xf32> to vector<1x64xf32>
    %156 = vector.broadcast %155 : vector<1x64xf32> to vector<16x64xf32>
    %157 = arith.addf %153, %156 : vector<16x64xf32>
    %c0_64 = arith.constant 0 : index
    %c0_65 = arith.constant 0 : index
    %c0_66 = arith.constant 0 : index
    %158 = vector.load %arg11[%c0_64, %c0_65, %c0_66] : memref<2x64x128xf32, #tpu.memory_space<vmem>>, vector<1x64x128xf32>
    %159 = vector.shape_cast %158 : vector<1x64x128xf32> to vector<64x128xf32>
    %cst_67 = arith.constant dense<0.000000e+00> : vector<16x128xf32>
    %160 = tpu.matmul %157, %159, %cst_67 {dimension_numbers = #tpu.dot_dimension_numbers<[1], [0], [0], [1], [0, 0, 1, 1], [], []>} : vector<16x64xf32>, vector<64x128xf32>, vector<16x128xf32> -> vector<16x128xf32>
    %161 = vector.extract_strided_slice %160 {offsets = [0, 0], sizes = [16, 64], strides = [1, 1]} : vector<16x128xf32> to vector<16x64xf32>
    %162 = vector.extract_strided_slice %160 {offsets = [0, 64], sizes = [16, 64], strides = [1, 1]} : vector<16x128xf32> to vector<16x64xf32>
    %cst_68 = arith.constant 0.000000e+00 : f32
    %163 = vector.broadcast %cst_68 : f32 to vector<16x64xf32>
    %164 = arith.subf %163, %162 : vector<16x64xf32>
    %165 = math.exp %164 : vector<16x64xf32>
    %cst_69 = arith.constant 1.000000e+00 : f32
    %166 = vector.broadcast %cst_69 : f32 to vector<16x64xf32>
    %167 = arith.addf %166, %165 : vector<16x64xf32>
    %168 = tpu.reciprocal %167 {approx = true} : vector<16x64xf32> -> vector<16x64xf32>
    %169 = arith.mulf %162, %168 : vector<16x64xf32>
    %170 = arith.mulf %161, %169 : vector<16x64xf32>
    %c0_70 = arith.constant 0 : index
    %c0_71 = arith.constant 0 : index
    %c0_72 = arith.constant 0 : index
    %171 = vector.load %arg12[%c0_70, %c0_71, %c0_72] : memref<2x64x32xf32, #tpu.memory_space<vmem>>, vector<1x64x32xf32>
    %172 = vector.shape_cast %171 : vector<1x64x32xf32> to vector<64x32xf32>
    %cst_73 = arith.constant dense<0.000000e+00> : vector<16x32xf32>
    %173 = tpu.matmul %170, %172, %cst_73 {dimension_numbers = #tpu.dot_dimension_numbers<[1], [0], [0], [1], [0, 0, 1, 1], [], []>} : vector<16x64xf32>, vector<64x32xf32>, vector<16x32xf32> -> vector<16x32xf32>
    %c0_74 = arith.constant 0 : index
    %c0_75 = arith.constant 0 : index
    %c0_76 = arith.constant 0 : index
    %174 = vector.load %arg13[%c0_74, %c0_75, %c0_76] : memref<2x1x32xf32, #tpu.memory_space<vmem>>, vector<1x1x32xf32>
    %175 = vector.shape_cast %174 : vector<1x1x32xf32> to vector<1x32xf32>
    %176 = vector.broadcast %175 : vector<1x32xf32> to vector<16x32xf32>
    %177 = arith.addf %173, %176 : vector<16x32xf32>
    %178 = arith.addf %150, %177 : vector<16x32xf32>
    %c1 = arith.constant 1 : index
    %c0_77 = arith.constant 0 : index
    %c0_78 = arith.constant 0 : index
    %179 = vector.load %arg7[%c1, %c0_77, %c0_78] : memref<2x1x32xf32, #tpu.memory_space<vmem>>, vector<1x1x32xf32>
    %180 = vector.shape_cast %179 : vector<1x1x32xf32> to vector<1x32xf32>
    %181 = arith.mulf %178, %178 : vector<16x32xf32>
    %cst_79 = arith.constant dense<0.000000e+00> : vector<16xf32>
    %182 = vector.multi_reduction <add>, %181, %cst_79 [1] : vector<16x32xf32> to vector<16xf32>
    %183 = vector.shape_cast %182 : vector<16xf32> to vector<16x1xf32>
    %cst_80 = arith.constant 3.200000e+01 : f32
    %184 = vector.broadcast %cst_80 : f32 to vector<16x1xf32>
    %185 = arith.divf %183, %184 : vector<16x1xf32>
    %cst_81 = arith.constant 1.1920929E-7 : f32
    %186 = vector.broadcast %cst_81 : f32 to vector<16x1xf32>
    %187 = arith.addf %185, %186 : vector<16x1xf32>
    %188 = math.rsqrt %187 : vector<16x1xf32>
    %189 = vector.broadcast %188 : vector<16x1xf32> to vector<16x32xf32>
    %190 = arith.mulf %178, %189 : vector<16x32xf32>
    %191 = vector.broadcast %180 : vector<1x32xf32> to vector<16x32xf32>
    %192 = arith.mulf %190, %191 : vector<16x32xf32>
    %c1_82 = arith.constant 1 : index
    %c0_83 = arith.constant 0 : index
    %c0_84 = arith.constant 0 : index
    %193 = vector.load %arg3[%c1_82, %c0_83, %c0_84] : memref<2x32x160xf32, #tpu.memory_space<vmem>>, vector<1x32x160xf32>
    %194 = vector.shape_cast %193 : vector<1x32x160xf32> to vector<32x160xf32>
    %cst_85 = arith.constant dense<0.000000e+00> : vector<16x160xf32>
    %195 = tpu.matmul %192, %194, %cst_85 {dimension_numbers = #tpu.dot_dimension_numbers<[1], [0], [0], [1], [0, 0, 1, 1], [], []>} : vector<16x32xf32>, vector<32x160xf32>, vector<16x160xf32> -> vector<16x160xf32>
    %c1_86 = arith.constant 1 : index
    %c0_87 = arith.constant 0 : index
    %c0_88 = arith.constant 0 : index
    %196 = vector.load %arg4[%c1_86, %c0_87, %c0_88] : memref<2x1x160xf32, #tpu.memory_space<vmem>>, vector<1x1x160xf32>
    %197 = vector.shape_cast %196 : vector<1x1x160xf32> to vector<1x160xf32>
    %198 = vector.broadcast %197 : vector<1x160xf32> to vector<16x160xf32>
    %199 = arith.addf %195, %198 : vector<16x160xf32>
    %200 = vector.extract_strided_slice %199 {offsets = [0, 0], sizes = [16, 32], strides = [1, 1]} : vector<16x160xf32> to vector<16x32xf32>
    %201 = arith.mulf %200, %10 : vector<16x32xf32>
    %202 = vector.extract_strided_slice %199 {offsets = [0, 96], sizes = [16, 32], strides = [1, 1]} : vector<16x160xf32> to vector<16x32xf32>
    %203 = arith.mulf %202, %11 : vector<16x32xf32>
    %204 = arith.addf %201, %203 : vector<16x32xf32>
    %205 = vector.extract_strided_slice %199 {offsets = [0, 32], sizes = [16, 32], strides = [1, 1]} : vector<16x160xf32> to vector<16x32xf32>
    %206 = arith.mulf %205, %10 : vector<16x32xf32>
    %207 = vector.extract_strided_slice %199 {offsets = [0, 128], sizes = [16, 32], strides = [1, 1]} : vector<16x160xf32> to vector<16x32xf32>
    %208 = arith.mulf %207, %11 : vector<16x32xf32>
    %209 = arith.addf %206, %208 : vector<16x32xf32>
    %210 = vector.extract_strided_slice %199 {offsets = [0, 64], sizes = [16, 32], strides = [1, 1]} : vector<16x160xf32> to vector<16x32xf32>
    %211 = vector.shape_cast %204 : vector<16x32xf32> to vector<2x8x32xf32>
    %212 = vector.shape_cast %209 : vector<16x32xf32> to vector<2x8x32xf32>
    %213 = vector.shape_cast %210 : vector<16x32xf32> to vector<2x8x32xf32>
    %c1_89 = arith.constant 1 : index
    %c0_90 = arith.constant 0 : index
    %c0_91 = arith.constant 0 : index
    %214 = vector.load %arg5[%c1_89, %c0_90, %c0_91] : memref<2x32x32xf32, #tpu.memory_space<vmem>>, vector<1x32x32xf32>
    %215 = vector.shape_cast %214 : vector<1x32x32xf32> to vector<32x32xf32>
    %216 = vector.extract_strided_slice %211 {offsets = [0, 0, 0], sizes = [2, 8, 8], strides = [1, 1, 1]} : vector<2x8x32xf32> to vector<2x8x8xf32>
    %217 = vector.extract_strided_slice %212 {offsets = [0, 0, 0], sizes = [2, 8, 8], strides = [1, 1, 1]} : vector<2x8x32xf32> to vector<2x8x8xf32>
    "tpu.trace_start"() <{level = 10 : i32, message = "bqd,bkd->bqk"}> : () -> ()
    %cst_92 = arith.constant dense<0.000000e+00> : vector<2x8x8xf32>
    %218 = tpu.matmul %216, %217, %cst_92 {dimension_numbers = #tpu.dot_dimension_numbers<[2], [2], [1], [1], [0, 0, 0, 1, 1, 1], [0], [0]>} : vector<2x8x8xf32>, vector<2x8x8xf32>, vector<2x8x8xf32> -> vector<2x8x8xf32>
    "tpu.trace_stop"() : () -> ()
    %cst_93 = arith.constant 0.353553385 : f32
    %219 = vector.broadcast %cst_93 : f32 to vector<2x8x8xf32>
    %220 = arith.mulf %218, %219 : vector<2x8x8xf32>
    %cst_94 = arith.constant dense<0xFF800000> : vector<2x8xf32>
    %221 = vector.multi_reduction <maximumf>, %220, %cst_94 [2] : vector<2x8x8xf32> to vector<2x8xf32>
    %222 = vector.shape_cast %221 : vector<2x8xf32> to vector<2x8x1xf32>
    %223 = vector.broadcast %222 : vector<2x8x1xf32> to vector<2x8x8xf32>
    %224 = arith.subf %220, %223 : vector<2x8x8xf32>
    %225 = math.exp %224 : vector<2x8x8xf32>
    %cst_95 = arith.constant dense<0.000000e+00> : vector<2x8xf32>
    %226 = vector.multi_reduction <add>, %225, %cst_95 [2] : vector<2x8x8xf32> to vector<2x8xf32>
    %227 = vector.shape_cast %226 : vector<2x8xf32> to vector<2x8x1xf32>
    %228 = tpu.reciprocal %227 {approx = true} : vector<2x8x1xf32> -> vector<2x8x1xf32>
    %229 = vector.broadcast %228 : vector<2x8x1xf32> to vector<2x8x8xf32>
    %230 = arith.mulf %225, %229 : vector<2x8x8xf32>
    %231 = vector.extract_strided_slice %213 {offsets = [0, 0, 0], sizes = [2, 8, 8], strides = [1, 1, 1]} : vector<2x8x32xf32> to vector<2x8x8xf32>
    "tpu.trace_start"() <{level = 10 : i32, message = "bqk,bkd->bqd"}> : () -> ()
    %cst_96 = arith.constant dense<0.000000e+00> : vector<2x8x8xf32>
    %232 = tpu.matmul %230, %231, %cst_96 {dimension_numbers = #tpu.dot_dimension_numbers<[2], [1], [1], [2], [0, 0, 0, 1, 1, 2], [0], [0]>} : vector<2x8x8xf32>, vector<2x8x8xf32>, vector<2x8x8xf32> -> vector<2x8x8xf32>
    "tpu.trace_stop"() : () -> ()
    %233 = vector.shape_cast %232 : vector<2x8x8xf32> to vector<16x8xf32>
    %234 = vector.extract_strided_slice %215 {offsets = [0, 0], sizes = [8, 32], strides = [1, 1]} : vector<32x32xf32> to vector<8x32xf32>
    %cst_97 = arith.constant dense<0.000000e+00> : vector<16x32xf32>
    %235 = tpu.matmul %233, %234, %cst_97 {dimension_numbers = #tpu.dot_dimension_numbers<[1], [0], [0], [1], [0, 0, 1, 1], [], []>} : vector<16x8xf32>, vector<8x32xf32>, vector<16x32xf32> -> vector<16x32xf32>
    %236 = vector.extract_strided_slice %211 {offsets = [0, 0, 8], sizes = [2, 8, 8], strides = [1, 1, 1]} : vector<2x8x32xf32> to vector<2x8x8xf32>
    %237 = vector.extract_strided_slice %212 {offsets = [0, 0, 8], sizes = [2, 8, 8], strides = [1, 1, 1]} : vector<2x8x32xf32> to vector<2x8x8xf32>
    "tpu.trace_start"() <{level = 10 : i32, message = "bqd,bkd->bqk"}> : () -> ()
    %cst_98 = arith.constant dense<0.000000e+00> : vector<2x8x8xf32>
    %238 = tpu.matmul %236, %237, %cst_98 {dimension_numbers = #tpu.dot_dimension_numbers<[2], [2], [1], [1], [0, 0, 0, 1, 1, 1], [0], [0]>} : vector<2x8x8xf32>, vector<2x8x8xf32>, vector<2x8x8xf32> -> vector<2x8x8xf32>
    "tpu.trace_stop"() : () -> ()
    %cst_99 = arith.constant 0.353553385 : f32
    %239 = vector.broadcast %cst_99 : f32 to vector<2x8x8xf32>
    %240 = arith.mulf %238, %239 : vector<2x8x8xf32>
    %cst_100 = arith.constant dense<0xFF800000> : vector<2x8xf32>
    %241 = vector.multi_reduction <maximumf>, %240, %cst_100 [2] : vector<2x8x8xf32> to vector<2x8xf32>
    %242 = vector.shape_cast %241 : vector<2x8xf32> to vector<2x8x1xf32>
    %243 = vector.broadcast %242 : vector<2x8x1xf32> to vector<2x8x8xf32>
    %244 = arith.subf %240, %243 : vector<2x8x8xf32>
    %245 = math.exp %244 : vector<2x8x8xf32>
    %cst_101 = arith.constant dense<0.000000e+00> : vector<2x8xf32>
    %246 = vector.multi_reduction <add>, %245, %cst_101 [2] : vector<2x8x8xf32> to vector<2x8xf32>
    %247 = vector.shape_cast %246 : vector<2x8xf32> to vector<2x8x1xf32>
    %248 = tpu.reciprocal %247 {approx = true} : vector<2x8x1xf32> -> vector<2x8x1xf32>
    %249 = vector.broadcast %248 : vector<2x8x1xf32> to vector<2x8x8xf32>
    %250 = arith.mulf %245, %249 : vector<2x8x8xf32>
    %251 = vector.extract_strided_slice %213 {offsets = [0, 0, 8], sizes = [2, 8, 8], strides = [1, 1, 1]} : vector<2x8x32xf32> to vector<2x8x8xf32>
    "tpu.trace_start"() <{level = 10 : i32, message = "bqk,bkd->bqd"}> : () -> ()
    %cst_102 = arith.constant dense<0.000000e+00> : vector<2x8x8xf32>
    %252 = tpu.matmul %250, %251, %cst_102 {dimension_numbers = #tpu.dot_dimension_numbers<[2], [1], [1], [2], [0, 0, 0, 1, 1, 2], [0], [0]>} : vector<2x8x8xf32>, vector<2x8x8xf32>, vector<2x8x8xf32> -> vector<2x8x8xf32>
    "tpu.trace_stop"() : () -> ()
    %253 = vector.shape_cast %252 : vector<2x8x8xf32> to vector<16x8xf32>
    %254 = vector.extract_strided_slice %215 {offsets = [8, 0], sizes = [8, 32], strides = [1, 1]} : vector<32x32xf32> to vector<8x32xf32>
    %cst_103 = arith.constant dense<0.000000e+00> : vector<16x32xf32>
    %255 = tpu.matmul %253, %254, %cst_103 {dimension_numbers = #tpu.dot_dimension_numbers<[1], [0], [0], [1], [0, 0, 1, 1], [], []>} : vector<16x8xf32>, vector<8x32xf32>, vector<16x32xf32> -> vector<16x32xf32>
    %256 = arith.addf %235, %255 : vector<16x32xf32>
    %257 = vector.extract_strided_slice %211 {offsets = [0, 0, 16], sizes = [2, 8, 8], strides = [1, 1, 1]} : vector<2x8x32xf32> to vector<2x8x8xf32>
    %258 = vector.extract_strided_slice %212 {offsets = [0, 0, 16], sizes = [2, 8, 8], strides = [1, 1, 1]} : vector<2x8x32xf32> to vector<2x8x8xf32>
    "tpu.trace_start"() <{level = 10 : i32, message = "bqd,bkd->bqk"}> : () -> ()
    %cst_104 = arith.constant dense<0.000000e+00> : vector<2x8x8xf32>
    %259 = tpu.matmul %257, %258, %cst_104 {dimension_numbers = #tpu.dot_dimension_numbers<[2], [2], [1], [1], [0, 0, 0, 1, 1, 1], [0], [0]>} : vector<2x8x8xf32>, vector<2x8x8xf32>, vector<2x8x8xf32> -> vector<2x8x8xf32>
    "tpu.trace_stop"() : () -> ()
    %cst_105 = arith.constant 0.353553385 : f32
    %260 = vector.broadcast %cst_105 : f32 to vector<2x8x8xf32>
    %261 = arith.mulf %259, %260 : vector<2x8x8xf32>
    %cst_106 = arith.constant dense<0xFF800000> : vector<2x8xf32>
    %262 = vector.multi_reduction <maximumf>, %261, %cst_106 [2] : vector<2x8x8xf32> to vector<2x8xf32>
    %263 = vector.shape_cast %262 : vector<2x8xf32> to vector<2x8x1xf32>
    %264 = vector.broadcast %263 : vector<2x8x1xf32> to vector<2x8x8xf32>
    %265 = arith.subf %261, %264 : vector<2x8x8xf32>
    %266 = math.exp %265 : vector<2x8x8xf32>
    %cst_107 = arith.constant dense<0.000000e+00> : vector<2x8xf32>
    %267 = vector.multi_reduction <add>, %266, %cst_107 [2] : vector<2x8x8xf32> to vector<2x8xf32>
    %268 = vector.shape_cast %267 : vector<2x8xf32> to vector<2x8x1xf32>
    %269 = tpu.reciprocal %268 {approx = true} : vector<2x8x1xf32> -> vector<2x8x1xf32>
    %270 = vector.broadcast %269 : vector<2x8x1xf32> to vector<2x8x8xf32>
    %271 = arith.mulf %266, %270 : vector<2x8x8xf32>
    %272 = vector.extract_strided_slice %213 {offsets = [0, 0, 16], sizes = [2, 8, 8], strides = [1, 1, 1]} : vector<2x8x32xf32> to vector<2x8x8xf32>
    "tpu.trace_start"() <{level = 10 : i32, message = "bqk,bkd->bqd"}> : () -> ()
    %cst_108 = arith.constant dense<0.000000e+00> : vector<2x8x8xf32>
    %273 = tpu.matmul %271, %272, %cst_108 {dimension_numbers = #tpu.dot_dimension_numbers<[2], [1], [1], [2], [0, 0, 0, 1, 1, 2], [0], [0]>} : vector<2x8x8xf32>, vector<2x8x8xf32>, vector<2x8x8xf32> -> vector<2x8x8xf32>
    "tpu.trace_stop"() : () -> ()
    %274 = vector.shape_cast %273 : vector<2x8x8xf32> to vector<16x8xf32>
    %275 = vector.extract_strided_slice %215 {offsets = [16, 0], sizes = [8, 32], strides = [1, 1]} : vector<32x32xf32> to vector<8x32xf32>
    %cst_109 = arith.constant dense<0.000000e+00> : vector<16x32xf32>
    %276 = tpu.matmul %274, %275, %cst_109 {dimension_numbers = #tpu.dot_dimension_numbers<[1], [0], [0], [1], [0, 0, 1, 1], [], []>} : vector<16x8xf32>, vector<8x32xf32>, vector<16x32xf32> -> vector<16x32xf32>
    %277 = arith.addf %256, %276 : vector<16x32xf32>
    %278 = vector.extract_strided_slice %211 {offsets = [0, 0, 24], sizes = [2, 8, 8], strides = [1, 1, 1]} : vector<2x8x32xf32> to vector<2x8x8xf32>
    %279 = vector.extract_strided_slice %212 {offsets = [0, 0, 24], sizes = [2, 8, 8], strides = [1, 1, 1]} : vector<2x8x32xf32> to vector<2x8x8xf32>
    "tpu.trace_start"() <{level = 10 : i32, message = "bqd,bkd->bqk"}> : () -> ()
    %cst_110 = arith.constant dense<0.000000e+00> : vector<2x8x8xf32>
    %280 = tpu.matmul %278, %279, %cst_110 {dimension_numbers = #tpu.dot_dimension_numbers<[2], [2], [1], [1], [0, 0, 0, 1, 1, 1], [0], [0]>} : vector<2x8x8xf32>, vector<2x8x8xf32>, vector<2x8x8xf32> -> vector<2x8x8xf32>
    "tpu.trace_stop"() : () -> ()
    %cst_111 = arith.constant 0.353553385 : f32
    %281 = vector.broadcast %cst_111 : f32 to vector<2x8x8xf32>
    %282 = arith.mulf %280, %281 : vector<2x8x8xf32>
    %cst_112 = arith.constant dense<0xFF800000> : vector<2x8xf32>
    %283 = vector.multi_reduction <maximumf>, %282, %cst_112 [2] : vector<2x8x8xf32> to vector<2x8xf32>
    %284 = vector.shape_cast %283 : vector<2x8xf32> to vector<2x8x1xf32>
    %285 = vector.broadcast %284 : vector<2x8x1xf32> to vector<2x8x8xf32>
    %286 = arith.subf %282, %285 : vector<2x8x8xf32>
    %287 = math.exp %286 : vector<2x8x8xf32>
    %cst_113 = arith.constant dense<0.000000e+00> : vector<2x8xf32>
    %288 = vector.multi_reduction <add>, %287, %cst_113 [2] : vector<2x8x8xf32> to vector<2x8xf32>
    %289 = vector.shape_cast %288 : vector<2x8xf32> to vector<2x8x1xf32>
    %290 = tpu.reciprocal %289 {approx = true} : vector<2x8x1xf32> -> vector<2x8x1xf32>
    %291 = vector.broadcast %290 : vector<2x8x1xf32> to vector<2x8x8xf32>
    %292 = arith.mulf %287, %291 : vector<2x8x8xf32>
    %293 = vector.extract_strided_slice %213 {offsets = [0, 0, 24], sizes = [2, 8, 8], strides = [1, 1, 1]} : vector<2x8x32xf32> to vector<2x8x8xf32>
    "tpu.trace_start"() <{level = 10 : i32, message = "bqk,bkd->bqd"}> : () -> ()
    %cst_114 = arith.constant dense<0.000000e+00> : vector<2x8x8xf32>
    %294 = tpu.matmul %292, %293, %cst_114 {dimension_numbers = #tpu.dot_dimension_numbers<[2], [1], [1], [2], [0, 0, 0, 1, 1, 2], [0], [0]>} : vector<2x8x8xf32>, vector<2x8x8xf32>, vector<2x8x8xf32> -> vector<2x8x8xf32>
    "tpu.trace_stop"() : () -> ()
    %295 = vector.shape_cast %294 : vector<2x8x8xf32> to vector<16x8xf32>
    %296 = vector.extract_strided_slice %215 {offsets = [24, 0], sizes = [8, 32], strides = [1, 1]} : vector<32x32xf32> to vector<8x32xf32>
    %cst_115 = arith.constant dense<0.000000e+00> : vector<16x32xf32>
    %297 = tpu.matmul %295, %296, %cst_115 {dimension_numbers = #tpu.dot_dimension_numbers<[1], [0], [0], [1], [0, 0, 1, 1], [], []>} : vector<16x8xf32>, vector<8x32xf32>, vector<16x32xf32> -> vector<16x32xf32>
    %298 = arith.addf %277, %297 : vector<16x32xf32>
    %c1_116 = arith.constant 1 : index
    %c0_117 = arith.constant 0 : index
    %c0_118 = arith.constant 0 : index
    %299 = vector.load %arg6[%c1_116, %c0_117, %c0_118] : memref<2x1x32xf32, #tpu.memory_space<vmem>>, vector<1x1x32xf32>
    %300 = vector.shape_cast %299 : vector<1x1x32xf32> to vector<1x32xf32>
    %301 = vector.broadcast %300 : vector<1x32xf32> to vector<16x32xf32>
    %302 = arith.addf %298, %301 : vector<16x32xf32>
    %303 = arith.addf %178, %302 : vector<16x32xf32>
    %c1_119 = arith.constant 1 : index
    %c0_120 = arith.constant 0 : index
    %c0_121 = arith.constant 0 : index
    %304 = vector.load %arg8[%c1_119, %c0_120, %c0_121] : memref<2x1x32xf32, #tpu.memory_space<vmem>>, vector<1x1x32xf32>
    %305 = vector.shape_cast %304 : vector<1x1x32xf32> to vector<1x32xf32>
    %306 = arith.mulf %303, %303 : vector<16x32xf32>
    %cst_122 = arith.constant dense<0.000000e+00> : vector<16xf32>
    %307 = vector.multi_reduction <add>, %306, %cst_122 [1] : vector<16x32xf32> to vector<16xf32>
    %308 = vector.shape_cast %307 : vector<16xf32> to vector<16x1xf32>
    %cst_123 = arith.constant 3.200000e+01 : f32
    %309 = vector.broadcast %cst_123 : f32 to vector<16x1xf32>
    %310 = arith.divf %308, %309 : vector<16x1xf32>
    %cst_124 = arith.constant 1.1920929E-7 : f32
    %311 = vector.broadcast %cst_124 : f32 to vector<16x1xf32>
    %312 = arith.addf %310, %311 : vector<16x1xf32>
    %313 = math.rsqrt %312 : vector<16x1xf32>
    %314 = vector.broadcast %313 : vector<16x1xf32> to vector<16x32xf32>
    %315 = arith.mulf %303, %314 : vector<16x32xf32>
    %316 = vector.broadcast %305 : vector<1x32xf32> to vector<16x32xf32>
    %317 = arith.mulf %315, %316 : vector<16x32xf32>
    %c1_125 = arith.constant 1 : index
    %c0_126 = arith.constant 0 : index
    %c0_127 = arith.constant 0 : index
    %318 = vector.load %arg9[%c1_125, %c0_126, %c0_127] : memref<2x32x64xf32, #tpu.memory_space<vmem>>, vector<1x32x64xf32>
    %319 = vector.shape_cast %318 : vector<1x32x64xf32> to vector<32x64xf32>
    %cst_128 = arith.constant dense<0.000000e+00> : vector<16x64xf32>
    %320 = tpu.matmul %317, %319, %cst_128 {dimension_numbers = #tpu.dot_dimension_numbers<[1], [0], [0], [1], [0, 0, 1, 1], [], []>} : vector<16x32xf32>, vector<32x64xf32>, vector<16x64xf32> -> vector<16x64xf32>
    %c1_129 = arith.constant 1 : index
    %c0_130 = arith.constant 0 : index
    %c0_131 = arith.constant 0 : index
    %321 = vector.load %arg10[%c1_129, %c0_130, %c0_131] : memref<2x1x64xf32, #tpu.memory_space<vmem>>, vector<1x1x64xf32>
    %322 = vector.shape_cast %321 : vector<1x1x64xf32> to vector<1x64xf32>
    %323 = vector.broadcast %322 : vector<1x64xf32> to vector<16x64xf32>
    %324 = arith.addf %320, %323 : vector<16x64xf32>
    %c1_132 = arith.constant 1 : index
    %c0_133 = arith.constant 0 : index
    %c0_134 = arith.constant 0 : index
    %325 = vector.load %arg11[%c1_132, %c0_133, %c0_134] : memref<2x64x128xf32, #tpu.memory_space<vmem>>, vector<1x64x128xf32>
    %326 = vector.shape_cast %325 : vector<1x64x128xf32> to vector<64x128xf32>
    %cst_135 = arith.constant dense<0.000000e+00> : vector<16x128xf32>
    %327 = tpu.matmul %324, %326, %cst_135 {dimension_numbers = #tpu.dot_dimension_numbers<[1], [0], [0], [1], [0, 0, 1, 1], [], []>} : vector<16x64xf32>, vector<64x128xf32>, vector<16x128xf32> -> vector<16x128xf32>
    %328 = vector.extract_strided_slice %327 {offsets = [0, 0], sizes = [16, 64], strides = [1, 1]} : vector<16x128xf32> to vector<16x64xf32>
    %329 = vector.extract_strided_slice %327 {offsets = [0, 64], sizes = [16, 64], strides = [1, 1]} : vector<16x128xf32> to vector<16x64xf32>
    %cst_136 = arith.constant 0.000000e+00 : f32
    %330 = vector.broadcast %cst_136 : f32 to vector<16x64xf32>
    %331 = arith.subf %330, %329 : vector<16x64xf32>
    %332 = math.exp %331 : vector<16x64xf32>
    %cst_137 = arith.constant 1.000000e+00 : f32
    %333 = vector.broadcast %cst_137 : f32 to vector<16x64xf32>
    %334 = arith.addf %333, %332 : vector<16x64xf32>
    %335 = tpu.reciprocal %334 {approx = true} : vector<16x64xf32> -> vector<16x64xf32>
    %336 = arith.mulf %329, %335 : vector<16x64xf32>
    %337 = arith.mulf %328, %336 : vector<16x64xf32>
    %c1_138 = arith.constant 1 : index
    %c0_139 = arith.constant 0 : index
    %c0_140 = arith.constant 0 : index
    %338 = vector.load %arg12[%c1_138, %c0_139, %c0_140] : memref<2x64x32xf32, #tpu.memory_space<vmem>>, vector<1x64x32xf32>
    %339 = vector.shape_cast %338 : vector<1x64x32xf32> to vector<64x32xf32>
    %cst_141 = arith.constant dense<0.000000e+00> : vector<16x32xf32>
    %340 = tpu.matmul %337, %339, %cst_141 {dimension_numbers = #tpu.dot_dimension_numbers<[1], [0], [0], [1], [0, 0, 1, 1], [], []>} : vector<16x64xf32>, vector<64x32xf32>, vector<16x32xf32> -> vector<16x32xf32>
    %c1_142 = arith.constant 1 : index
    %c0_143 = arith.constant 0 : index
    %c0_144 = arith.constant 0 : index
    %341 = vector.load %arg13[%c1_142, %c0_143, %c0_144] : memref<2x1x32xf32, #tpu.memory_space<vmem>>, vector<1x1x32xf32>
    %342 = vector.shape_cast %341 : vector<1x1x32xf32> to vector<1x32xf32>
    %343 = vector.broadcast %342 : vector<1x32xf32> to vector<16x32xf32>
    %344 = arith.addf %340, %343 : vector<16x32xf32>
    %345 = arith.addf %317, %344 : vector<16x32xf32>
    %346 = vector.shape_cast %345 : vector<16x32xf32> to vector<2x8x32xf32>
    %347 = vector.extract_strided_slice %346 {offsets = [0, 0, 0], sizes = [2, 1, 32], strides = [1, 1, 1]} : vector<2x8x32xf32> to vector<2x1x32xf32>
    %348 = vector.shape_cast %347 : vector<2x1x32xf32> to vector<2x32xf32>
    %c0_145 = arith.constant 0 : index
    %c0_146 = arith.constant 0 : index
    %349 = vector.load %arg14[%c0_145, %c0_146] : memref<1x32xf32, #tpu.memory_space<vmem>>, vector<1x32xf32>
    %350 = arith.mulf %348, %348 : vector<2x32xf32>
    %cst_147 = arith.constant dense<0.000000e+00> : vector<2xf32>
    %351 = vector.multi_reduction <add>, %350, %cst_147 [1] : vector<2x32xf32> to vector<2xf32>
    %352 = vector.shape_cast %351 : vector<2xf32> to vector<2x1xf32>
    %cst_148 = arith.constant 3.200000e+01 : f32
    %353 = vector.broadcast %cst_148 : f32 to vector<2x1xf32>
    %354 = arith.divf %352, %353 : vector<2x1xf32>
    %cst_149 = arith.constant 1.1920929E-7 : f32
    %355 = vector.broadcast %cst_149 : f32 to vector<2x1xf32>
    %356 = arith.addf %354, %355 : vector<2x1xf32>
    %357 = math.rsqrt %356 : vector<2x1xf32>
    %358 = vector.broadcast %357 : vector<2x1xf32> to vector<2x32xf32>
    %359 = arith.mulf %348, %358 : vector<2x32xf32>
    %360 = vector.broadcast %349 : vector<1x32xf32> to vector<2x32xf32>
    %361 = arith.mulf %359, %360 : vector<2x32xf32>
    %c0_150 = arith.constant 0 : index
    %c0_151 = arith.constant 0 : index
    %362 = vector.load %arg15[%c0_150, %c0_151] : memref<32x128xf32, #tpu.memory_space<vmem>>, vector<32x128xf32>
    %cst_152 = arith.constant dense<0.000000e+00> : vector<2x128xf32>
    %363 = tpu.matmul %361, %362, %cst_152 {dimension_numbers = #tpu.dot_dimension_numbers<[1], [0], [0], [1], [0, 0, 1, 1], [], []>} : vector<2x32xf32>, vector<32x128xf32>, vector<2x128xf32> -> vector<2x128xf32>
    %c0_153 = arith.constant 0 : index
    %c0_154 = arith.constant 0 : index
    %364 = vector.load %arg16[%c0_153, %c0_154] : memref<1x128xf32, #tpu.memory_space<vmem>>, vector<1x128xf32>
    %365 = vector.broadcast %364 : vector<1x128xf32> to vector<2x128xf32>
    %366 = arith.addf %363, %365 : vector<2x128xf32>
    %c0_155 = arith.constant 0 : index
    %c0_156 = arith.constant 0 : index
    %367 = vector.load %arg19[%c0_155, %c0_156] : memref<2x128xf32, #tpu.memory_space<vmem>>, vector<2x128xf32>
    tpu.vector_store %arg19[%c0_155, %c0_156], %366 {strides = array<i32>} : memref<2x128xf32, #tpu.memory_space<vmem>>, vector<2x128xf32>,
    return
  }
  func.func @transform_0(%arg0: i32) -> (i32, i32) {
    %c0_i32 = arith.constant 0 : i32
    %c0_i32_0 = arith.constant 0 : i32
    return %arg0, %c0_i32 : i32, i32
  }
  func.func @transform_1(%arg0: i32) -> (i32, i32) {
    %c0_i32 = arith.constant 0 : i32
    %c0_i32_0 = arith.constant 0 : i32
    %c0_i32_1 = arith.constant 0 : i32
    return %c0_i32, %c0_i32_0 : i32, i32
  }
  func.func @transform_2(%arg0: i32) -> (i32, i32, i32) {
    %c0_i32 = arith.constant 0 : i32
    %c0_i32_0 = arith.constant 0 : i32
    %c0_i32_1 = arith.constant 0 : i32
    %c0_i32_2 = arith.constant 0 : i32
    return %c0_i32, %c0_i32_0, %c0_i32_1 : i32, i32, i32
  }
  func.func @transform_3(%arg0: i32) -> (i32, i32, i32) {
    %c0_i32 = arith.constant 0 : i32
    %c0_i32_0 = arith.constant 0 : i32
    %c0_i32_1 = arith.constant 0 : i32
    %c0_i32_2 = arith.constant 0 : i32
    return %c0_i32, %c0_i32_0, %c0_i32_1 : i32, i32, i32
  }
  func.func @transform_4(%arg0: i32) -> (i32, i32, i32) {
    %c0_i32 = arith.constant 0 : i32
    %c0_i32_0 = arith.constant 0 : i32
    %c0_i32_1 = arith.constant 0 : i32
    %c0_i32_2 = arith.constant 0 : i32
    return %c0_i32, %c0_i32_0, %c0_i32_1 : i32, i32, i32
  }
  func.func @transform_5(%arg0: i32) -> (i32, i32, i32) {
    %c0_i32 = arith.constant 0 : i32
    %c0_i32_0 = arith.constant 0 : i32
    %c0_i32_1 = arith.constant 0 : i32
    %c0_i32_2 = arith.constant 0 : i32
    return %c0_i32, %c0_i32_0, %c0_i32_1 : i32, i32, i32
  }
  func.func @transform_6(%arg0: i32) -> (i32, i32, i32) {
    %c0_i32 = arith.constant 0 : i32
    %c0_i32_0 = arith.constant 0 : i32
    %c0_i32_1 = arith.constant 0 : i32
    %c0_i32_2 = arith.constant 0 : i32
    return %c0_i32, %c0_i32_0, %c0_i32_1 : i32, i32, i32
  }
  func.func @transform_7(%arg0: i32) -> (i32, i32, i32) {
    %c0_i32 = arith.constant 0 : i32
    %c0_i32_0 = arith.constant 0 : i32
    %c0_i32_1 = arith.constant 0 : i32
    %c0_i32_2 = arith.constant 0 : i32
    return %c0_i32, %c0_i32_0, %c0_i32_1 : i32, i32, i32
  }
  func.func @transform_8(%arg0: i32) -> (i32, i32, i32) {
    %c0_i32 = arith.constant 0 : i32
    %c0_i32_0 = arith.constant 0 : i32
    %c0_i32_1 = arith.constant 0 : i32
    %c0_i32_2 = arith.constant 0 : i32
    return %c0_i32, %c0_i32_0, %c0_i32_1 : i32, i32, i32
  }
  func.func @transform_9(%arg0: i32) -> (i32, i32, i32) {
    %c0_i32 = arith.constant 0 : i32
    %c0_i32_0 = arith.constant 0 : i32
    %c0_i32_1 = arith.constant 0 : i32
    %c0_i32_2 = arith.constant 0 : i32
    return %c0_i32, %c0_i32_0, %c0_i32_1 : i32, i32, i32
  }
  func.func @transform_10(%arg0: i32) -> (i32, i32, i32) {
    %c0_i32 = arith.constant 0 : i32
    %c0_i32_0 = arith.constant 0 : i32
    %c0_i32_1 = arith.constant 0 : i32
    %c0_i32_2 = arith.constant 0 : i32
    return %c0_i32, %c0_i32_0, %c0_i32_1 : i32, i32, i32
  }
  func.func @transform_11(%arg0: i32) -> (i32, i32, i32) {
    %c0_i32 = arith.constant 0 : i32
    %c0_i32_0 = arith.constant 0 : i32
    %c0_i32_1 = arith.constant 0 : i32
    %c0_i32_2 = arith.constant 0 : i32
    return %c0_i32, %c0_i32_0, %c0_i32_1 : i32, i32, i32
  }
  func.func @transform_12(%arg0: i32) -> (i32, i32, i32) {
    %c0_i32 = arith.constant 0 : i32
    %c0_i32_0 = arith.constant 0 : i32
    %c0_i32_1 = arith.constant 0 : i32
    %c0_i32_2 = arith.constant 0 : i32
    return %c0_i32, %c0_i32_0, %c0_i32_1 : i32, i32, i32
  }
  func.func @transform_13(%arg0: i32) -> (i32, i32) {
    %c0_i32 = arith.constant 0 : i32
    %c0_i32_0 = arith.constant 0 : i32
    %c0_i32_1 = arith.constant 0 : i32
    return %c0_i32, %c0_i32_0 : i32, i32
  }
  func.func @transform_14(%arg0: i32) -> (i32, i32) {
    %c0_i32 = arith.constant 0 : i32
    %c0_i32_0 = arith.constant 0 : i32
    %c0_i32_1 = arith.constant 0 : i32
    return %c0_i32, %c0_i32_0 : i32, i32
  }
  func.func @transform_15(%arg0: i32) -> (i32, i32) {
    %c0_i32 = arith.constant 0 : i32
    %c0_i32_0 = arith.constant 0 : i32
    %c0_i32_1 = arith.constant 0 : i32
    return %c0_i32, %c0_i32_0 : i32, i32
  }
  func.func @transform_16(%arg0: i32) -> (i32, i32) {
    %c0_i32 = arith.constant 0 : i32
    %c0_i32_0 = arith.constant 0 : i32
    %c0_i32_1 = arith.constant 0 : i32
    return %c0_i32, %c0_i32_0 : i32, i32
  }
  func.func @transform_17(%arg0: i32) -> (i32, i32) {
    %c0_i32 = arith.constant 0 : i32
    %c0_i32_0 = arith.constant 0 : i32
    %c0_i32_1 = arith.constant 0 : i32
    return %c0_i32, %c0_i32_0 : i32, i32
  }
  func.func @transform_18(%arg0: i32) -> (i32, i32) {
    %c0_i32 = arith.constant 0 : i32
    %c0_i32_0 = arith.constant 0 : i32
    return %arg0, %c0_i32 : i32, i32
  }
}

</mosaic_0001>

<llo_original>
// kernel: policy_forward.1
$region0: #{policy_forward.1}
  #allocation0 [shape = 'u32[]', space=smem, size = 0x4, offset = 0x4, fixed_abs, tag = 'smem constant byte address 0x4 - core index']
  #allocation1 [shape = 'u32[144,128]{1,0:T(1,128)}', space=vmem, size = 0x12000, scoped, tag = 'internal scratch']
  %s0 = inlined_call_operand.vmem [shape: s32[16,1], index: 0, kind: input, shape index: {}]
  %s1 = inlined_call_operand.vmem [shape: f32[128,32], index: 1, kind: input, shape index: {}]
  %s2 = inlined_call_operand.vmem [shape: f32[2,32,160], index: 2, kind: input, shape index: {}]
  %s3 = inlined_call_operand.vmem [shape: f32[2,1,160], index: 3, kind: input, shape index: {}]
  %s4 = inlined_call_operand.vmem [shape: f32[2,32,32], index: 4, kind: input, shape index: {}]
  %s5 = inlined_call_operand.vmem [shape: f32[2,1,32], index: 5, kind: input, shape index: {}]
  %s6 = inlined_call_operand.vmem [shape: f32[2,1,32], index: 6, kind: input, shape index: {}]
  %s7 = inlined_call_operand.vmem [shape: f32[2,1,32], index: 7, kind: input, shape index: {}]
  %s8 = inlined_call_operand.vmem [shape: f32[2,32,64], index: 8, kind: input, shape index: {}]
  %s9 = inlined_call_operand.vmem [shape: f32[2,1,64], index: 9, kind: input, shape index: {}]
  %s10 = inlined_call_operand.vmem [shape: f32[2,64,128], index: 10, kind: input, shape index: {}]
  %s11 = inlined_call_operand.vmem [shape: f32[2,64,32], index: 11, kind: input, shape index: {}]
  %s12 = inlined_call_operand.vmem [shape: f32[2,1,32], index: 12, kind: input, shape index: {}]
  %s13 = inlined_call_operand.vmem [shape: f32[1,32], index: 13, kind: input, shape index: {}]
  %s14 = inlined_call_operand.vmem [shape: f32[32,128], index: 14, kind: input, shape index: {}]
  %s15 = inlined_call_operand.vmem [shape: f32[1,128], index: 15, kind: input, shape index: {}]
  %s16 = inlined_call_operand.vmem [shape: f32[16,32], index: 16, kind: input, shape index: {}]
  %s17 = inlined_call_operand.vmem [shape: f32[16,32], index: 17, kind: input, shape index: {}]
  %s18 = inlined_call_operand.hbm [shape: f32[2,128], index: 18, kind: output, shape index: {}]
  %s19 = sld [smem:[#allocation0]]
  $region82: #{policy_forward.1} parent=0
    _
  %s21 = ssub.s32 1, %s19
  %s22 = scalar_select 0, %s21, %s19
  $region1: #{policy_forward.1} parent=0
    #allocation2 [shape = 'u8[1024]{0}', space=vmem, size = 0x400, scoped, tag = 'output window, operand 0, single buffered']
    #allocation3 [shape = 's32[1]{0}', space=sflag, size = 0x4, scoped, tag = 'scoped memory for policy_forward.1']
    %23 = vsyncpa [#allocation3], 0
    // Predicated region
    $region2: #{policy_forward.1} parent=1 // pred_check
      _
    $region3: #{policy_forward.1} parent=1 // pred_check_branch
      %25 = sbr.rel (0) target = $region5
    $region4: #{policy_forward.1} parent=1 // pred_region
      _
    $region5: #{policy_forward.1} parent=1 // pred_fallthru
      _
    // Predicated region
    $region6: #{policy_forward.1} parent=1 // pred_check
      _
    $region7: #{policy_forward.1} parent=1 // pred_check_branch
      %27 = sbr.rel (0) target = $region9
    $region8: #{policy_forward.1} parent=1 // pred_region
      _
    $region9: #{policy_forward.1} parent=1 // pred_fallthru
      _
    // Predicated region
    $region10: #{policy_forward.1} parent=1 // pred_check
      _
    $region11: #{policy_forward.1} parent=1 // pred_check_branch
      %29 = sbr.rel (0) target = $region13
    $region12: #{policy_forward.1} parent=1 // pred_region
      _
    $region13: #{policy_forward.1} parent=1 // pred_fallthru
      _
    // Predicated region
    $region14: #{policy_forward.1} parent=1 // pred_check
      _
    $region15: #{policy_forward.1} parent=1 // pred_check_branch
      %31 = sbr.rel (0) target = $region17
    $region16: #{policy_forward.1} parent=1 // pred_region
      _
    $region17: #{policy_forward.1} parent=1 // pred_fallthru
      _
    // Predicated region
    $region18: #{policy_forward.1} parent=1 // pred_check
      _
    $region19: #{policy_forward.1} parent=1 // pred_check_branch
      %33 = sbr.rel (0) target = $region21
    $region20: #{policy_forward.1} parent=1 // pred_region
      _
    $region21: #{policy_forward.1} parent=1 // pred_fallthru
      _
    // Predicated region
    $region22: #{policy_forward.1} parent=1 // pred_check
      _
    $region23: #{policy_forward.1} parent=1 // pred_check_branch
      %35 = sbr.rel (0) target = $region25
    $region24: #{policy_forward.1} parent=1 // pred_region
      _
    $region25: #{policy_forward.1} parent=1 // pred_fallthru
      _
    // Predicated region
    $region26: #{policy_forward.1} parent=1 // pred_check
      _
    $region27: #{policy_forward.1} parent=1 // pred_check_branch
      %37 = sbr.rel (0) target = $region29
    $region28: #{policy_forward.1} parent=1 // pred_region
      _
    $region29: #{policy_forward.1} parent=1 // pred_fallthru
      _
    // Predicated region
    $region30: #{policy_forward.1} parent=1 // pred_check
      _
    $region31: #{policy_forward.1} parent=1 // pred_check_branch
      %39 = sbr.rel (0) target = $region33
    $region32: #{policy_forward.1} parent=1 // pred_region
      _
    $region33: #{policy_forward.1} parent=1 // pred_fallthru
      _
    // Predicated region
    $region34: #{policy_forward.1} parent=1 // pred_check
      _
    $region35: #{policy_forward.1} parent=1 // pred_check_branch
      %41 = sbr.rel (0) target = $region37
    $region36: #{policy_forward.1} parent=1 // pred_region
      _
    $region37: #{policy_forward.1} parent=1 // pred_fallthru
      _
    // Predicated region
    $region38: #{policy_forward.1} parent=1 // pred_check
      _
    $region39: #{policy_forward.1} parent=1 // pred_check_branch
      %43 = sbr.rel (0) target = $region41
    $region40: #{policy_forward.1} parent=1 // pred_region
      _
    $region41: #{policy_forward.1} parent=1 // pred_fallthru
      _
    // Predicated region
    $region42: #{policy_forward.1} parent=1 // pred_check
      _
    $region43: #{policy_forward.1} parent=1 // pred_check_branch
      %45 = sbr.rel (0) target = $region45
    $region44: #{policy_forward.1} parent=1 // pred_region
      _
    $region45: #{policy_forward.1} parent=1 // pred_fallthru
      _
    // Predicated region
    $region46: #{policy_forward.1} parent=1 // pred_check
      _
    $region47: #{policy_forward.1} parent=1 // pred_check_branch
      %47 = sbr.rel (0) target = $region49
    $region48: #{policy_forward.1} parent=1 // pred_region
      _
    $region49: #{policy_forward.1} parent=1 // pred_fallthru
      _
    // Predicated region
    $region50: #{policy_forward.1} parent=1 // pred_check
      _
    $region51: #{policy_forward.1} parent=1 // pred_check_branch
      %49 = sbr.rel (0) target = $region53
    $region52: #{policy_forward.1} parent=1 // pred_region
      _
    $region53: #{policy_forward.1} parent=1 // pred_fallthru
      _
    // Predicated region
    $region54: #{policy_forward.1} parent=1 // pred_check
      _
    $region55: #{policy_forward.1} parent=1 // pred_check_branch
      %51 = sbr.rel (0) target = $region57
    $region56: #{policy_forward.1} parent=1 // pred_region
      _
    $region57: #{policy_forward.1} parent=1 // pred_fallthru
      _
    // Predicated region
    $region58: #{policy_forward.1} parent=1 // pred_check
      _
    $region59: #{policy_forward.1} parent=1 // pred_check_branch
      %53 = sbr.rel (0) target = $region61
    $region60: #{policy_forward.1} parent=1 // pred_region
      _
    $region61: #{policy_forward.1} parent=1 // pred_fallthru
      _
    // Predicated region
    $region62: #{policy_forward.1} parent=1 // pred_check
      _
    $region63: #{policy_forward.1} parent=1 // pred_check_branch
      %55 = sbr.rel (0) target = $region65
    $region64: #{policy_forward.1} parent=1 // pred_region
      _
    $region65: #{policy_forward.1} parent=1 // pred_fallthru
      _
    // Predicated region
    $region66: #{policy_forward.1} parent=1 // pred_check
      _
    $region67: #{policy_forward.1} parent=1 // pred_check_branch
      %57 = sbr.rel (0) target = $region69
    $region68: #{policy_forward.1} parent=1 // pred_region
      _
    $region69: #{policy_forward.1} parent=1 // pred_fallthru
      _
    // Predicated region
    $region70: #{policy_forward.1} parent=1 // pred_check
      _
    $region71: #{policy_forward.1} parent=1 // pred_check_branch
      %59 = sbr.rel (0) target = $region73
    $region72: #{policy_forward.1} parent=1 // pred_region
      _
    $region73: #{policy_forward.1} parent=1 // pred_fallthru
      _
    %v60 = vld [vmem:[%s0] sm:$0xff]
    %v61 = vld [vmem:[%s0 + $0x8] sm:$0xff]
    %v62 = vlaneseq
    %v63 = vand.u32 %v62, 127
    %64 = vset.pattern.permute.xlu0 0
    %65 = vperm.xlu0 %64, %v60
    %v66 = vpop.permute.xlu0 %65
    %67 = vset.pattern.permute.xlu0 0
    %68 = vperm.xlu0 %67, %v61
    %v69 = vpop.permute.xlu0 %68
    %vm70 = vcmp.eq.s32.totalorder %v63, %v66
    %vm71 = vcmp.eq.s32.totalorder %v63, %v69
    %v72 = vsel %vm70, 1, 0
    %v73 = vsel %vm71, 1, 0
    %v74 = vcvt.s32.f32 %v72
    %v75 = vcvt.s32.f32 %v73
    %v76 = vld [vmem:[%s1] sm:$0xff]
    %v77 = vld [vmem:[%s1 + $0x8] sm:$0xff]
    %v78 = vld [vmem:[%s1 + $0x10] sm:$0xff]
    %v79 = vld [vmem:[%s1 + $0x18] sm:$0xff]
    %v80 = vld [vmem:[%s1 + $0x20] sm:$0xff]
    %v81 = vld [vmem:[%s1 + $0x28] sm:$0xff]
    %v82 = vld [vmem:[%s1 + $0x30] sm:$0xff]
    %v83 = vld [vmem:[%s1 + $0x38] sm:$0xff]
    %v84 = vld [vmem:[%s1 + $0x40] sm:$0xff]
    %v85 = vld [vmem:[%s1 + $0x48] sm:$0xff]
    %v86 = vld [vmem:[%s1 + $0x50] sm:$0xff]
    %v87 = vld [vmem:[%s1 + $0x58] sm:$0xff]
    %v88 = vld [vmem:[%s1 + $0x60] sm:$0xff]
    %v89 = vld [vmem:[%s1 + $0x68] sm:$0xff]
    %v90 = vld [vmem:[%s1 + $0x70] sm:$0xff]
    %v91 = vld [vmem:[%s1 + $0x78] sm:$0xff]
    %92 = vmatprep.subr.mxu0 0.0
    %93 = vmatpush1.msra.mxu0 %v76
    %94 = vmatprep.subr.mxu0 0.0
    %95 = vmatpush1.msra.mxu0 %v77
    %96 = vmatprep.subr.mxu0 0.0
    %97 = vmatpush1.msra.mxu0 %v78
    %98 = vmatprep.subr.mxu0 0.0
    %99 = vmatpush1.msra.mxu0 %v79
    %100 = vmatprep.subr.mxu0 0.0
    %101 = vmatpush1.msra.mxu0 %v80
    %102 = vmatprep.subr.mxu0 0.0
    %103 = vmatpush1.msra.mxu0 %v81
    %104 = vmatprep.subr.mxu0 0.0
    %105 = vmatpush1.msra.mxu0 %v82
    %106 = vmatprep.subr.mxu0 0.0
    %107 = vmatpush1.msra.mxu0 %v83
    %108 = vmatprep.subr.mxu0 0.0
    %109 = vmatpush1.msra.mxu0 %v84
    %110 = vmatprep.subr.mxu0 0.0
    %111 = vmatpush1.msra.mxu0 %v85
    %112 = vmatprep.subr.mxu0 0.0
    %113 = vmatpush1.msra.mxu0 %v86
    %114 = vmatprep.subr.mxu0 0.0
    %115 = vmatpush1.msra.mxu0 %v87
    %116 = vmatprep.subr.mxu0 0.0
    %117 = vmatpush1.msra.mxu0 %v88
    %118 = vmatprep.subr.mxu0 0.0
    %119 = vmatpush1.msra.mxu0 %v89
    %120 = vmatprep.subr.mxu0 0.0
    %121 = vmatpush1.msra.mxu0 %v90
    %122 = vmatprep.subr.mxu0 0.0
    %123 = vmatpush1.msra.mxu0 %v91
    %124 = vmatprep.subr.mxu0 0.0
    %125 = vmatpush1.msra.mxu0 0.0
    %126 = vmatprep.subr.mxu0 0.0
    %127 = vmatpush1.msra.mxu0 0.0
    %128 = vmatprep.subr.mxu0 0.0
    %129 = vmatpush1.msra.mxu0 0.0
    %130 = vmatprep.subr.mxu0 0.0
    %131 = vmatpush1.msra.mxu0 0.0
    %132 = vmatprep.subr.mxu0 0.0
    %133 = vmatpush1.msra.mxu0 0.0
    %134 = vmatprep.subr.mxu0 0.0
    %135 = vmatpush1.msra.mxu0 0.0
    %136 = vmatprep.subr.mxu0 0.0
    %137 = vmatpush1.msra.mxu0 0.0
    %138 = vmatprep.subr.mxu0 0.0
    %139 = vmatpush1.msra.mxu0 0.0
    %140 = vmatprep.subr.mxu0 0.0
    %141 = vmatpush1.msra.mxu0 0.0
    %142 = vmatprep.subr.mxu0 0.0
    %143 = vmatpush1.msra.mxu0 0.0
    %144 = vmatprep.subr.mxu0 0.0
    %145 = vmatpush1.msra.mxu0 0.0
    %146 = vmatprep.subr.mxu0 0.0
    %147 = vmatpush1.msra.mxu0 0.0
    %148 = vmatprep.subr.mxu0 0.0
    %149 = vmatpush1.msra.mxu0 0.0
    %150 = vmatprep.subr.mxu0 0.0
    %151 = vmatpush1.msra.mxu0 0.0
    %152 = vmatprep.subr.mxu0 0.0
    %153 = vmatpush1.msra.mxu0 0.0
    %154 = vmatprep.subr.mxu0 0.0
    %155 = vmatpush1.msra.mxu0 0.0
    %156 = vmatprep.mubr.f32.mxu0 0.0
    %157 = vmatmul.mubr.f32.gmra.mrb[0].mxu0 %v74
    %v158 = vpop.f32.mrb[0].mxu0
    %v159 = vadd.f32 0.0, %v158
    %v160 = vpop.f32.mrb[0].mxu0
    %161 = vmatprep.mubr.f32.mxu0 0.0
    %162 = vmatmul.mubr.f32.gmra.mrb[0].mxu0 %v75
    %v163 = vpop.f32.mrb[0].mxu0
    %v164 = vadd.f32 0.0, %v163
    %v165 = vpop.f32.mrb[0].mxu0
    %166 = vdwg.mxu0
    %v167 = vmul.f32 %v159, 0.17677669
    %v168 = vmul.f32 %v164, 0.17677669
    %v169 = vld [vmem:[%s16] sm:$0xff]
    %v170 = vld [vmem:[%s16 + $0x8] sm:$0xff]
    %v171 = vld [vmem:[%s17] sm:$0xff]
    %v172 = vld [vmem:[%s17 + $0x8] sm:$0xff]
    %v173 = vld [vmem:[%s6] sm:$0x1]
    %v174 = vmul.f32 %v167, %v167
    %v175 = vmul.f32 %v168, %v168
    %vm176 = vcmask 261120
    %v177 = vsel %vm176, %v174, 0.0
    %178 = vadd.xlane.f32.xlu0 %v177
    %v179 = vpop.xlane.xlu0 %178
    %v180 = vsel %vm176, %v175, 0.0
    %181 = vadd.xlane.f32.xlu0 %v180
    %v182 = vpop.xlane.xlu0 %181
    %v183 = vrcp.pop 32.0
    %v184 = vmul.f32 %v179, %v183
    %v185 = vmul.f32 %v182, %v183
    %v186 = vadd.f32 %v184, 1.1920929e-07
    %v187 = vadd.f32 %v185, 1.1920929e-07
    %v188 = vrsqrt.pop %v186
    %v189 = vrsqrt.pop %v187
    %v190 = vmul.f32 %v167, %v188
    %v191 = vmul.f32 %v168, %v189
    %v193 = vlaneseq
    %v194 = vshrl.u32 %v193, 7
    %v195 = vsub.s32 0, %v194
    %v196 = vrot.slane %v173, %v195
    %v198 = vmul.f32 %v190, %v196
    %v199 = vmul.f32 %v191, %v196
    %v200 = vld [vmem:[%s2] sm:$0xff]
    %v201 = vld [vmem:[%s2 + $0x8] sm:$0xff]
    %v202 = vld [vmem:[%s2 + $0x10] sm:$0xff]
    %v203 = vld [vmem:[%s2 + $0x18] sm:$0xff]
    %v204 = vld [vmem:[%s2 + $0x20] sm:$0xff]
    %v205 = vld [vmem:[%s2 + $0x28] sm:$0xff]
    %v206 = vld [vmem:[%s2 + $0x30] sm:$0xff]
    %v207 = vld [vmem:[%s2 + $0x38] sm:$0xff]
    %v208 = vld [vmem:[%s3] sm:$0x3]
    %v210 = vlaneseq
    %v211 = vshrl.u32 %v210, 7
    %v212 = vsub.s32 0, %v211
    %v213 = vrot.slane %v208, %v212
    %v214 = vlaneseq
    %v215 = vshrl.u32 %v214, 7
    %v216 = vsub.s32 1, %v215
    %v217 = vrot.slane %v208, %v216
    %v221 = vsel %vm176, %v198, 0
    %v224 = vsel %vm176, %v199, 0
    %226 = vmatprep.subr.mxu0 %v201
    %227 = vmatpush1.msra.mxu0 %v200
    %228 = vmatprep.subr.mxu0 %v203
    %229 = vmatpush1.msra.mxu0 %v202
    %230 = vmatprep.subr.mxu0 %v205
    %231 = vmatpush1.msra.mxu0 %v204
    %232 = vmatprep.subr.mxu0 %v207
    %233 = vmatpush1.msra.mxu0 %v206
    %234 = vmatprep.subr.mxu0 0.0
    %235 = vmatpush1.msra.mxu0 0.0
    %236 = vmatprep.subr.mxu0 0.0
    %237 = vmatpush1.msra.mxu0 0.0
    %238 = vmatprep.subr.mxu0 0.0
    %239 = vmatpush1.msra.mxu0 0.0
    %240 = vmatprep.subr.mxu0 0.0
    %241 = vmatpush1.msra.mxu0 0.0
    %242 = vmatprep.subr.mxu0 0.0
    %243 = vmatpush1.msra.mxu0 0.0
    %244 = vmatprep.subr.mxu0 0.0
    %245 = vmatpush1.msra.mxu0 0.0
    %246 = vmatprep.subr.mxu0 0.0
    %247 = vmatpush1.msra.mxu0 0.0
    %248 = vmatprep.subr.mxu0 0.0
    %249 = vmatpush1.msra.mxu0 0.0
    %250 = vmatprep.subr.mxu0 0.0
    %251 = vmatpush1.msra.mxu0 0.0
    %252 = vmatprep.subr.mxu0 0.0
    %253 = vmatpush1.msra.mxu0 0.0
    %254 = vmatprep.subr.mxu0 0.0
    %255 = vmatpush1.msra.mxu0 0.0
    %256 = vmatprep.subr.mxu0 0.0
    %257 = vmatpush1.msra.mxu0 0.0
    %258 = vmatprep.subr.mxu0 0.0
    %259 = vmatpush1.msra.mxu0 0.0
    %260 = vmatprep.subr.mxu0 0.0
    %261 = vmatpush1.msra.mxu0 0.0
    %262 = vmatprep.subr.mxu0 0.0
    %263 = vmatpush1.msra.mxu0 0.0
    %264 = vmatprep.subr.mxu0 0.0
    %265 = vmatpush1.msra.mxu0 0.0
    %266 = vmatprep.subr.mxu0 0.0
    %267 = vmatpush1.msra.mxu0 0.0
    %268 = vmatprep.subr.mxu0 0.0
    %269 = vmatpush1.msra.mxu0 0.0
    %270 = vmatprep.subr.mxu0 0.0
    %271 = vmatpush1.msra.mxu0 0.0
    %272 = vmatprep.subr.mxu0 0.0
    %273 = vmatpush1.msra.mxu0 0.0
    %274 = vmatprep.subr.mxu0 0.0
    %275 = vmatpush1.msra.mxu0 0.0
    %276 = vmatprep.subr.mxu0 0.0
    %277 = vmatpush1.msra.mxu0 0.0
    %278 = vmatprep.subr.mxu0 0.0
    %279 = vmatpush1.msra.mxu0 0.0
    %280 = vmatprep.subr.mxu0 0.0
    %281 = vmatpush1.msra.mxu0 0.0
    %282 = vmatprep.subr.mxu0 0.0
    %283 = vmatpush1.msra.mxu0 0.0
    %284 = vmatprep.subr.mxu0 0.0
    %285 = vmatpush1.msra.mxu0 0.0
    %286 = vmatprep.subr.mxu0 0.0
    %287 = vmatpush1.msra.mxu0 0.0
    %288 = vmatprep.subr.mxu0 0.0
    %289 = vmatpush1.msra.mxu0 0.0
    %290 = vmatprep.mubr.f32.mxu0 0.0
    %291 = vmatmul.mubr.f32.gmra.mrb[0].mxu0 %v221
    %v292 = vpop.f32.mrb[0].mxu0
    %v293 = vadd.f32 %v213, %v292
    %v294 = vpop.f32.mrb[0].mxu0
    %v295 = vadd.f32 %v217, %v294
    %296 = vmatprep.mubr.f32.mxu0 0.0
    %297 = vmatmul.mubr.f32.gmra.mrb[0].mxu0 %v224
    %v298 = vpop.f32.mrb[0].mxu0
    %v299 = vadd.f32 %v213, %v298
    %v300 = vpop.f32.mrb[0].mxu0
    %v301 = vadd.f32 %v217, %v300
    %302 = vdwg.mxu0
    %v303 = vmul.f32 %v293, %v169
    %v304 = vmul.f32 %v299, %v170
    %307 = vrot.lane.b32.xlu0 %v171, 96
    %v308 = vpop.permute.xlu0 %307
    %309 = vrot.lane.b32.xlu0 %v172, 96
    %v310 = vpop.permute.xlu0 %309
    %v313 = vmul.f32 %v293, %v308
    %v314 = vmul.f32 %v299, %v310
    %317 = vrot.lane.b32.xlu0 %v313, 32
    %v318 = vpop.permute.xlu0 %317
    %319 = vrot.lane.b32.xlu0 %v314, 32
    %v320 = vpop.permute.xlu0 %319
    %v323 = vadd.f32 %v303, %v318
    %v324 = vadd.f32 %v304, %v320
    %327 = vrot.lane.b32.xlu0 %v169, 32
    %v328 = vpop.permute.xlu0 %327
    %329 = vrot.lane.b32.xlu0 %v170, 32
    %v330 = vpop.permute.xlu0 %329
    %v333 = vmul.f32 %v293, %v328
    %v334 = vmul.f32 %v299, %v330
    %v335 = vmul.f32 %v295, %v171
    %v336 = vmul.f32 %v301, %v172
    %339 = vrot.lane.b32.xlu0 %v335, 32
    %v340 = vpop.permute.xlu0 %339
    %341 = vrot.lane.b32.xlu0 %v336, 32
    %v342 = vpop.permute.xlu0 %341
    %v345 = vadd.f32 %v333, %v340
    %v346 = vadd.f32 %v334, %v342
    %v347 = vld [vmem:[%s4] sm:$0xff]
    %v348 = vld [vmem:[%s4 + $0x8] sm:$0xff]
    %v349 = vld [vmem:[%s4 + $0x10] sm:$0xff]
    %v350 = vld [vmem:[%s4 + $0x18] sm:$0xff]
    %352 = vrot.lane.b32.xlu0 %v345, 96
    %v353 = vpop.permute.xlu0 %352
    %vm354 = vcmask 64512
    %v356 = vsel %vm354, %v323, 0
    %v358 = vsel %vm354, %v353, 0
    %360 = vmatprep.subr.mxu0 0.0
    %361 = vmatpush1.xpose.msra.mxu0 %v358
    %362 = vmatprep.subr.mxu0 0.0
    %363 = vmatpush1.xpose.msra.mxu0 0.0
    %364 = vmatprep.subr.mxu0 0.0
    %365 = vmatpush1.xpose.msra.mxu0 0.0
    %366 = vmatprep.subr.mxu0 0.0
    %367 = vmatpush1.xpose.msra.mxu0 0.0
    %368 = vmatprep.subr.mxu0 0.0
    %369 = vmatpush1.xpose.msra.mxu0 0.0
    %370 = vmatprep.subr.mxu0 0.0
    %371 = vmatpush1.xpose.msra.mxu0 0.0
    %372 = vmatprep.subr.mxu0 0.0
    %373 = vmatpush1.xpose.msra.mxu0 0.0
    %374 = vmatprep.subr.mxu0 0.0
    %375 = vmatpush1.xpose.msra.mxu0 0.0
    %376 = vmatprep.subr.mxu0 0.0
    %377 = vmatpush1.xpose.msra.mxu0 0.0
    %378 = vmatprep.subr.mxu0 0.0
    %379 = vmatpush1.xpose.msra.mxu0 0.0
    %380 = vmatprep.subr.mxu0 0.0
    %381 = vmatpush1.xpose.msra.mxu0 0.0
    %382 = vmatprep.subr.mxu0 0.0
    %383 = vmatpush1.xpose.msra.mxu0 0.0
    %384 = vmatprep.subr.mxu0 0.0
    %385 = vmatpush1.xpose.msra.mxu0 0.0
    %386 = vmatprep.subr.mxu0 0.0
    %387 = vmatpush1.xpose.msra.mxu0 0.0
    %388 = vmatprep.subr.mxu0 0.0
    %389 = vmatpush1.xpose.msra.mxu0 0.0
    %390 = vmatprep.subr.mxu0 0.0
    %391 = vmatpush1.xpose.msra.mxu0 0.0
    %392 = vmatprep.subr.mxu0 0.0
    %393 = vmatpush1.xpose.msra.mxu0 0.0
    %394 = vmatprep.subr.mxu0 0.0
    %395 = vmatpush1.xpose.msra.mxu0 0.0
    %396 = vmatprep.subr.mxu0 0.0
    %397 = vmatpush1.xpose.msra.mxu0 0.0
    %398 = vmatprep.subr.mxu0 0.0
    %399 = vmatpush1.xpose.msra.mxu0 0.0
    %400 = vmatprep.subr.mxu0 0.0
    %401 = vmatpush1.xpose.msra.mxu0 0.0
    %402 = vmatprep.subr.mxu0 0.0
    %403 = vmatpush1.xpose.msra.mxu0 0.0
    %404 = vmatprep.subr.mxu0 0.0
    %405 = vmatpush1.xpose.msra.mxu0 0.0
    %406 = vmatprep.subr.mxu0 0.0
    %407 = vmatpush1.xpose.msra.mxu0 0.0
    %408 = vmatprep.subr.mxu0 0.0
    %409 = vmatpush1.xpose.msra.mxu0 0.0
    %410 = vmatprep.subr.mxu0 0.0
    %411 = vmatpush1.xpose.msra.mxu0 0.0
    %412 = vmatprep.subr.mxu0 0.0
    %413 = vmatpush1.xpose.msra.mxu0 0.0
    %414 = vmatprep.subr.mxu0 0.0
    %415 = vmatpush1.xpose.msra.mxu0 0.0
    %416 = vmatprep.subr.mxu0 0.0
    %417 = vmatpush1.xpose.msra.mxu0 0.0
    %418 = vmatprep.subr.mxu0 0.0
    %419 = vmatpush1.xpose.msra.mxu0 0.0
    %420 = vmatprep.subr.mxu0 0.0
    %421 = vmatpush1.xpose.msra.mxu0 0.0
    %422 = vmatprep.subr.mxu0 0.0
    %423 = vmatpush1.xpose.msra.mxu0 0.0
    %424 = vmatprep.mubr.f32.mxu0 0.0
    %425 = vmatmul.mubr.f32.gmra.mrb[0].mxu0 %v356
    %v426 = vpop.f32.mrb[0].mxu0
    %v427 = vadd.f32 0.0, %v426
    %v428 = vpop.f32.mrb[0].mxu0
    %429 = vdwg.mxu0
    %431 = vrot.lane.b32.xlu0 %v346, 96
    %v432 = vpop.permute.xlu0 %431
    %v434 = vsel %vm354, %v324, 0
    %v436 = vsel %vm354, %v432, 0
    %438 = vmatprep.subr.mxu0 0.0
    %439 = vmatpush1.xpose.msra.mxu0 %v436
    %440 = vmatprep.subr.mxu0 0.0
    %441 = vmatpush1.xpose.msra.mxu0 0.0
    %442 = vmatprep.subr.mxu0 0.0
    %443 = vmatpush1.xpose.msra.mxu0 0.0
    %444 = vmatprep.subr.mxu0 0.0
    %445 = vmatpush1.xpose.msra.mxu0 0.0
    %446 = vmatprep.subr.mxu0 0.0
    %447 = vmatpush1.xpose.msra.mxu0 0.0
    %448 = vmatprep.subr.mxu0 0.0
    %449 = vmatpush1.xpose.msra.mxu0 0.0
    %450 = vmatprep.subr.mxu0 0.0
    %451 = vmatpush1.xpose.msra.mxu0 0.0
    %452 = vmatprep.subr.mxu0 0.0
    %453 = vmatpush1.xpose.msra.mxu0 0.0
    %454 = vmatprep.subr.mxu0 0.0
    %455 = vmatpush1.xpose.msra.mxu0 0.0
    %456 = vmatprep.subr.mxu0 0.0
    %457 = vmatpush1.xpose.msra.mxu0 0.0
    %458 = vmatprep.subr.mxu0 0.0
    %459 = vmatpush1.xpose.msra.mxu0 0.0
    %460 = vmatprep.subr.mxu0 0.0
    %461 = vmatpush1.xpose.msra.mxu0 0.0
    %462 = vmatprep.subr.mxu0 0.0
    %463 = vmatpush1.xpose.msra.mxu0 0.0
    %464 = vmatprep.subr.mxu0 0.0
    %465 = vmatpush1.xpose.msra.mxu0 0.0
    %466 = vmatprep.subr.mxu0 0.0
    %467 = vmatpush1.xpose.msra.mxu0 0.0
    %468 = vmatprep.subr.mxu0 0.0
    %469 = vmatpush1.xpose.msra.mxu0 0.0
    %470 = vmatprep.subr.mxu0 0.0
    %471 = vmatpush1.xpose.msra.mxu0 0.0
    %472 = vmatprep.subr.mxu0 0.0
    %473 = vmatpush1.xpose.msra.mxu0 0.0
    %474 = vmatprep.subr.mxu0 0.0
    %475 = vmatpush1.xpose.msra.mxu0 0.0
    %476 = vmatprep.subr.mxu0 0.0
    %477 = vmatpush1.xpose.msra.mxu0 0.0
    %478 = vmatprep.subr.mxu0 0.0
    %479 = vmatpush1.xpose.msra.mxu0 0.0
    %480 = vmatprep.subr.mxu0 0.0
    %481 = vmatpush1.xpose.msra.mxu0 0.0
    %482 = vmatprep.subr.mxu0 0.0
    %483 = vmatpush1.xpose.msra.mxu0 0.0
    %484 = vmatprep.subr.mxu0 0.0
    %485 = vmatpush1.xpose.msra.mxu0 0.0
    %486 = vmatprep.subr.mxu0 0.0
    %487 = vmatpush1.xpose.msra.mxu0 0.0
    %488 = vmatprep.subr.mxu0 0.0
    %489 = vmatpush1.xpose.msra.mxu0 0.0
    %490 = vmatprep.subr.mxu0 0.0
    %491 = vmatpush1.xpose.msra.mxu0 0.0
    %492 = vmatprep.subr.mxu0 0.0
    %493 = vmatpush1.xpose.msra.mxu0 0.0
    %494 = vmatprep.subr.mxu0 0.0
    %495 = vmatpush1.xpose.msra.mxu0 0.0
    %496 = vmatprep.subr.mxu0 0.0
    %497 = vmatpush1.xpose.msra.mxu0 0.0
    %498 = vmatprep.subr.mxu0 0.0
    %499 = vmatpush1.xpose.msra.mxu0 0.0
    %500 = vmatprep.subr.mxu0 0.0
    %501 = vmatpush1.xpose.msra.mxu0 0.0
    %502 = vmatprep.mubr.f32.mxu0 0.0
    %503 = vmatmul.mubr.f32.gmra.mrb[0].mxu0 %v434
    %v504 = vpop.f32.mrb[0].mxu0
    %v505 = vadd.f32 0.0, %v504
    %v506 = vpop.f32.mrb[0].mxu0
    %507 = vdwg.mxu0
    %v508 = vmul.f32 %v427, 0.35355338
    %v509 = vmul.f32 %v505, 0.35355338
    %v510 = vsel %vm354, %v508, -inf
    %511 = vmax.xlane.f32.xlu0 %v510
    %v512 = vpop.xlane.xlu0 %511
    %v513 = vsel %vm354, %v509, -inf
    %514 = vmax.xlane.f32.xlu0 %v513
    %v515 = vpop.xlane.xlu0 %514
    %v516 = vsub.f32 %v508, %v512
    %v517 = vsub.f32 %v509, %v515
    %v518 = vmul.f32 %v516, 1.442695
    %v519 = vpow.pop %v518
    %v520 = vmul.f32 %v517, 1.442695
    %v521 = vpow.pop %v520
    %v522 = vsel %vm354, %v519, 0.0
    %523 = vadd.xlane.f32.xlu0 %v522
    %v524 = vpop.xlane.xlu0 %523
    %v525 = vsel %vm354, %v521, 0.0
    %526 = vadd.xlane.f32.xlu0 %v525
    %v527 = vpop.xlane.xlu0 %526
    %v528 = vrcp.pop %v524
    %v529 = vrcp.pop %v527
    %v530 = vmul.f32 %v519, %v528
    %v531 = vmul.f32 %v521, %v529
    %533 = vrot.lane.b32.xlu0 %v293, 64
    %v534 = vpop.permute.xlu0 %533
    %v537 = vsel %vm354, %v530, 0
    %539 = vmatprep.subr.mxu0 0.0
    %540 = vmatpush1.msra.mxu0 %v534
    %541 = vmatprep.subr.mxu0 0.0
    %542 = vmatpush1.msra.mxu0 0.0
    %543 = vmatprep.subr.mxu0 0.0
    %544 = vmatpush1.msra.mxu0 0.0
    %545 = vmatprep.subr.mxu0 0.0
    %546 = vmatpush1.msra.mxu0 0.0
    %547 = vmatprep.subr.mxu0 0.0
    %548 = vmatpush1.msra.mxu0 0.0
    %549 = vmatprep.subr.mxu0 0.0
    %550 = vmatpush1.msra.mxu0 0.0
    %551 = vmatprep.subr.mxu0 0.0
    %552 = vmatpush1.msra.mxu0 0.0
    %553 = vmatprep.subr.mxu0 0.0
    %554 = vmatpush1.msra.mxu0 0.0
    %555 = vmatprep.subr.mxu0 0.0
    %556 = vmatpush1.msra.mxu0 0.0
    %557 = vmatprep.subr.mxu0 0.0
    %558 = vmatpush1.msra.mxu0 0.0
    %559 = vmatprep.subr.mxu0 0.0
    %560 = vmatpush1.msra.mxu0 0.0
    %561 = vmatprep.subr.mxu0 0.0
    %562 = vmatpush1.msra.mxu0 0.0
    %563 = vmatprep.subr.mxu0 0.0
    %564 = vmatpush1.msra.mxu0 0.0
    %565 = vmatprep.subr.mxu0 0.0
    %566 = vmatpush1.msra.mxu0 0.0
    %567 = vmatprep.subr.mxu0 0.0
    %568 = vmatpush1.msra.mxu0 0.0
    %569 = vmatprep.subr.mxu0 0.0
    %570 = vmatpush1.msra.mxu0 0.0
    %571 = vmatprep.subr.mxu0 0.0
    %572 = vmatpush1.msra.mxu0 0.0
    %573 = vmatprep.subr.mxu0 0.0
    %574 = vmatpush1.msra.mxu0 0.0
    %575 = vmatprep.subr.mxu0 0.0
    %576 = vmatpush1.msra.mxu0 0.0
    %577 = vmatprep.subr.mxu0 0.0
    %578 = vmatpush1.msra.mxu0 0.0
    %579 = vmatprep.subr.mxu0 0.0
    %580 = vmatpush1.msra.mxu0 0.0
    %581 = vmatprep.subr.mxu0 0.0
    %582 = vmatpush1.msra.mxu0 0.0
    %583 = vmatprep.subr.mxu0 0.0
    %584 = vmatpush1.msra.mxu0 0.0
    %585 = vmatprep.subr.mxu0 0.0
    %586 = vmatpush1.msra.mxu0 0.0
    %587 = vmatprep.subr.mxu0 0.0
    %588 = vmatpush1.msra.mxu0 0.0
    %589 = vmatprep.subr.mxu0 0.0
    %590 = vmatpush1.msra.mxu0 0.0
    %591 = vmatprep.subr.mxu0 0.0
    %592 = vmatpush1.msra.mxu0 0.0
    %593 = vmatprep.subr.mxu0 0.0
    %594 = vmatpush1.msra.mxu0 0.0
    %595 = vmatprep.subr.mxu0 0.0
    %596 = vmatpush1.msra.mxu0 0.0
    %597 = vmatprep.subr.mxu0 0.0
    %598 = vmatpush1.msra.mxu0 0.0
    %599 = vmatprep.subr.mxu0 0.0
    %600 = vmatpush1.msra.mxu0 0.0
    %601 = vmatprep.subr.mxu0 0.0
    %602 = vmatpush1.msra.mxu0 0.0
    %603 = vmatprep.mubr.f32.mxu0 0.0
    %604 = vmatmul.mubr.f32.gmra.mrb[0].mxu0 %v537
    %v605 = vpop.f32.mrb[0].mxu0
    %v606 = vadd.f32 0.0, %v605
    %v607 = vpop.f32.mrb[0].mxu0
    %608 = vdwg.mxu0
    %610 = vrot.lane.b32.xlu0 %v299, 64
    %v611 = vpop.permute.xlu0 %610
    %v614 = vsel %vm354, %v531, 0
    %616 = vmatprep.subr.mxu0 0.0
    %617 = vmatpush1.msra.mxu0 %v611
    %618 = vmatprep.subr.mxu0 0.0
    %619 = vmatpush1.msra.mxu0 0.0
    %620 = vmatprep.subr.mxu0 0.0
    %621 = vmatpush1.msra.mxu0 0.0
    %622 = vmatprep.subr.mxu0 0.0
    %623 = vmatpush1.msra.mxu0 0.0
    %624 = vmatprep.subr.mxu0 0.0
    %625 = vmatpush1.msra.mxu0 0.0
    %626 = vmatprep.subr.mxu0 0.0
    %627 = vmatpush1.msra.mxu0 0.0
    %628 = vmatprep.subr.mxu0 0.0
    %629 = vmatpush1.msra.mxu0 0.0
    %630 = vmatprep.subr.mxu0 0.0
    %631 = vmatpush1.msra.mxu0 0.0
    %632 = vmatprep.subr.mxu0 0.0
    %633 = vmatpush1.msra.mxu0 0.0
    %634 = vmatprep.subr.mxu0 0.0
    %635 = vmatpush1.msra.mxu0 0.0
    %636 = vmatprep.subr.mxu0 0.0
    %637 = vmatpush1.msra.mxu0 0.0
    %638 = vmatprep.subr.mxu0 0.0
    %639 = vmatpush1.msra.mxu0 0.0
    %640 = vmatprep.subr.mxu0 0.0
    %641 = vmatpush1.msra.mxu0 0.0
    %642 = vmatprep.subr.mxu0 0.0
    %643 = vmatpush1.msra.mxu0 0.0
    %644 = vmatprep.subr.mxu0 0.0
    %645 = vmatpush1.msra.mxu0 0.0
    %646 = vmatprep.subr.mxu0 0.0
    %647 = vmatpush1.msra.mxu0 0.0
    %648 = vmatprep.subr.mxu0 0.0
    %649 = vmatpush1.msra.mxu0 0.0
    %650 = vmatprep.subr.mxu0 0.0
    %651 = vmatpush1.msra.mxu0 0.0
    %652 = vmatprep.subr.mxu0 0.0
    %653 = vmatpush1.msra.mxu0 0.0
    %654 = vmatprep.subr.mxu0 0.0
    %655 = vmatpush1.msra.mxu0 0.0
    %656 = vmatprep.subr.mxu0 0.0
    %657 = vmatpush1.msra.mxu0 0.0
    %658 = vmatprep.subr.mxu0 0.0
    %659 = vmatpush1.msra.mxu0 0.0
    %660 = vmatprep.subr.mxu0 0.0
    %661 = vmatpush1.msra.mxu0 0.0
    %662 = vmatprep.subr.mxu0 0.0
    %663 = vmatpush1.msra.mxu0 0.0
    %664 = vmatprep.subr.mxu0 0.0
    %665 = vmatpush1.msra.mxu0 0.0
    %666 = vmatprep.subr.mxu0 0.0
    %667 = vmatpush1.msra.mxu0 0.0
    %668 = vmatprep.subr.mxu0 0.0
    %669 = vmatpush1.msra.mxu0 0.0
    %670 = vmatprep.subr.mxu0 0.0
    %671 = vmatpush1.msra.mxu0 0.0
    %672 = vmatprep.subr.mxu0 0.0
    %673 = vmatpush1.msra.mxu0 0.0
    %674 = vmatprep.subr.mxu0 0.0
    %675 = vmatpush1.msra.mxu0 0.0
    %676 = vmatprep.subr.mxu0 0.0
    %677 = vmatpush1.msra.mxu0 0.0
    %678 = vmatprep.subr.mxu0 0.0
    %679 = vmatpush1.msra.mxu0 0.0
    %680 = vmatprep.mubr.f32.mxu0 0.0
    %681 = vmatmul.mubr.f32.gmra.mrb[0].mxu0 %v614
    %v682 = vpop.f32.mrb[0].mxu0
    %v683 = vadd.f32 0.0, %v682
    %v684 = vpop.f32.mrb[0].mxu0
    %685 = vdwg.mxu0
    %686 = vrot.lane.b32.xlu0 %v323, 120
    %v687 = vpop.permute.xlu0 %686
    %688 = vrot.lane.b32.xlu0 %v345, 88
    %v689 = vpop.permute.xlu0 %688
    %v690 = vsel %vm354, %v687, 0
    %v692 = vsel %vm354, %v689, 0
    %694 = vmatprep.subr.mxu0 0.0
    %695 = vmatpush1.xpose.msra.mxu0 %v692
    %696 = vmatprep.subr.mxu0 0.0
    %697 = vmatpush1.xpose.msra.mxu0 0.0
    %698 = vmatprep.subr.mxu0 0.0
    %699 = vmatpush1.xpose.msra.mxu0 0.0
    %700 = vmatprep.subr.mxu0 0.0
    %701 = vmatpush1.xpose.msra.mxu0 0.0
    %702 = vmatprep.subr.mxu0 0.0
    %703 = vmatpush1.xpose.msra.mxu0 0.0
    %704 = vmatprep.subr.mxu0 0.0
    %705 = vmatpush1.xpose.msra.mxu0 0.0
    %706 = vmatprep.subr.mxu0 0.0
    %707 = vmatpush1.xpose.msra.mxu0 0.0
    %708 = vmatprep.subr.mxu0 0.0
    %709 = vmatpush1.xpose.msra.mxu0 0.0
    %710 = vmatprep.subr.mxu0 0.0
    %711 = vmatpush1.xpose.msra.mxu0 0.0
    %712 = vmatprep.subr.mxu0 0.0
    %713 = vmatpush1.xpose.msra.mxu0 0.0
    %714 = vmatprep.subr.mxu0 0.0
    %715 = vmatpush1.xpose.msra.mxu0 0.0
    %716 = vmatprep.subr.mxu0 0.0
    %717 = vmatpush1.xpose.msra.mxu0 0.0
    %718 = vmatprep.subr.mxu0 0.0
    %719 = vmatpush1.xpose.msra.mxu0 0.0
    %720 = vmatprep.subr.mxu0 0.0
    %721 = vmatpush1.xpose.msra.mxu0 0.0
    %722 = vmatprep.subr.mxu0 0.0
    %723 = vmatpush1.xpose.msra.mxu0 0.0
    %724 = vmatprep.subr.mxu0 0.0
    %725 = vmatpush1.xpose.msra.mxu0 0.0
    %726 = vmatprep.subr.mxu0 0.0
    %727 = vmatpush1.xpose.msra.mxu0 0.0
    %728 = vmatprep.subr.mxu0 0.0
    %729 = vmatpush1.xpose.msra.mxu0 0.0
    %730 = vmatprep.subr.mxu0 0.0
    %731 = vmatpush1.xpose.msra.mxu0 0.0
    %732 = vmatprep.subr.mxu0 0.0
    %733 = vmatpush1.xpose.msra.mxu0 0.0
    %734 = vmatprep.subr.mxu0 0.0
    %735 = vmatpush1.xpose.msra.mxu0 0.0
    %736 = vmatprep.subr.mxu0 0.0
    %737 = vmatpush1.xpose.msra.mxu0 0.0
    %738 = vmatprep.subr.mxu0 0.0
    %739 = vmatpush1.xpose.msra.mxu0 0.0
    %740 = vmatprep.subr.mxu0 0.0
    %741 = vmatpush1.xpose.msra.mxu0 0.0
    %742 = vmatprep.subr.mxu0 0.0
    %743 = vmatpush1.xpose.msra.mxu0 0.0
    %744 = vmatprep.subr.mxu0 0.0
    %745 = vmatpush1.xpose.msra.mxu0 0.0
    %746 = vmatprep.subr.mxu0 0.0
    %747 = vmatpush1.xpose.msra.mxu0 0.0
    %748 = vmatprep.subr.mxu0 0.0
    %749 = vmatpush1.xpose.msra.mxu0 0.0
    %750 = vmatprep.subr.mxu0 0.0
    %751 = vmatpush1.xpose.msra.mxu0 0.0
    %752 = vmatprep.subr.mxu0 0.0
    %753 = vmatpush1.xpose.msra.mxu0 0.0
    %754 = vmatprep.subr.mxu0 0.0
    %755 = vmatpush1.xpose.msra.mxu0 0.0
    %756 = vmatprep.subr.mxu0 0.0
    %757 = vmatpush1.xpose.msra.mxu0 0.0
    %758 = vmatprep.mubr.f32.mxu0 0.0
    %759 = vmatmul.mubr.f32.gmra.mrb[0].mxu0 %v690
    %v760 = vpop.f32.mrb[0].mxu0
    %v761 = vadd.f32 0.0, %v760
    %v762 = vpop.f32.mrb[0].mxu0
    %763 = vdwg.mxu0
    %764 = vrot.lane.b32.xlu0 %v324, 120
    %v765 = vpop.permute.xlu0 %764
    %766 = vrot.lane.b32.xlu0 %v346, 88
    %v767 = vpop.permute.xlu0 %766
    %v768 = vsel %vm354, %v765, 0
    %v770 = vsel %vm354, %v767, 0
    %772 = vmatprep.subr.mxu0 0.0
    %773 = vmatpush1.xpose.msra.mxu0 %v770
    %774 = vmatprep.subr.mxu0 0.0
    %775 = vmatpush1.xpose.msra.mxu0 0.0
    %776 = vmatprep.subr.mxu0 0.0
    %777 = vmatpush1.xpose.msra.mxu0 0.0
    %778 = vmatprep.subr.mxu0 0.0
    %779 = vmatpush1.xpose.msra.mxu0 0.0
    %780 = vmatprep.subr.mxu0 0.0
    %781 = vmatpush1.xpose.msra.mxu0 0.0
    %782 = vmatprep.subr.mxu0 0.0
    %783 = vmatpush1.xpose.msra.mxu0 0.0
    %784 = vmatprep.subr.mxu0 0.0
    %785 = vmatpush1.xpose.msra.mxu0 0.0
    %786 = vmatprep.subr.mxu0 0.0
    %787 = vmatpush1.xpose.msra.mxu0 0.0
    %788 = vmatprep.subr.mxu0 0.0
    %789 = vmatpush1.xpose.msra.mxu0 0.0
    %790 = vmatprep.subr.mxu0 0.0
    %791 = vmatpush1.xpose.msra.mxu0 0.0
    %792 = vmatprep.subr.mxu0 0.0
    %793 = vmatpush1.xpose.msra.mxu0 0.0
    %794 = vmatprep.subr.mxu0 0.0
    %795 = vmatpush1.xpose.msra.mxu0 0.0
    %796 = vmatprep.subr.mxu0 0.0
    %797 = vmatpush1.xpose.msra.mxu0 0.0
    %798 = vmatprep.subr.mxu0 0.0
    %799 = vmatpush1.xpose.msra.mxu0 0.0
    %800 = vmatprep.subr.mxu0 0.0
    %801 = vmatpush1.xpose.msra.mxu0 0.0
    %802 = vmatprep.subr.mxu0 0.0
    %803 = vmatpush1.xpose.msra.mxu0 0.0
    %804 = vmatprep.subr.mxu0 0.0
    %805 = vmatpush1.xpose.msra.mxu0 0.0
    %806 = vmatprep.subr.mxu0 0.0
    %807 = vmatpush1.xpose.msra.mxu0 0.0
    %808 = vmatprep.subr.mxu0 0.0
    %809 = vmatpush1.xpose.msra.mxu0 0.0
    %810 = vmatprep.subr.mxu0 0.0
    %811 = vmatpush1.xpose.msra.mxu0 0.0
    %812 = vmatprep.subr.mxu0 0.0
    %813 = vmatpush1.xpose.msra.mxu0 0.0
    %814 = vmatprep.subr.mxu0 0.0
    %815 = vmatpush1.xpose.msra.mxu0 0.0
    %816 = vmatprep.subr.mxu0 0.0
    %817 = vmatpush1.xpose.msra.mxu0 0.0
    %818 = vmatprep.subr.mxu0 0.0
    %819 = vmatpush1.xpose.msra.mxu0 0.0
    %820 = vmatprep.subr.mxu0 0.0
    %821 = vmatpush1.xpose.msra.mxu0 0.0
    %822 = vmatprep.subr.mxu0 0.0
    %823 = vmatpush1.xpose.msra.mxu0 0.0
    %824 = vmatprep.subr.mxu0 0.0
    %825 = vmatpush1.xpose.msra.mxu0 0.0
    %826 = vmatprep.subr.mxu0 0.0
    %827 = vmatpush1.xpose.msra.mxu0 0.0
    %828 = vmatprep.subr.mxu0 0.0
    %829 = vmatpush1.xpose.msra.mxu0 0.0
    %830 = vmatprep.subr.mxu0 0.0
    %831 = vmatpush1.xpose.msra.mxu0 0.0
    %832 = vmatprep.subr.mxu0 0.0
    %833 = vmatpush1.xpose.msra.mxu0 0.0
    %834 = vmatprep.subr.mxu0 0.0
    %835 = vmatpush1.xpose.msra.mxu0 0.0
    %836 = vmatprep.mubr.f32.mxu0 0.0
    %837 = vmatmul.mubr.f32.gmra.mrb[0].mxu0 %v768
    %v838 = vpop.f32.mrb[0].mxu0
    %v839 = vadd.f32 0.0, %v838
    %v840 = vpop.f32.mrb[0].mxu0
    %841 = vdwg.mxu0
    %v842 = vmul.f32 %v761, 0.35355338
    %v843 = vmul.f32 %v839, 0.35355338
    %v844 = vsel %vm354, %v842, -inf
    %845 = vmax.xlane.f32.xlu0 %v844
    %v846 = vpop.xlane.xlu0 %845
    %v847 = vsel %vm354, %v843, -inf
    %848 = vmax.xlane.f32.xlu0 %v847
    %v849 = vpop.xlane.xlu0 %848
    %v850 = vsub.f32 %v842, %v846
    %v851 = vsub.f32 %v843, %v849
    %v852 = vmul.f32 %v850, 1.442695
    %v853 = vpow.pop %v852
    %v854 = vmul.f32 %v851, 1.442695
    %v855 = vpow.pop %v854
    %v856 = vsel %vm354, %v853, 0.0
    %857 = vadd.xlane.f32.xlu0 %v856
    %v858 = vpop.xlane.xlu0 %857
    %v859 = vsel %vm354, %v855, 0.0
    %860 = vadd.xlane.f32.xlu0 %v859
    %v861 = vpop.xlane.xlu0 %860
    %v862 = vrcp.pop %v858
    %v863 = vrcp.pop %v861
    %v864 = vmul.f32 %v853, %v862
    %v865 = vmul.f32 %v855, %v863
    %866 = vrot.lane.b32.xlu0 %v293, 56
    %v867 = vpop.permute.xlu0 %866
    %v870 = vsel %vm354, %v864, 0
    %872 = vmatprep.subr.mxu0 0.0
    %873 = vmatpush1.msra.mxu0 %v867
    %874 = vmatprep.subr.mxu0 0.0
    %875 = vmatpush1.msra.mxu0 0.0
    %876 = vmatprep.subr.mxu0 0.0
    %877 = vmatpush1.msra.mxu0 0.0
    %878 = vmatprep.subr.mxu0 0.0
    %879 = vmatpush1.msra.mxu0 0.0
    %880 = vmatprep.subr.mxu0 0.0
    %881 = vmatpush1.msra.mxu0 0.0
    %882 = vmatprep.subr.mxu0 0.0
    %883 = vmatpush1.msra.mxu0 0.0
    %884 = vmatprep.subr.mxu0 0.0
    %885 = vmatpush1.msra.mxu0 0.0
    %886 = vmatprep.subr.mxu0 0.0
    %887 = vmatpush1.msra.mxu0 0.0
    %888 = vmatprep.subr.mxu0 0.0
    %889 = vmatpush1.msra.mxu0 0.0
    %890 = vmatprep.subr.mxu0 0.0
    %891 = vmatpush1.msra.mxu0 0.0
    %892 = vmatprep.subr.mxu0 0.0
    %893 = vmatpush1.msra.mxu0 0.0
    %894 = vmatprep.subr.mxu0 0.0
    %895 = vmatpush1.msra.mxu0 0.0
    %896 = vmatprep.subr.mxu0 0.0
    %897 = vmatpush1.msra.mxu0 0.0
    %898 = vmatprep.subr.mxu0 0.0
    %899 = vmatpush1.msra.mxu0 0.0
    %900 = vmatprep.subr.mxu0 0.0
    %901 = vmatpush1.msra.mxu0 0.0
    %902 = vmatprep.subr.mxu0 0.0
    %903 = vmatpush1.msra.mxu0 0.0
    %904 = vmatprep.subr.mxu0 0.0
    %905 = vmatpush1.msra.mxu0 0.0
    %906 = vmatprep.subr.mxu0 0.0
    %907 = vmatpush1.msra.mxu0 0.0
    %908 = vmatprep.subr.mxu0 0.0
    %909 = vmatpush1.msra.mxu0 0.0
    %910 = vmatprep.subr.mxu0 0.0
    %911 = vmatpush1.msra.mxu0 0.0
    %912 = vmatprep.subr.mxu0 0.0
    %913 = vmatpush1.msra.mxu0 0.0
    %914 = vmatprep.subr.mxu0 0.0
    %915 = vmatpush1.msra.mxu0 0.0
    %916 = vmatprep.subr.mxu0 0.0
    %917 = vmatpush1.msra.mxu0 0.0
    %918 = vmatprep.subr.mxu0 0.0
    %919 = vmatpush1.msra.mxu0 0.0
    %920 = vmatprep.subr.mxu0 0.0
    %921 = vmatpush1.msra.mxu0 0.0
    %922 = vmatprep.subr.mxu0 0.0
    %923 = vmatpush1.msra.mxu0 0.0
    %924 = vmatprep.subr.mxu0 0.0
    %925 = vmatpush1.msra.mxu0 0.0
    %926 = vmatprep.subr.mxu0 0.0
    %927 = vmatpush1.msra.mxu0 0.0
    %928 = vmatprep.subr.mxu0 0.0
    %929 = vmatpush1.msra.mxu0 0.0
    %930 = vmatprep.subr.mxu0 0.0
    %931 = vmatpush1.msra.mxu0 0.0
    %932 = vmatprep.subr.mxu0 0.0
    %933 = vmatpush1.msra.mxu0 0.0
    %934 = vmatprep.subr.mxu0 0.0
    %935 = vmatpush1.msra.mxu0 0.0
    %936 = vmatprep.mubr.f32.mxu0 0.0
    %937 = vmatmul.mubr.f32.gmra.mrb[0].mxu0 %v870
    %v938 = vpop.f32.mrb[0].mxu0
    %v939 = vadd.f32 0.0, %v938
    %v940 = vpop.f32.mrb[0].mxu0
    %941 = vdwg.mxu0
    %942 = vrot.lane.b32.xlu0 %v299, 56
    %v943 = vpop.permute.xlu0 %942
    %v946 = vsel %vm354, %v865, 0
    %948 = vmatprep.subr.mxu0 0.0
    %949 = vmatpush1.msra.mxu0 %v943
    %950 = vmatprep.subr.mxu0 0.0
    %951 = vmatpush1.msra.mxu0 0.0
    %952 = vmatprep.subr.mxu0 0.0
    %953 = vmatpush1.msra.mxu0 0.0
    %954 = vmatprep.subr.mxu0 0.0
    %955 = vmatpush1.msra.mxu0 0.0
    %956 = vmatprep.subr.mxu0 0.0
    %957 = vmatpush1.msra.mxu0 0.0
    %958 = vmatprep.subr.mxu0 0.0
    %959 = vmatpush1.msra.mxu0 0.0
    %960 = vmatprep.subr.mxu0 0.0
    %961 = vmatpush1.msra.mxu0 0.0
    %962 = vmatprep.subr.mxu0 0.0
    %963 = vmatpush1.msra.mxu0 0.0
    %964 = vmatprep.subr.mxu0 0.0
    %965 = vmatpush1.msra.mxu0 0.0
    %966 = vmatprep.subr.mxu0 0.0
    %967 = vmatpush1.msra.mxu0 0.0
    %968 = vmatprep.subr.mxu0 0.0
    %969 = vmatpush1.msra.mxu0 0.0
    %970 = vmatprep.subr.mxu0 0.0
    %971 = vmatpush1.msra.mxu0 0.0
    %972 = vmatprep.subr.mxu0 0.0
    %973 = vmatpush1.msra.mxu0 0.0
    %974 = vmatprep.subr.mxu0 0.0
    %975 = vmatpush1.msra.mxu0 0.0
    %976 = vmatprep.subr.mxu0 0.0
    %977 = vmatpush1.msra.mxu0 0.0
    %978 = vmatprep.subr.mxu0 0.0
    %979 = vmatpush1.msra.mxu0 0.0
    %980 = vmatprep.subr.mxu0 0.0
    %981 = vmatpush1.msra.mxu0 0.0
    %982 = vmatprep.subr.mxu0 0.0
    %983 = vmatpush1.msra.mxu0 0.0
    %984 = vmatprep.subr.mxu0 0.0
    %985 = vmatpush1.msra.mxu0 0.0
    %986 = vmatprep.subr.mxu0 0.0
    %987 = vmatpush1.msra.mxu0 0.0
    %988 = vmatprep.subr.mxu0 0.0
    %989 = vmatpush1.msra.mxu0 0.0
    %990 = vmatprep.subr.mxu0 0.0
    %991 = vmatpush1.msra.mxu0 0.0
    %992 = vmatprep.subr.mxu0 0.0
    %993 = vmatpush1.msra.mxu0 0.0
    %994 = vmatprep.subr.mxu0 0.0
    %995 = vmatpush1.msra.mxu0 0.0
    %996 = vmatprep.subr.mxu0 0.0
    %997 = vmatpush1.msra.mxu0 0.0
    %998 = vmatprep.subr.mxu0 0.0
    %999 = vmatpush1.msra.mxu0 0.0
    %1000 = vmatprep.subr.mxu0 0.0
    %1001 = vmatpush1.msra.mxu0 0.0
    %1002 = vmatprep.subr.mxu0 0.0
    %1003 = vmatpush1.msra.mxu0 0.0
    %1004 = vmatprep.subr.mxu0 0.0
    %1005 = vmatpush1.msra.mxu0 0.0
    %1006 = vmatprep.subr.mxu0 0.0
    %1007 = vmatpush1.msra.mxu0 0.0
    %1008 = vmatprep.subr.mxu0 0.0
    %1009 = vmatpush1.msra.mxu0 0.0
    %1010 = vmatprep.subr.mxu0 0.0
    %1011 = vmatpush1.msra.mxu0 0.0
    %1012 = vmatprep.mubr.f32.mxu0 0.0
    %1013 = vmatmul.mubr.f32.gmra.mrb[0].mxu0 %v946
    %v1014 = vpop.f32.mrb[0].mxu0
    %v1015 = vadd.f32 0.0, %v1014
    %v1016 = vpop.f32.mrb[0].mxu0
    %1017 = vdwg.mxu0
    %v1019 = vsel %vm354, %v939, 0
    %v1022 = vsel %vm354, %v1015, 0
    %1024 = vmatprep.subr.mxu0 0.0
    %1025 = vmatpush1.msra.mxu0 %v348
    %1026 = vmatprep.subr.mxu0 0.0
    %1027 = vmatpush1.msra.mxu0 0.0
    %1028 = vmatprep.subr.mxu0 0.0
    %1029 = vmatpush1.msra.mxu0 0.0
    %1030 = vmatprep.subr.mxu0 0.0
    %1031 = vmatpush1.msra.mxu0 0.0
    %1032 = vmatprep.subr.mxu0 0.0
    %1033 = vmatpush1.msra.mxu0 0.0
    %1034 = vmatprep.subr.mxu0 0.0
    %1035 = vmatpush1.msra.mxu0 0.0
    %1036 = vmatprep.subr.mxu0 0.0
    %1037 = vmatpush1.msra.mxu0 0.0
    %1038 = vmatprep.subr.mxu0 0.0
    %1039 = vmatpush1.msra.mxu0 0.0
    %1040 = vmatprep.subr.mxu0 0.0
    %1041 = vmatpush1.msra.mxu0 0.0
    %1042 = vmatprep.subr.mxu0 0.0
    %1043 = vmatpush1.msra.mxu0 0.0
    %1044 = vmatprep.subr.mxu0 0.0
    %1045 = vmatpush1.msra.mxu0 0.0
    %1046 = vmatprep.subr.mxu0 0.0
    %1047 = vmatpush1.msra.mxu0 0.0
    %1048 = vmatprep.subr.mxu0 0.0
    %1049 = vmatpush1.msra.mxu0 0.0
    %1050 = vmatprep.subr.mxu0 0.0
    %1051 = vmatpush1.msra.mxu0 0.0
    %1052 = vmatprep.subr.mxu0 0.0
    %1053 = vmatpush1.msra.mxu0 0.0
    %1054 = vmatprep.subr.mxu0 0.0
    %1055 = vmatpush1.msra.mxu0 0.0
    %1056 = vmatprep.subr.mxu0 0.0
    %1057 = vmatpush1.msra.mxu0 0.0
    %1058 = vmatprep.subr.mxu0 0.0
    %1059 = vmatpush1.msra.mxu0 0.0
    %1060 = vmatprep.subr.mxu0 0.0
    %1061 = vmatpush1.msra.mxu0 0.0
    %1062 = vmatprep.subr.mxu0 0.0
    %1063 = vmatpush1.msra.mxu0 0.0
    %1064 = vmatprep.subr.mxu0 0.0
    %1065 = vmatpush1.msra.mxu0 0.0
    %1066 = vmatprep.subr.mxu0 0.0
    %1067 = vmatpush1.msra.mxu0 0.0
    %1068 = vmatprep.subr.mxu0 0.0
    %1069 = vmatpush1.msra.mxu0 0.0
    %1070 = vmatprep.subr.mxu0 0.0
    %1071 = vmatpush1.msra.mxu0 0.0
    %1072 = vmatprep.subr.mxu0 0.0
    %1073 = vmatpush1.msra.mxu0 0.0
    %1074 = vmatprep.subr.mxu0 0.0
    %1075 = vmatpush1.msra.mxu0 0.0
    %1076 = vmatprep.subr.mxu0 0.0
    %1077 = vmatpush1.msra.mxu0 0.0
    %1078 = vmatprep.subr.mxu0 0.0
    %1079 = vmatpush1.msra.mxu0 0.0
    %1080 = vmatprep.subr.mxu0 0.0
    %1081 = vmatpush1.msra.mxu0 0.0
    %1082 = vmatprep.subr.mxu0 0.0
    %1083 = vmatpush1.msra.mxu0 0.0
    %1084 = vmatprep.subr.mxu0 0.0
    %1085 = vmatpush1.msra.mxu0 0.0
    %1086 = vmatprep.subr.mxu0 0.0
    %1087 = vmatpush1.msra.mxu0 0.0
    %1088 = vmatprep.mubr.f32.mxu0 0.0
    %1089 = vmatmul.mubr.f32.gmra.mrb[0].mxu0 %v1019
    %v1090 = vpop.f32.mrb[0].mxu0
    %v1091 = vadd.f32 0.0, %v1090
    %v1092 = vpop.f32.mrb[0].mxu0
    %1093 = vmatprep.mubr.f32.mxu0 0.0
    %1094 = vmatmul.mubr.f32.gmra.mrb[0].mxu0 %v1022
    %v1095 = vpop.f32.mrb[0].mxu0
    %v1096 = vadd.f32 0.0, %v1095
    %v1097 = vpop.f32.mrb[0].mxu0
    %1098 = vdwg.mxu0
    %v1100 = vsel %vm354, %v606, 0
    %v1103 = vsel %vm354, %v683, 0
    %1105 = vmatprep.subr.mxu0 0.0
    %1106 = vmatpush1.msra.mxu0 %v347
    %1107 = vmatprep.subr.mxu0 0.0
    %1108 = vmatpush1.msra.mxu0 0.0
    %1109 = vmatprep.subr.mxu0 0.0
    %1110 = vmatpush1.msra.mxu0 0.0
    %1111 = vmatprep.subr.mxu0 0.0
    %1112 = vmatpush1.msra.mxu0 0.0
    %1113 = vmatprep.subr.mxu0 0.0
    %1114 = vmatpush1.msra.mxu0 0.0
    %1115 = vmatprep.subr.mxu0 0.0
    %1116 = vmatpush1.msra.mxu0 0.0
    %1117 = vmatprep.subr.mxu0 0.0
    %1118 = vmatpush1.msra.mxu0 0.0
    %1119 = vmatprep.subr.mxu0 0.0
    %1120 = vmatpush1.msra.mxu0 0.0
    %1121 = vmatprep.subr.mxu0 0.0
    %1122 = vmatpush1.msra.mxu0 0.0
    %1123 = vmatprep.subr.mxu0 0.0
    %1124 = vmatpush1.msra.mxu0 0.0
    %1125 = vmatprep.subr.mxu0 0.0
    %1126 = vmatpush1.msra.mxu0 0.0
    %1127 = vmatprep.subr.mxu0 0.0
    %1128 = vmatpush1.msra.mxu0 0.0
    %1129 = vmatprep.subr.mxu0 0.0
    %1130 = vmatpush1.msra.mxu0 0.0
    %1131 = vmatprep.subr.mxu0 0.0
    %1132 = vmatpush1.msra.mxu0 0.0
    %1133 = vmatprep.subr.mxu0 0.0
    %1134 = vmatpush1.msra.mxu0 0.0
    %1135 = vmatprep.subr.mxu0 0.0
    %1136 = vmatpush1.msra.mxu0 0.0
    %1137 = vmatprep.subr.mxu0 0.0
    %1138 = vmatpush1.msra.mxu0 0.0
    %1139 = vmatprep.subr.mxu0 0.0
    %1140 = vmatpush1.msra.mxu0 0.0
    %1141 = vmatprep.subr.mxu0 0.0
    %1142 = vmatpush1.msra.mxu0 0.0
    %1143 = vmatprep.subr.mxu0 0.0
    %1144 = vmatpush1.msra.mxu0 0.0
    %1145 = vmatprep.subr.mxu0 0.0
    %1146 = vmatpush1.msra.mxu0 0.0
    %1147 = vmatprep.subr.mxu0 0.0
    %1148 = vmatpush1.msra.mxu0 0.0
    %1149 = vmatprep.subr.mxu0 0.0
    %1150 = vmatpush1.msra.mxu0 0.0
    %1151 = vmatprep.subr.mxu0 0.0
    %1152 = vmatpush1.msra.mxu0 0.0
    %1153 = vmatprep.subr.mxu0 0.0
    %1154 = vmatpush1.msra.mxu0 0.0
    %1155 = vmatprep.subr.mxu0 0.0
    %1156 = vmatpush1.msra.mxu0 0.0
    %1157 = vmatprep.subr.mxu0 0.0
    %1158 = vmatpush1.msra.mxu0 0.0
    %1159 = vmatprep.subr.mxu0 0.0
    %1160 = vmatpush1.msra.mxu0 0.0
    %1161 = vmatprep.subr.mxu0 0.0
    %1162 = vmatpush1.msra.mxu0 0.0
    %1163 = vmatprep.subr.mxu0 0.0
    %1164 = vmatpush1.msra.mxu0 0.0
    %1165 = vmatprep.subr.mxu0 0.0
    %1166 = vmatpush1.msra.mxu0 0.0
    %1167 = vmatprep.subr.mxu0 0.0
    %1168 = vmatpush1.msra.mxu0 0.0
    %1169 = vmatprep.mubr.f32.mxu0 0.0
    %1170 = vmatmul.mubr.f32.gmra.mrb[0].mxu0 %v1100
    %v1171 = vpop.f32.mrb[0].mxu0
    %v1172 = vadd.f32 %v1091, %v1171
    %v1173 = vpop.f32.mrb[0].mxu0
    %1174 = vmatprep.mubr.f32.mxu0 0.0
    %1175 = vmatmul.mubr.f32.gmra.mrb[0].mxu0 %v1103
    %v1176 = vpop.f32.mrb[0].mxu0
    %v1177 = vadd.f32 %v1096, %v1176
    %v1178 = vpop.f32.mrb[0].mxu0
    %1179 = vdwg.mxu0
    %1180 = vrot.lane.b32.xlu0 %v323, 112
    %v1181 = vpop.permute.xlu0 %1180
    %1182 = vrot.lane.b32.xlu0 %v345, 80
    %v1183 = vpop.permute.xlu0 %1182
    %v1184 = vsel %vm354, %v1181, 0
    %v1186 = vsel %vm354, %v1183, 0
    %1188 = vmatprep.subr.mxu0 0.0
    %1189 = vmatpush1.xpose.msra.mxu0 %v1186
    %1190 = vmatprep.subr.mxu0 0.0
    %1191 = vmatpush1.xpose.msra.mxu0 0.0
    %1192 = vmatprep.subr.mxu0 0.0
    %1193 = vmatpush1.xpose.msra.mxu0 0.0
    %1194 = vmatprep.subr.mxu0 0.0
    %1195 = vmatpush1.xpose.msra.mxu0 0.0
    %1196 = vmatprep.subr.mxu0 0.0
    %1197 = vmatpush1.xpose.msra.mxu0 0.0
    %1198 = vmatprep.subr.mxu0 0.0
    %1199 = vmatpush1.xpose.msra.mxu0 0.0
    %1200 = vmatprep.subr.mxu0 0.0
    %1201 = vmatpush1.xpose.msra.mxu0 0.0
    %1202 = vmatprep.subr.mxu0 0.0
    %1203 = vmatpush1.xpose.msra.mxu0 0.0
    %1204 = vmatprep.subr.mxu0 0.0
    %1205 = vmatpush1.xpose.msra.mxu0 0.0
    %1206 = vmatprep.subr.mxu0 0.0
    %1207 = vmatpush1.xpose.msra.mxu0 0.0
    %1208 = vmatprep.subr.mxu0 0.0
    %1209 = vmatpush1.xpose.msra.mxu0 0.0
    %1210 = vmatprep.subr.mxu0 0.0
    %1211 = vmatpush1.xpose.msra.mxu0 0.0
    %1212 = vmatprep.subr.mxu0 0.0
    %1213 = vmatpush1.xpose.msra.mxu0 0.0
    %1214 = vmatprep.subr.mxu0 0.0
    %1215 = vmatpush1.xpose.msra.mxu0 0.0
    %1216 = vmatprep.subr.mxu0 0.0
    %1217 = vmatpush1.xpose.msra.mxu0 0.0
    %1218 = vmatprep.subr.mxu0 0.0
    %1219 = vmatpush1.xpose.msra.mxu0 0.0
    %1220 = vmatprep.subr.mxu0 0.0
    %1221 = vmatpush1.xpose.msra.mxu0 0.0
    %1222 = vmatprep.subr.mxu0 0.0
    %1223 = vmatpush1.xpose.msra.mxu0 0.0
    %1224 = vmatprep.subr.mxu0 0.0
    %1225 = vmatpush1.xpose.msra.mxu0 0.0
    %1226 = vmatprep.subr.mxu0 0.0
    %1227 = vmatpush1.xpose.msra.mxu0 0.0
    %1228 = vmatprep.subr.mxu0 0.0
    %1229 = vmatpush1.xpose.msra.mxu0 0.0
    %1230 = vmatprep.subr.mxu0 0.0
    %1231 = vmatpush1.xpose.msra.mxu0 0.0
    %1232 = vmatprep.subr.mxu0 0.0
    %1233 = vmatpush1.xpose.msra.mxu0 0.0
    %1234 = vmatprep.subr.mxu0 0.0
    %1235 = vmatpush1.xpose.msra.mxu0 0.0
    %1236 = vmatprep.subr.mxu0 0.0
    %1237 = vmatpush1.xpose.msra.mxu0 0.0
    %1238 = vmatprep.subr.mxu0 0.0
    %1239 = vmatpush1.xpose.msra.mxu0 0.0
    %1240 = vmatprep.subr.mxu0 0.0
    %1241 = vmatpush1.xpose.msra.mxu0 0.0
    %1242 = vmatprep.subr.mxu0 0.0
    %1243 = vmatpush1.xpose.msra.mxu0 0.0
    %1244 = vmatprep.subr.mxu0 0.0
    %1245 = vmatpush1.xpose.msra.mxu0 0.0
    %1246 = vmatprep.subr.mxu0 0.0
    %1247 = vmatpush1.xpose.msra.mxu0 0.0
    %1248 = vmatprep.subr.mxu0 0.0
    %1249 = vmatpush1.xpose.msra.mxu0 0.0
    %1250 = vmatprep.subr.mxu0 0.0
    %1251 = vmatpush1.xpose.msra.mxu0 0.0
    %1252 = vmatprep.mubr.f32.mxu0 0.0
    %1253 = vmatmul.mubr.f32.gmra.mrb[0].mxu0 %v1184
    %v1254 = vpop.f32.mrb[0].mxu0
    %v1255 = vadd.f32 0.0, %v1254
    %v1256 = vpop.f32.mrb[0].mxu0
    %1257 = vdwg.mxu0
    %1258 = vrot.lane.b32.xlu0 %v324, 112
    %v1259 = vpop.permute.xlu0 %1258
    %1260 = vrot.lane.b32.xlu0 %v346, 80
    %v1261 = vpop.permute.xlu0 %1260
    %v1262 = vsel %vm354, %v1259, 0
    %v1264 = vsel %vm354, %v1261, 0
    %1266 = vmatprep.subr.mxu0 0.0
    %1267 = vmatpush1.xpose.msra.mxu0 %v1264
    %1268 = vmatprep.subr.mxu0 0.0
    %1269 = vmatpush1.xpose.msra.mxu0 0.0
    %1270 = vmatprep.subr.mxu0 0.0
    %1271 = vmatpush1.xpose.msra.mxu0 0.0
    %1272 = vmatprep.subr.mxu0 0.0
    %1273 = vmatpush1.xpose.msra.mxu0 0.0
    %1274 = vmatprep.subr.mxu0 0.0
    %1275 = vmatpush1.xpose.msra.mxu0 0.0
    %1276 = vmatprep.subr.mxu0 0.0
    %1277 = vmatpush1.xpose.msra.mxu0 0.0
    %1278 = vmatprep.subr.mxu0 0.0
    %1279 = vmatpush1.xpose.msra.mxu0 0.0
    %1280 = vmatprep.subr.mxu0 0.0
    %1281 = vmatpush1.xpose.msra.mxu0 0.0
    %1282 = vmatprep.subr.mxu0 0.0
    %1283 = vmatpush1.xpose.msra.mxu0 0.0
    %1284 = vmatprep.subr.mxu0 0.0
    %1285 = vmatpush1.xpose.msra.mxu0 0.0
    %1286 = vmatprep.subr.mxu0 0.0
    %1287 = vmatpush1.xpose.msra.mxu0 0.0
    %1288 = vmatprep.subr.mxu0 0.0
    %1289 = vmatpush1.xpose.msra.mxu0 0.0
    %1290 = vmatprep.subr.mxu0 0.0
    %1291 = vmatpush1.xpose.msra.mxu0 0.0
    %1292 = vmatprep.subr.mxu0 0.0
    %1293 = vmatpush1.xpose.msra.mxu0 0.0
    %1294 = vmatprep.subr.mxu0 0.0
    %1295 = vmatpush1.xpose.msra.mxu0 0.0
    %1296 = vmatprep.subr.mxu0 0.0
    %1297 = vmatpush1.xpose.msra.mxu0 0.0
    %1298 = vmatprep.subr.mxu0 0.0
    %1299 = vmatpush1.xpose.msra.mxu0 0.0
    %1300 = vmatprep.subr.mxu0 0.0
    %1301 = vmatpush1.xpose.msra.mxu0 0.0
    %1302 = vmatprep.subr.mxu0 0.0
    %1303 = vmatpush1.xpose.msra.mxu0 0.0
    %1304 = vmatprep.subr.mxu0 0.0
    %1305 = vmatpush1.xpose.msra.mxu0 0.0
    %1306 = vmatprep.subr.mxu0 0.0
    %1307 = vmatpush1.xpose.msra.mxu0 0.0
    %1308 = vmatprep.subr.mxu0 0.0
    %1309 = vmatpush1.xpose.msra.mxu0 0.0
    %1310 = vmatprep.subr.mxu0 0.0
    %1311 = vmatpush1.xpose.msra.mxu0 0.0
    %1312 = vmatprep.subr.mxu0 0.0
    %1313 = vmatpush1.xpose.msra.mxu0 0.0
    %1314 = vmatprep.subr.mxu0 0.0
    %1315 = vmatpush1.xpose.msra.mxu0 0.0
    %1316 = vmatprep.subr.mxu0 0.0
    %1317 = vmatpush1.xpose.msra.mxu0 0.0
    %1318 = vmatprep.subr.mxu0 0.0
    %1319 = vmatpush1.xpose.msra.mxu0 0.0
    %1320 = vmatprep.subr.mxu0 0.0
    %1321 = vmatpush1.xpose.msra.mxu0 0.0
    %1322 = vmatprep.subr.mxu0 0.0
    %1323 = vmatpush1.xpose.msra.mxu0 0.0
    %1324 = vmatprep.subr.mxu0 0.0
    %1325 = vmatpush1.xpose.msra.mxu0 0.0
    %1326 = vmatprep.subr.mxu0 0.0
    %1327 = vmatpush1.xpose.msra.mxu0 0.0
    %1328 = vmatprep.subr.mxu0 0.0
    %1329 = vmatpush1.xpose.msra.mxu0 0.0
    %1330 = vmatprep.mubr.f32.mxu0 0.0
    %1331 = vmatmul.mubr.f32.gmra.mrb[0].mxu0 %v1262
    %v1332 = vpop.f32.mrb[0].mxu0
    %v1333 = vadd.f32 0.0, %v1332
    %v1334 = vpop.f32.mrb[0].mxu0
    %1335 = vdwg.mxu0
    %v1336 = vmul.f32 %v1255, 0.35355338
    %v1337 = vmul.f32 %v1333, 0.35355338
    %v1338 = vsel %vm354, %v1336, -inf
    %1339 = vmax.xlane.f32.xlu0 %v1338
    %v1340 = vpop.xlane.xlu0 %1339
    %v1341 = vsel %vm354, %v1337, -inf
    %1342 = vmax.xlane.f32.xlu0 %v1341
    %v1343 = vpop.xlane.xlu0 %1342
    %v1344 = vsub.f32 %v1336, %v1340
    %v1345 = vsub.f32 %v1337, %v1343
    %v1346 = vmul.f32 %v1344, 1.442695
    %v1347 = vpow.pop %v1346
    %v1348 = vmul.f32 %v1345, 1.442695
    %v1349 = vpow.pop %v1348
    %v1350 = vsel %vm354, %v1347, 0.0
    %1351 = vadd.xlane.f32.xlu0 %v1350
    %v1352 = vpop.xlane.xlu0 %1351
    %v1353 = vsel %vm354, %v1349, 0.0
    %1354 = vadd.xlane.f32.xlu0 %v1353
    %v1355 = vpop.xlane.xlu0 %1354
    %v1356 = vrcp.pop %v1352
    %v1357 = vrcp.pop %v1355
    %v1358 = vmul.f32 %v1347, %v1356
    %v1359 = vmul.f32 %v1349, %v1357
    %1360 = vrot.lane.b32.xlu0 %v293, 48
    %v1361 = vpop.permute.xlu0 %1360
    %v1364 = vsel %vm354, %v1358, 0
    %1366 = vmatprep.subr.mxu0 0.0
    %1367 = vmatpush1.msra.mxu0 %v1361
    %1368 = vmatprep.subr.mxu0 0.0
    %1369 = vmatpush1.msra.mxu0 0.0
    %1370 = vmatprep.subr.mxu0 0.0
    %1371 = vmatpush1.msra.mxu0 0.0
    %1372 = vmatprep.subr.mxu0 0.0
    %1373 = vmatpush1.msra.mxu0 0.0
    %1374 = vmatprep.subr.mxu0 0.0
    %1375 = vmatpush1.msra.mxu0 0.0
    %1376 = vmatprep.subr.mxu0 0.0
    %1377 = vmatpush1.msra.mxu0 0.0
    %1378 = vmatprep.subr.mxu0 0.0
    %1379 = vmatpush1.msra.mxu0 0.0
    %1380 = vmatprep.subr.mxu0 0.0
    %1381 = vmatpush1.msra.mxu0 0.0
    %1382 = vmatprep.subr.mxu0 0.0
    %1383 = vmatpush1.msra.mxu0 0.0
    %1384 = vmatprep.subr.mxu0 0.0
    %1385 = vmatpush1.msra.mxu0 0.0
    %1386 = vmatprep.subr.mxu0 0.0
    %1387 = vmatpush1.msra.mxu0 0.0
    %1388 = vmatprep.subr.mxu0 0.0
    %1389 = vmatpush1.msra.mxu0 0.0
    %1390 = vmatprep.subr.mxu0 0.0
    %1391 = vmatpush1.msra.mxu0 0.0
    %1392 = vmatprep.subr.mxu0 0.0
    %1393 = vmatpush1.msra.mxu0 0.0
    %1394 = vmatprep.subr.mxu0 0.0
    %1395 = vmatpush1.msra.mxu0 0.0
    %1396 = vmatprep.subr.mxu0 0.0
    %1397 = vmatpush1.msra.mxu0 0.0
    %1398 = vmatprep.subr.mxu0 0.0
    %1399 = vmatpush1.msra.mxu0 0.0
    %1400 = vmatprep.subr.mxu0 0.0
    %1401 = vmatpush1.msra.mxu0 0.0
    %1402 = vmatprep.subr.mxu0 0.0
    %1403 = vmatpush1.msra.mxu0 0.0
    %1404 = vmatprep.subr.mxu0 0.0
    %1405 = vmatpush1.msra.mxu0 0.0
    %1406 = vmatprep.subr.mxu0 0.0
    %1407 = vmatpush1.msra.mxu0 0.0
    %1408 = vmatprep.subr.mxu0 0.0
    %1409 = vmatpush1.msra.mxu0 0.0
    %1410 = vmatprep.subr.mxu0 0.0
    %1411 = vmatpush1.msra.mxu0 0.0
    %1412 = vmatprep.subr.mxu0 0.0
    %1413 = vmatpush1.msra.mxu0 0.0
    %1414 = vmatprep.subr.mxu0 0.0
    %1415 = vmatpush1.msra.mxu0 0.0
    %1416 = vmatprep.subr.mxu0 0.0
    %1417 = vmatpush1.msra.mxu0 0.0
    %1418 = vmatprep.subr.mxu0 0.0
    %1419 = vmatpush1.msra.mxu0 0.0
    %1420 = vmatprep.subr.mxu0 0.0
    %1421 = vmatpush1.msra.mxu0 0.0
    %1422 = vmatprep.subr.mxu0 0.0
    %1423 = vmatpush1.msra.mxu0 0.0
    %1424 = vmatprep.subr.mxu0 0.0
    %1425 = vmatpush1.msra.mxu0 0.0
    %1426 = vmatprep.subr.mxu0 0.0
    %1427 = vmatpush1.msra.mxu0 0.0
    %1428 = vmatprep.subr.mxu0 0.0
    %1429 = vmatpush1.msra.mxu0 0.0
    %1430 = vmatprep.mubr.f32.mxu0 0.0
    %1431 = vmatmul.mubr.f32.gmra.mrb[0].mxu0 %v1364
    %v1432 = vpop.f32.mrb[0].mxu0
    %v1433 = vadd.f32 0.0, %v1432
    %v1434 = vpop.f32.mrb[0].mxu0
    %1435 = vdwg.mxu0
    %1436 = vrot.lane.b32.xlu0 %v299, 48
    %v1437 = vpop.permute.xlu0 %1436
    %v1440 = vsel %vm354, %v1359, 0
    %1442 = vmatprep.subr.mxu0 0.0
    %1443 = vmatpush1.msra.mxu0 %v1437
    %1444 = vmatprep.subr.mxu0 0.0
    %1445 = vmatpush1.msra.mxu0 0.0
    %1446 = vmatprep.subr.mxu0 0.0
    %1447 = vmatpush1.msra.mxu0 0.0
    %1448 = vmatprep.subr.mxu0 0.0
    %1449 = vmatpush1.msra.mxu0 0.0
    %1450 = vmatprep.subr.mxu0 0.0
    %1451 = vmatpush1.msra.mxu0 0.0
    %1452 = vmatprep.subr.mxu0 0.0
    %1453 = vmatpush1.msra.mxu0 0.0
    %1454 = vmatprep.subr.mxu0 0.0
    %1455 = vmatpush1.msra.mxu0 0.0
    %1456 = vmatprep.subr.mxu0 0.0
    %1457 = vmatpush1.msra.mxu0 0.0
    %1458 = vmatprep.subr.mxu0 0.0
    %1459 = vmatpush1.msra.mxu0 0.0
    %1460 = vmatprep.subr.mxu0 0.0
    %1461 = vmatpush1.msra.mxu0 0.0
    %1462 = vmatprep.subr.mxu0 0.0
    %1463 = vmatpush1.msra.mxu0 0.0
    %1464 = vmatprep.subr.mxu0 0.0
    %1465 = vmatpush1.msra.mxu0 0.0
    %1466 = vmatprep.subr.mxu0 0.0
    %1467 = vmatpush1.msra.mxu0 0.0
    %1468 = vmatprep.subr.mxu0 0.0
    %1469 = vmatpush1.msra.mxu0 0.0
    %1470 = vmatprep.subr.mxu0 0.0
    %1471 = vmatpush1.msra.mxu0 0.0
    %1472 = vmatprep.subr.mxu0 0.0
    %1473 = vmatpush1.msra.mxu0 0.0
    %1474 = vmatprep.subr.mxu0 0.0
    %1475 = vmatpush1.msra.mxu0 0.0
    %1476 = vmatprep.subr.mxu0 0.0
    %1477 = vmatpush1.msra.mxu0 0.0
    %1478 = vmatprep.subr.mxu0 0.0
    %1479 = vmatpush1.msra.mxu0 0.0
    %1480 = vmatprep.subr.mxu0 0.0
    %1481 = vmatpush1.msra.mxu0 0.0
    %1482 = vmatprep.subr.mxu0 0.0
    %1483 = vmatpush1.msra.mxu0 0.0
    %1484 = vmatprep.subr.mxu0 0.0
    %1485 = vmatpush1.msra.mxu0 0.0
    %1486 = vmatprep.subr.mxu0 0.0
    %1487 = vmatpush1.msra.mxu0 0.0
    %1488 = vmatprep.subr.mxu0 0.0
    %1489 = vmatpush1.msra.mxu0 0.0
    %1490 = vmatprep.subr.mxu0 0.0
    %1491 = vmatpush1.msra.mxu0 0.0
    %1492 = vmatprep.subr.mxu0 0.0
    %1493 = vmatpush1.msra.mxu0 0.0
    %1494 = vmatprep.subr.mxu0 0.0
    %1495 = vmatpush1.msra.mxu0 0.0
    %1496 = vmatprep.subr.mxu0 0.0
    %1497 = vmatpush1.msra.mxu0 0.0
    %1498 = vmatprep.subr.mxu0 0.0
    %1499 = vmatpush1.msra.mxu0 0.0
    %1500 = vmatprep.subr.mxu0 0.0
    %1501 = vmatpush1.msra.mxu0 0.0
    %1502 = vmatprep.subr.mxu0 0.0
    %1503 = vmatpush1.msra.mxu0 0.0
    %1504 = vmatprep.subr.mxu0 0.0
    %1505 = vmatpush1.msra.mxu0 0.0
    %1506 = vmatprep.mubr.f32.mxu0 0.0
    %1507 = vmatmul.mubr.f32.gmra.mrb[0].mxu0 %v1440
    %v1508 = vpop.f32.mrb[0].mxu0
    %v1509 = vadd.f32 0.0, %v1508
    %v1510 = vpop.f32.mrb[0].mxu0
    %1511 = vdwg.mxu0
    %v1513 = vsel %vm354, %v1433, 0
    %v1516 = vsel %vm354, %v1509, 0
    %1518 = vmatprep.subr.mxu0 0.0
    %1519 = vmatpush1.msra.mxu0 %v349
    %1520 = vmatprep.subr.mxu0 0.0
    %1521 = vmatpush1.msra.mxu0 0.0
    %1522 = vmatprep.subr.mxu0 0.0
    %1523 = vmatpush1.msra.mxu0 0.0
    %1524 = vmatprep.subr.mxu0 0.0
    %1525 = vmatpush1.msra.mxu0 0.0
    %1526 = vmatprep.subr.mxu0 0.0
    %1527 = vmatpush1.msra.mxu0 0.0
    %1528 = vmatprep.subr.mxu0 0.0
    %1529 = vmatpush1.msra.mxu0 0.0
    %1530 = vmatprep.subr.mxu0 0.0
    %1531 = vmatpush1.msra.mxu0 0.0
    %1532 = vmatprep.subr.mxu0 0.0
    %1533 = vmatpush1.msra.mxu0 0.0
    %1534 = vmatprep.subr.mxu0 0.0
    %1535 = vmatpush1.msra.mxu0 0.0
    %1536 = vmatprep.subr.mxu0 0.0
    %1537 = vmatpush1.msra.mxu0 0.0
    %1538 = vmatprep.subr.mxu0 0.0
    %1539 = vmatpush1.msra.mxu0 0.0
    %1540 = vmatprep.subr.mxu0 0.0
    %1541 = vmatpush1.msra.mxu0 0.0
    %1542 = vmatprep.subr.mxu0 0.0
    %1543 = vmatpush1.msra.mxu0 0.0
    %1544 = vmatprep.subr.mxu0 0.0
    %1545 = vmatpush1.msra.mxu0 0.0
    %1546 = vmatprep.subr.mxu0 0.0
    %1547 = vmatpush1.msra.mxu0 0.0
    %1548 = vmatprep.subr.mxu0 0.0
    %1549 = vmatpush1.msra.mxu0 0.0
    %1550 = vmatprep.subr.mxu0 0.0
    %1551 = vmatpush1.msra.mxu0 0.0
    %1552 = vmatprep.subr.mxu0 0.0
    %1553 = vmatpush1.msra.mxu0 0.0
    %1554 = vmatprep.subr.mxu0 0.0
    %1555 = vmatpush1.msra.mxu0 0.0
    %1556 = vmatprep.subr.mxu0 0.0
    %1557 = vmatpush1.msra.mxu0 0.0
    %1558 = vmatprep.subr.mxu0 0.0
    %1559 = vmatpush1.msra.mxu0 0.0
    %1560 = vmatprep.subr.mxu0 0.0
    %1561 = vmatpush1.msra.mxu0 0.0
    %1562 = vmatprep.subr.mxu0 0.0
    %1563 = vmatpush1.msra.mxu0 0.0
    %1564 = vmatprep.subr.mxu0 0.0
    %1565 = vmatpush1.msra.mxu0 0.0
    %1566 = vmatprep.subr.mxu0 0.0
    %1567 = vmatpush1.msra.mxu0 0.0
    %1568 = vmatprep.subr.mxu0 0.0
    %1569 = vmatpush1.msra.mxu0 0.0
    %1570 = vmatprep.subr.mxu0 0.0
    %1571 = vmatpush1.msra.mxu0 0.0
    %1572 = vmatprep.subr.mxu0 0.0
    %1573 = vmatpush1.msra.mxu0 0.0
    %1574 = vmatprep.subr.mxu0 0.0
    %1575 = vmatpush1.msra.mxu0 0.0
    %1576 = vmatprep.subr.mxu0 0.0
    %1577 = vmatpush1.msra.mxu0 0.0
    %1578 = vmatprep.subr.mxu0 0.0
    %1579 = vmatpush1.msra.mxu0 0.0
    %1580 = vmatprep.subr.mxu0 0.0
    %1581 = vmatpush1.msra.mxu0 0.0
    %1582 = vmatprep.mubr.f32.mxu0 0.0
    %1583 = vmatmul.mubr.f32.gmra.mrb[0].mxu0 %v1513
    %v1584 = vpop.f32.mrb[0].mxu0
    %v1585 = vadd.f32 0.0, %v1584
    %v1586 = vpop.f32.mrb[0].mxu0
    %1587 = vmatprep.mubr.f32.mxu0 0.0
    %1588 = vmatmul.mubr.f32.gmra.mrb[0].mxu0 %v1516
    %v1589 = vpop.f32.mrb[0].mxu0
    %v1590 = vadd.f32 0.0, %v1589
    %v1591 = vpop.f32.mrb[0].mxu0
    %1592 = vdwg.mxu0
    %v1593 = vadd.f32 %v1172, %v1585
    %v1594 = vadd.f32 %v1177, %v1590
    %1595 = vrot.lane.b32.xlu0 %v323, 104
    %v1596 = vpop.permute.xlu0 %1595
    %1597 = vrot.lane.b32.xlu0 %v345, 72
    %v1598 = vpop.permute.xlu0 %1597
    %v1599 = vsel %vm354, %v1596, 0
    %v1601 = vsel %vm354, %v1598, 0
    %1603 = vmatprep.subr.mxu0 0.0
    %1604 = vmatpush1.xpose.msra.mxu0 %v1601
    %1605 = vmatprep.subr.mxu0 0.0
    %1606 = vmatpush1.xpose.msra.mxu0 0.0
    %1607 = vmatprep.subr.mxu0 0.0
    %1608 = vmatpush1.xpose.msra.mxu0 0.0
    %1609 = vmatprep.subr.mxu0 0.0
    %1610 = vmatpush1.xpose.msra.mxu0 0.0
    %1611 = vmatprep.subr.mxu0 0.0
    %1612 = vmatpush1.xpose.msra.mxu0 0.0
    %1613 = vmatprep.subr.mxu0 0.0
    %1614 = vmatpush1.xpose.msra.mxu0 0.0
    %1615 = vmatprep.subr.mxu0 0.0
    %1616 = vmatpush1.xpose.msra.mxu0 0.0
    %1617 = vmatprep.subr.mxu0 0.0
    %1618 = vmatpush1.xpose.msra.mxu0 0.0
    %1619 = vmatprep.subr.mxu0 0.0
    %1620 = vmatpush1.xpose.msra.mxu0 0.0
    %1621 = vmatprep.subr.mxu0 0.0
    %1622 = vmatpush1.xpose.msra.mxu0 0.0
    %1623 = vmatprep.subr.mxu0 0.0
    %1624 = vmatpush1.xpose.msra.mxu0 0.0
    %1625 = vmatprep.subr.mxu0 0.0
    %1626 = vmatpush1.xpose.msra.mxu0 0.0
    %1627 = vmatprep.subr.mxu0 0.0
    %1628 = vmatpush1.xpose.msra.mxu0 0.0
    %1629 = vmatprep.subr.mxu0 0.0
    %1630 = vmatpush1.xpose.msra.mxu0 0.0
    %1631 = vmatprep.subr.mxu0 0.0
    %1632 = vmatpush1.xpose.msra.mxu0 0.0
    %1633 = vmatprep.subr.mxu0 0.0
    %1634 = vmatpush1.xpose.msra.mxu0 0.0
    %1635 = vmatprep.subr.mxu0 0.0
    %1636 = vmatpush1.xpose.msra.mxu0 0.0
    %1637 = vmatprep.subr.mxu0 0.0
    %1638 = vmatpush1.xpose.msra.mxu0 0.0
    %1639 = vmatprep.subr.mxu0 0.0
    %1640 = vmatpush1.xpose.msra.mxu0 0.0
    %1641 = vmatprep.subr.mxu0 0.0
    %1642 = vmatpush1.xpose.msra.mxu0 0.0
    %1643 = vmatprep.subr.mxu0 0.0
    %1644 = vmatpush1.xpose.msra.mxu0 0.0
    %1645 = vmatprep.subr.mxu0 0.0
    %1646 = vmatpush1.xpose.msra.mxu0 0.0
    %1647 = vmatprep.subr.mxu0 0.0
    %1648 = vmatpush1.xpose.msra.mxu0 0.0
    %1649 = vmatprep.subr.mxu0 0.0
    %1650 = vmatpush1.xpose.msra.mxu0 0.0
    %1651 = vmatprep.subr.mxu0 0.0
    %1652 = vmatpush1.xpose.msra.mxu0 0.0
    %1653 = vmatprep.subr.mxu0 0.0
    %1654 = vmatpush1.xpose.msra.mxu0 0.0
    %1655 = vmatprep.subr.mxu0 0.0
    %1656 = vmatpush1.xpose.msra.mxu0 0.0
    %1657 = vmatprep.subr.mxu0 0.0
    %1658 = vmatpush1.xpose.msra.mxu0 0.0
    %1659 = vmatprep.subr.mxu0 0.0
    %1660 = vmatpush1.xpose.msra.mxu0 0.0
    %1661 = vmatprep.subr.mxu0 0.0
    %1662 = vmatpush1.xpose.msra.mxu0 0.0
    %1663 = vmatprep.subr.mxu0 0.0
    %1664 = vmatpush1.xpose.msra.mxu0 0.0
    %1665 = vmatprep.subr.mxu0 0.0
    %1666 = vmatpush1.xpose.msra.mxu0 0.0
    %1667 = vmatprep.mubr.f32.mxu0 0.0
    %1668 = vmatmul.mubr.f32.gmra.mrb[0].mxu0 %v1599
    %v1669 = vpop.f32.mrb[0].mxu0
    %v1670 = vadd.f32 0.0, %v1669
    %v1671 = vpop.f32.mrb[0].mxu0
    %1672 = vdwg.mxu0
    %1673 = vrot.lane.b32.xlu0 %v324, 104
    %v1674 = vpop.permute.xlu0 %1673
    %1675 = vrot.lane.b32.xlu0 %v346, 72
    %v1676 = vpop.permute.xlu0 %1675
    %v1677 = vsel %vm354, %v1674, 0
    %v1679 = vsel %vm354, %v1676, 0
    %1681 = vmatprep.subr.mxu0 0.0
    %1682 = vmatpush1.xpose.msra.mxu0 %v1679
    %1683 = vmatprep.subr.mxu0 0.0
    %1684 = vmatpush1.xpose.msra.mxu0 0.0
    %1685 = vmatprep.subr.mxu0 0.0
    %1686 = vmatpush1.xpose.msra.mxu0 0.0
    %1687 = vmatprep.subr.mxu0 0.0
    %1688 = vmatpush1.xpose.msra.mxu0 0.0
    %1689 = vmatprep.subr.mxu0 0.0
    %1690 = vmatpush1.xpose.msra.mxu0 0.0
    %1691 = vmatprep.subr.mxu0 0.0
    %1692 = vmatpush1.xpose.msra.mxu0 0.0
    %1693 = vmatprep.subr.mxu0 0.0
    %1694 = vmatpush1.xpose.msra.mxu0 0.0
    %1695 = vmatprep.subr.mxu0 0.0
    %1696 = vmatpush1.xpose.msra.mxu0 0.0
    %1697 = vmatprep.subr.mxu0 0.0
    %1698 = vmatpush1.xpose.msra.mxu0 0.0
    %1699 = vmatprep.subr.mxu0 0.0
    %1700 = vmatpush1.xpose.msra.mxu0 0.0
    %1701 = vmatprep.subr.mxu0 0.0
    %1702 = vmatpush1.xpose.msra.mxu0 0.0
    %1703 = vmatprep.subr.mxu0 0.0
    %1704 = vmatpush1.xpose.msra.mxu0 0.0
    %1705 = vmatprep.subr.mxu0 0.0
    %1706 = vmatpush1.xpose.msra.mxu0 0.0
    %1707 = vmatprep.subr.mxu0 0.0
    %1708 = vmatpush1.xpose.msra.mxu0 0.0
    %1709 = vmatprep.subr.mxu0 0.0
    %1710 = vmatpush1.xpose.msra.mxu0 0.0
    %1711 = vmatprep.subr.mxu0 0.0
    %1712 = vmatpush1.xpose.msra.mxu0 0.0
    %1713 = vmatprep.subr.mxu0 0.0
    %1714 = vmatpush1.xpose.msra.mxu0 0.0
    %1715 = vmatprep.subr.mxu0 0.0
    %1716 = vmatpush1.xpose.msra.mxu0 0.0
    %1717 = vmatprep.subr.mxu0 0.0
    %1718 = vmatpush1.xpose.msra.mxu0 0.0
    %1719 = vmatprep.subr.mxu0 0.0
    %1720 = vmatpush1.xpose.msra.mxu0 0.0
    %1721 = vmatprep.subr.mxu0 0.0
    %1722 = vmatpush1.xpose.msra.mxu0 0.0
    %1723 = vmatprep.subr.mxu0 0.0
    %1724 = vmatpush1.xpose.msra.mxu0 0.0
    %1725 = vmatprep.subr.mxu0 0.0
    %1726 = vmatpush1.xpose.msra.mxu0 0.0
    %1727 = vmatprep.subr.mxu0 0.0
    %1728 = vmatpush1.xpose.msra.mxu0 0.0
    %1729 = vmatprep.subr.mxu0 0.0
    %1730 = vmatpush1.xpose.msra.mxu0 0.0
    %1731 = vmatprep.subr.mxu0 0.0
    %1732 = vmatpush1.xpose.msra.mxu0 0.0
    %1733 = vmatprep.subr.mxu0 0.0
    %1734 = vmatpush1.xpose.msra.mxu0 0.0
    %1735 = vmatprep.subr.mxu0 0.0
    %1736 = vmatpush1.xpose.msra.mxu0 0.0
    %1737 = vmatprep.subr.mxu0 0.0
    %1738 = vmatpush1.xpose.msra.mxu0 0.0
    %1739 = vmatprep.subr.mxu0 0.0
    %1740 = vmatpush1.xpose.msra.mxu0 0.0
    %1741 = vmatprep.subr.mxu0 0.0
    %1742 = vmatpush1.xpose.msra.mxu0 0.0
    %1743 = vmatprep.subr.mxu0 0.0
    %1744 = vmatpush1.xpose.msra.mxu0 0.0
    %1745 = vmatprep.mubr.f32.mxu0 0.0
    %1746 = vmatmul.mubr.f32.gmra.mrb[0].mxu0 %v1677
    %v1747 = vpop.f32.mrb[0].mxu0
    %v1748 = vadd.f32 0.0, %v1747
    %v1749 = vpop.f32.mrb[0].mxu0
    %1750 = vdwg.mxu0
    %v1751 = vmul.f32 %v1670, 0.35355338
    %v1752 = vmul.f32 %v1748, 0.35355338
    %v1753 = vsel %vm354, %v1751, -inf
    %1754 = vmax.xlane.f32.xlu0 %v1753
    %v1755 = vpop.xlane.xlu0 %1754
    %v1756 = vsel %vm354, %v1752, -inf
    %1757 = vmax.xlane.f32.xlu0 %v1756
    %v1758 = vpop.xlane.xlu0 %1757
    %v1759 = vsub.f32 %v1751, %v1755
    %v1760 = vsub.f32 %v1752, %v1758
    %v1761 = vmul.f32 %v1759, 1.442695
    %v1762 = vpow.pop %v1761
    %v1763 = vmul.f32 %v1760, 1.442695
    %v1764 = vpow.pop %v1763
    %v1765 = vsel %vm354, %v1762, 0.0
    %1766 = vadd.xlane.f32.xlu0 %v1765
    %v1767 = vpop.xlane.xlu0 %1766
    %v1768 = vsel %vm354, %v1764, 0.0
    %1769 = vadd.xlane.f32.xlu0 %v1768
    %v1770 = vpop.xlane.xlu0 %1769
    %v1771 = vrcp.pop %v1767
    %v1772 = vrcp.pop %v1770
    %v1773 = vmul.f32 %v1762, %v1771
    %v1774 = vmul.f32 %v1764, %v1772
    %1775 = vrot.lane.b32.xlu0 %v293, 40
    %v1776 = vpop.permute.xlu0 %1775
    %v1779 = vsel %vm354, %v1773, 0
    %1781 = vmatprep.subr.mxu0 0.0
    %1782 = vmatpush1.msra.mxu0 %v1776
    %1783 = vmatprep.subr.mxu0 0.0
    %1784 = vmatpush1.msra.mxu0 0.0
    %1785 = vmatprep.subr.mxu0 0.0
    %1786 = vmatpush1.msra.mxu0 0.0
    %1787 = vmatprep.subr.mxu0 0.0
    %1788 = vmatpush1.msra.mxu0 0.0
    %1789 = vmatprep.subr.mxu0 0.0
    %1790 = vmatpush1.msra.mxu0 0.0
    %1791 = vmatprep.subr.mxu0 0.0
    %1792 = vmatpush1.msra.mxu0 0.0
    %1793 = vmatprep.subr.mxu0 0.0
    %1794 = vmatpush1.msra.mxu0 0.0
    %1795 = vmatprep.subr.mxu0 0.0
    %1796 = vmatpush1.msra.mxu0 0.0
    %1797 = vmatprep.subr.mxu0 0.0
    %1798 = vmatpush1.msra.mxu0 0.0
    %1799 = vmatprep.subr.mxu0 0.0
    %1800 = vmatpush1.msra.mxu0 0.0
    %1801 = vmatprep.subr.mxu0 0.0
    %1802 = vmatpush1.msra.mxu0 0.0
    %1803 = vmatprep.subr.mxu0 0.0
    %1804 = vmatpush1.msra.mxu0 0.0
    %1805 = vmatprep.subr.mxu0 0.0
    %1806 = vmatpush1.msra.mxu0 0.0
    %1807 = vmatprep.subr.mxu0 0.0
    %1808 = vmatpush1.msra.mxu0 0.0
    %1809 = vmatprep.subr.mxu0 0.0
    %1810 = vmatpush1.msra.mxu0 0.0
    %1811 = vmatprep.subr.mxu0 0.0
    %1812 = vmatpush1.msra.mxu0 0.0
    %1813 = vmatprep.subr.mxu0 0.0
    %1814 = vmatpush1.msra.mxu0 0.0
    %1815 = vmatprep.subr.mxu0 0.0
    %1816 = vmatpush1.msra.mxu0 0.0
    %1817 = vmatprep.subr.mxu0 0.0
    %1818 = vmatpush1.msra.mxu0 0.0
    %1819 = vmatprep.subr.mxu0 0.0
    %1820 = vmatpush1.msra.mxu0 0.0
    %1821 = vmatprep.subr.mxu0 0.0
    %1822 = vmatpush1.msra.mxu0 0.0
    %1823 = vmatprep.subr.mxu0 0.0
    %1824 = vmatpush1.msra.mxu0 0.0
    %1825 = vmatprep.subr.mxu0 0.0
    %1826 = vmatpush1.msra.mxu0 0.0
    %1827 = vmatprep.subr.mxu0 0.0
    %1828 = vmatpush1.msra.mxu0 0.0
    %1829 = vmatprep.subr.mxu0 0.0
    %1830 = vmatpush1.msra.mxu0 0.0
    %1831 = vmatprep.subr.mxu0 0.0
    %1832 = vmatpush1.msra.mxu0 0.0
    %1833 = vmatprep.subr.mxu0 0.0
    %1834 = vmatpush1.msra.mxu0 0.0
    %1835 = vmatprep.subr.mxu0 0.0
    %1836 = vmatpush1.msra.mxu0 0.0
    %1837 = vmatprep.subr.mxu0 0.0
    %1838 = vmatpush1.msra.mxu0 0.0
    %1839 = vmatprep.subr.mxu0 0.0
    %1840 = vmatpush1.msra.mxu0 0.0
    %1841 = vmatprep.subr.mxu0 0.0
    %1842 = vmatpush1.msra.mxu0 0.0
    %1843 = vmatprep.subr.mxu0 0.0
    %1844 = vmatpush1.msra.mxu0 0.0
    %1845 = vmatprep.mubr.f32.mxu0 0.0
    %1846 = vmatmul.mubr.f32.gmra.mrb[0].mxu0 %v1779
    %v1847 = vpop.f32.mrb[0].mxu0
    %v1848 = vadd.f32 0.0, %v1847
    %v1849 = vpop.f32.mrb[0].mxu0
    %1850 = vdwg.mxu0
    %1851 = vrot.lane.b32.xlu0 %v299, 40
    %v1852 = vpop.permute.xlu0 %1851
    %v1855 = vsel %vm354, %v1774, 0
    %1857 = vmatprep.subr.mxu0 0.0
    %1858 = vmatpush1.msra.mxu0 %v1852
    %1859 = vmatprep.subr.mxu0 0.0
    %1860 = vmatpush1.msra.mxu0 0.0
    %1861 = vmatprep.subr.mxu0 0.0
    %1862 = vmatpush1.msra.mxu0 0.0
    %1863 = vmatprep.subr.mxu0 0.0
    %1864 = vmatpush1.msra.mxu0 0.0
    %1865 = vmatprep.subr.mxu0 0.0
    %1866 = vmatpush1.msra.mxu0 0.0
    %1867 = vmatprep.subr.mxu0 0.0
    %1868 = vmatpush1.msra.mxu0 0.0
    %1869 = vmatprep.subr.mxu0 0.0
    %1870 = vmatpush1.msra.mxu0 0.0
    %1871 = vmatprep.subr.mxu0 0.0
    %1872 = vmatpush1.msra.mxu0 0.0
    %1873 = vmatprep.subr.mxu0 0.0
    %1874 = vmatpush1.msra.mxu0 0.0
    %1875 = vmatprep.subr.mxu0 0.0
    %1876 = vmatpush1.msra.mxu0 0.0
    %1877 = vmatprep.subr.mxu0 0.0
    %1878 = vmatpush1.msra.mxu0 0.0
    %1879 = vmatprep.subr.mxu0 0.0
    %1880 = vmatpush1.msra.mxu0 0.0
    %1881 = vmatprep.subr.mxu0 0.0
    %1882 = vmatpush1.msra.mxu0 0.0
    %1883 = vmatprep.subr.mxu0 0.0
    %1884 = vmatpush1.msra.mxu0 0.0
    %1885 = vmatprep.subr.mxu0 0.0
    %1886 = vmatpush1.msra.mxu0 0.0
    %1887 = vmatprep.subr.mxu0 0.0
    %1888 = vmatpush1.msra.mxu0 0.0
    %1889 = vmatprep.subr.mxu0 0.0
    %1890 = vmatpush1.msra.mxu0 0.0
    %1891 = vmatprep.subr.mxu0 0.0
    %1892 = vmatpush1.msra.mxu0 0.0
    %1893 = vmatprep.subr.mxu0 0.0
    %1894 = vmatpush1.msra.mxu0 0.0
    %1895 = vmatprep.subr.mxu0 0.0
    %1896 = vmatpush1.msra.mxu0 0.0
    %1897 = vmatprep.subr.mxu0 0.0
    %1898 = vmatpush1.msra.mxu0 0.0
    %1899 = vmatprep.subr.mxu0 0.0
    %1900 = vmatpush1.msra.mxu0 0.0
    %1901 = vmatprep.subr.mxu0 0.0
    %1902 = vmatpush1.msra.mxu0 0.0
    %1903 = vmatprep.subr.mxu0 0.0
    %1904 = vmatpush1.msra.mxu0 0.0
    %1905 = vmatprep.subr.mxu0 0.0
    %1906 = vmatpush1.msra.mxu0 0.0
    %1907 = vmatprep.subr.mxu0 0.0
    %1908 = vmatpush1.msra.mxu0 0.0
    %1909 = vmatprep.subr.mxu0 0.0
    %1910 = vmatpush1.msra.mxu0 0.0
    %1911 = vmatprep.subr.mxu0 0.0
    %1912 = vmatpush1.msra.mxu0 0.0
    %1913 = vmatprep.subr.mxu0 0.0
    %1914 = vmatpush1.msra.mxu0 0.0
    %1915 = vmatprep.subr.mxu0 0.0
    %1916 = vmatpush1.msra.mxu0 0.0
    %1917 = vmatprep.subr.mxu0 0.0
    %1918 = vmatpush1.msra.mxu0 0.0
    %1919 = vmatprep.subr.mxu0 0.0
    %1920 = vmatpush1.msra.mxu0 0.0
    %1921 = vmatprep.mubr.f32.mxu0 0.0
    %1922 = vmatmul.mubr.f32.gmra.mrb[0].mxu0 %v1855
    %v1923 = vpop.f32.mrb[0].mxu0
    %v1924 = vadd.f32 0.0, %v1923
    %v1925 = vpop.f32.mrb[0].mxu0
    %1926 = vdwg.mxu0
    %v1928 = vsel %vm354, %v1848, 0
    %v1931 = vsel %vm354, %v1924, 0
    %1933 = vmatprep.subr.mxu0 0.0
    %1934 = vmatpush1.msra.mxu0 %v350
    %1935 = vmatprep.subr.mxu0 0.0
    %1936 = vmatpush1.msra.mxu0 0.0
    %1937 = vmatprep.subr.mxu0 0.0
    %1938 = vmatpush1.msra.mxu0 0.0
    %1939 = vmatprep.subr.mxu0 0.0
    %1940 = vmatpush1.msra.mxu0 0.0
    %1941 = vmatprep.subr.mxu0 0.0
    %1942 = vmatpush1.msra.mxu0 0.0
    %1943 = vmatprep.subr.mxu0 0.0
    %1944 = vmatpush1.msra.mxu0 0.0
    %1945 = vmatprep.subr.mxu0 0.0
    %1946 = vmatpush1.msra.mxu0 0.0
    %1947 = vmatprep.subr.mxu0 0.0
    %1948 = vmatpush1.msra.mxu0 0.0
    %1949 = vmatprep.subr.mxu0 0.0
    %1950 = vmatpush1.msra.mxu0 0.0
    %1951 = vmatprep.subr.mxu0 0.0
    %1952 = vmatpush1.msra.mxu0 0.0
    %1953 = vmatprep.subr.mxu0 0.0
    %1954 = vmatpush1.msra.mxu0 0.0
    %1955 = vmatprep.subr.mxu0 0.0
    %1956 = vmatpush1.msra.mxu0 0.0
    %1957 = vmatprep.subr.mxu0 0.0
    %1958 = vmatpush1.msra.mxu0 0.0
    %1959 = vmatprep.subr.mxu0 0.0
    %1960 = vmatpush1.msra.mxu0 0.0
    %1961 = vmatprep.subr.mxu0 0.0
    %1962 = vmatpush1.msra.mxu0 0.0
    %1963 = vmatprep.subr.mxu0 0.0
    %1964 = vmatpush1.msra.mxu0 0.0
    %1965 = vmatprep.subr.mxu0 0.0
    %1966 = vmatpush1.msra.mxu0 0.0
    %1967 = vmatprep.subr.mxu0 0.0
    %1968 = vmatpush1.msra.mxu0 0.0
    %1969 = vmatprep.subr.mxu0 0.0
    %1970 = vmatpush1.msra.mxu0 0.0
    %1971 = vmatprep.subr.mxu0 0.0
    %1972 = vmatpush1.msra.mxu0 0.0
    %1973 = vmatprep.subr.mxu0 0.0
    %1974 = vmatpush1.msra.mxu0 0.0
    %1975 = vmatprep.subr.mxu0 0.0
    %1976 = vmatpush1.msra.mxu0 0.0
    %1977 = vmatprep.subr.mxu0 0.0
    %1978 = vmatpush1.msra.mxu0 0.0
    %1979 = vmatprep.subr.mxu0 0.0
    %1980 = vmatpush1.msra.mxu0 0.0
    %1981 = vmatprep.subr.mxu0 0.0
    %1982 = vmatpush1.msra.mxu0 0.0
    %1983 = vmatprep.subr.mxu0 0.0
    %1984 = vmatpush1.msra.mxu0 0.0
    %1985 = vmatprep.subr.mxu0 0.0
    %1986 = vmatpush1.msra.mxu0 0.0
    %1987 = vmatprep.subr.mxu0 0.0
    %1988 = vmatpush1.msra.mxu0 0.0
    %1989 = vmatprep.subr.mxu0 0.0
    %1990 = vmatpush1.msra.mxu0 0.0
    %1991 = vmatprep.subr.mxu0 0.0
    %1992 = vmatpush1.msra.mxu0 0.0
    %1993 = vmatprep.subr.mxu0 0.0
    %1994 = vmatpush1.msra.mxu0 0.0
    %1995 = vmatprep.subr.mxu0 0.0
    %1996 = vmatpush1.msra.mxu0 0.0
    %1997 = vmatprep.mubr.f32.mxu0 0.0
    %1998 = vmatmul.mubr.f32.gmra.mrb[0].mxu0 %v1928
    %v1999 = vpop.f32.mrb[0].mxu0
    %v2000 = vadd.f32 0.0, %v1999
    %v2001 = vpop.f32.mrb[0].mxu0
    %2002 = vmatprep.mubr.f32.mxu0 0.0
    %2003 = vmatmul.mubr.f32.gmra.mrb[0].mxu0 %v1931
    %v2004 = vpop.f32.mrb[0].mxu0
    %v2005 = vadd.f32 0.0, %v2004
    %v2006 = vpop.f32.mrb[0].mxu0
    %2007 = vdwg.mxu0
    %v2008 = vadd.f32 %v1593, %v2000
    %v2009 = vadd.f32 %v1594, %v2005
    %v2010 = vld [vmem:[%s5] sm:$0x1]
    %v2012 = vlaneseq
    %v2013 = vshrl.u32 %v2012, 7
    %v2014 = vsub.s32 0, %v2013
    %v2015 = vrot.slane %v2010, %v2014
    %v2017 = vadd.f32 %v2008, %v2015
    %v2018 = vadd.f32 %v2009, %v2015
    %v2019 = vadd.f32 %v167, %v2017
    %v2020 = vadd.f32 %v168, %v2018
    %v2021 = vld [vmem:[%s7] sm:$0x1]
    %v2022 = vmul.f32 %v2019, %v2019
    %v2023 = vmul.f32 %v2020, %v2020
    %v2024 = vsel %vm176, %v2022, 0.0
    %2025 = vadd.xlane.f32.xlu0 %v2024
    %v2026 = vpop.xlane.xlu0 %2025
    %v2027 = vsel %vm176, %v2023, 0.0
    %2028 = vadd.xlane.f32.xlu0 %v2027
    %v2029 = vpop.xlane.xlu0 %2028
    %v2030 = vmul.f32 %v2026, %v183
    %v2031 = vmul.f32 %v2029, %v183
    %v2032 = vadd.f32 %v2030, 1.1920929e-07
    %v2033 = vadd.f32 %v2031, 1.1920929e-07
    %v2034 = vrsqrt.pop %v2032
    %v2035 = vrsqrt.pop %v2033
    %v2036 = vmul.f32 %v2019, %v2034
    %v2037 = vmul.f32 %v2020, %v2035
    %v2039 = vlaneseq
    %v2040 = vshrl.u32 %v2039, 7
    %v2041 = vsub.s32 0, %v2040
    %v2042 = vrot.slane %v2021, %v2041
    %v2044 = vmul.f32 %v2036, %v2042
    %v2045 = vmul.f32 %v2037, %v2042
    %v2046 = vld [vmem:[%s8] sm:$0xff]
    %v2047 = vld [vmem:[%s8 + $0x8] sm:$0xff]
    %v2048 = vld [vmem:[%s8 + $0x10] sm:$0xff]
    %v2049 = vld [vmem:[%s8 + $0x18] sm:$0xff]
    %v2050 = vld [vmem:[%s9] sm:$0x1]
    %v2052 = vlaneseq
    %v2053 = vshrl.u32 %v2052, 7
    %v2054 = vsub.s32 0, %v2053
    %v2055 = vrot.slane %v2050, %v2054
    %v2058 = vsel %vm176, %v2044, 0
    %v2061 = vsel %vm176, %v2045, 0
    %2063 = vmatprep.subr.mxu0 0.0
    %2064 = vmatpush1.msra.mxu0 %v2046
    %2065 = vmatprep.subr.mxu0 0.0
    %2066 = vmatpush1.msra.mxu0 %v2047
    %2067 = vmatprep.subr.mxu0 0.0
    %2068 = vmatpush1.msra.mxu0 %v2048
    %2069 = vmatprep.subr.mxu0 0.0
    %2070 = vmatpush1.msra.mxu0 %v2049
    %2071 = vmatprep.subr.mxu0 0.0
    %2072 = vmatpush1.msra.mxu0 0.0
    %2073 = vmatprep.subr.mxu0 0.0
    %2074 = vmatpush1.msra.mxu0 0.0
    %2075 = vmatprep.subr.mxu0 0.0
    %2076 = vmatpush1.msra.mxu0 0.0
    %2077 = vmatprep.subr.mxu0 0.0
    %2078 = vmatpush1.msra.mxu0 0.0
    %2079 = vmatprep.subr.mxu0 0.0
    %2080 = vmatpush1.msra.mxu0 0.0
    %2081 = vmatprep.subr.mxu0 0.0
    %2082 = vmatpush1.msra.mxu0 0.0
    %2083 = vmatprep.subr.mxu0 0.0
    %2084 = vmatpush1.msra.mxu0 0.0
    %2085 = vmatprep.subr.mxu0 0.0
    %2086 = vmatpush1.msra.mxu0 0.0
    %2087 = vmatprep.subr.mxu0 0.0
    %2088 = vmatpush1.msra.mxu0 0.0
    %2089 = vmatprep.subr.mxu0 0.0
    %2090 = vmatpush1.msra.mxu0 0.0
    %2091 = vmatprep.subr.mxu0 0.0
    %2092 = vmatpush1.msra.mxu0 0.0
    %2093 = vmatprep.subr.mxu0 0.0
    %2094 = vmatpush1.msra.mxu0 0.0
    %2095 = vmatprep.subr.mxu0 0.0
    %2096 = vmatpush1.msra.mxu0 0.0
    %2097 = vmatprep.subr.mxu0 0.0
    %2098 = vmatpush1.msra.mxu0 0.0
    %2099 = vmatprep.subr.mxu0 0.0
    %2100 = vmatpush1.msra.mxu0 0.0
    %2101 = vmatprep.subr.mxu0 0.0
    %2102 = vmatpush1.msra.mxu0 0.0
    %2103 = vmatprep.subr.mxu0 0.0
    %2104 = vmatpush1.msra.mxu0 0.0
    %2105 = vmatprep.subr.mxu0 0.0
    %2106 = vmatpush1.msra.mxu0 0.0
    %2107 = vmatprep.subr.mxu0 0.0
    %2108 = vmatpush1.msra.mxu0 0.0
    %2109 = vmatprep.subr.mxu0 0.0
    %2110 = vmatpush1.msra.mxu0 0.0
    %2111 = vmatprep.subr.mxu0 0.0
    %2112 = vmatpush1.msra.mxu0 0.0
    %2113 = vmatprep.subr.mxu0 0.0
    %2114 = vmatpush1.msra.mxu0 0.0
    %2115 = vmatprep.subr.mxu0 0.0
    %2116 = vmatpush1.msra.mxu0 0.0
    %2117 = vmatprep.subr.mxu0 0.0
    %2118 = vmatpush1.msra.mxu0 0.0
    %2119 = vmatprep.subr.mxu0 0.0
    %2120 = vmatpush1.msra.mxu0 0.0
    %2121 = vmatprep.subr.mxu0 0.0
    %2122 = vmatpush1.msra.mxu0 0.0
    %2123 = vmatprep.subr.mxu0 0.0
    %2124 = vmatpush1.msra.mxu0 0.0
    %2125 = vmatprep.subr.mxu0 0.0
    %2126 = vmatpush1.msra.mxu0 0.0
    %2127 = vmatprep.mubr.f32.mxu0 0.0
    %2128 = vmatmul.mubr.f32.gmra.mrb[0].mxu0 %v2058
    %v2129 = vpop.f32.mrb[0].mxu0
    %v2130 = vadd.f32 %v2055, %v2129
    %v2131 = vpop.f32.mrb[0].mxu0
    %2132 = vmatprep.mubr.f32.mxu0 0.0
    %2133 = vmatmul.mubr.f32.gmra.mrb[0].mxu0 %v2061
    %v2134 = vpop.f32.mrb[0].mxu0
    %v2135 = vadd.f32 %v2055, %v2134
    %v2136 = vpop.f32.mrb[0].mxu0
    %2137 = vdwg.mxu0
    %v2138 = vld [vmem:[%s10] sm:$0xff]
    %v2139 = vld [vmem:[%s10 + $0x8] sm:$0xff]
    %v2140 = vld [vmem:[%s10 + $0x10] sm:$0xff]
    %v2141 = vld [vmem:[%s10 + $0x18] sm:$0xff]
    %v2142 = vld [vmem:[%s10 + $0x20] sm:$0xff]
    %v2143 = vld [vmem:[%s10 + $0x28] sm:$0xff]
    %v2144 = vld [vmem:[%s10 + $0x30] sm:$0xff]
    %v2145 = vld [vmem:[%s10 + $0x38] sm:$0xff]
    %vm2146 = vcmask 523264
    %v2148 = vsel %vm2146, %v2130, 0
    %v2151 = vsel %vm2146, %v2135, 0
    %2153 = vmatprep.subr.mxu0 0.0
    %2154 = vmatpush1.msra.mxu0 %v2138
    %2155 = vmatprep.subr.mxu0 0.0
    %2156 = vmatpush1.msra.mxu0 %v2139
    %2157 = vmatprep.subr.mxu0 0.0
    %2158 = vmatpush1.msra.mxu0 %v2140
    %2159 = vmatprep.subr.mxu0 0.0
    %2160 = vmatpush1.msra.mxu0 %v2141
    %2161 = vmatprep.subr.mxu0 0.0
    %2162 = vmatpush1.msra.mxu0 %v2142
    %2163 = vmatprep.subr.mxu0 0.0
    %2164 = vmatpush1.msra.mxu0 %v2143
    %2165 = vmatprep.subr.mxu0 0.0
    %2166 = vmatpush1.msra.mxu0 %v2144
    %2167 = vmatprep.subr.mxu0 0.0
    %2168 = vmatpush1.msra.mxu0 %v2145
    %2169 = vmatprep.subr.mxu0 0.0
    %2170 = vmatpush1.msra.mxu0 0.0
    %2171 = vmatprep.subr.mxu0 0.0
    %2172 = vmatpush1.msra.mxu0 0.0
    %2173 = vmatprep.subr.mxu0 0.0
    %2174 = vmatpush1.msra.mxu0 0.0
    %2175 = vmatprep.subr.mxu0 0.0
    %2176 = vmatpush1.msra.mxu0 0.0
    %2177 = vmatprep.subr.mxu0 0.0
    %2178 = vmatpush1.msra.mxu0 0.0
    %2179 = vmatprep.subr.mxu0 0.0
    %2180 = vmatpush1.msra.mxu0 0.0
    %2181 = vmatprep.subr.mxu0 0.0
    %2182 = vmatpush1.msra.mxu0 0.0
    %2183 = vmatprep.subr.mxu0 0.0
    %2184 = vmatpush1.msra.mxu0 0.0
    %2185 = vmatprep.subr.mxu0 0.0
    %2186 = vmatpush1.msra.mxu0 0.0
    %2187 = vmatprep.subr.mxu0 0.0
    %2188 = vmatpush1.msra.mxu0 0.0
    %2189 = vmatprep.subr.mxu0 0.0
    %2190 = vmatpush1.msra.mxu0 0.0
    %2191 = vmatprep.subr.mxu0 0.0
    %2192 = vmatpush1.msra.mxu0 0.0
    %2193 = vmatprep.subr.mxu0 0.0
    %2194 = vmatpush1.msra.mxu0 0.0
    %2195 = vmatprep.subr.mxu0 0.0
    %2196 = vmatpush1.msra.mxu0 0.0
    %2197 = vmatprep.subr.mxu0 0.0
    %2198 = vmatpush1.msra.mxu0 0.0
    %2199 = vmatprep.subr.mxu0 0.0
    %2200 = vmatpush1.msra.mxu0 0.0
    %2201 = vmatprep.subr.mxu0 0.0
    %2202 = vmatpush1.msra.mxu0 0.0
    %2203 = vmatprep.subr.mxu0 0.0
    %2204 = vmatpush1.msra.mxu0 0.0
    %2205 = vmatprep.subr.mxu0 0.0
    %2206 = vmatpush1.msra.mxu0 0.0
    %2207 = vmatprep.subr.mxu0 0.0
    %2208 = vmatpush1.msra.mxu0 0.0
    %2209 = vmatprep.subr.mxu0 0.0
    %2210 = vmatpush1.msra.mxu0 0.0
    %2211 = vmatprep.subr.mxu0 0.0
    %2212 = vmatpush1.msra.mxu0 0.0
    %2213 = vmatprep.subr.mxu0 0.0
    %2214 = vmatpush1.msra.mxu0 0.0
    %2215 = vmatprep.subr.mxu0 0.0
    %2216 = vmatpush1.msra.mxu0 0.0
    %2217 = vmatprep.mubr.f32.mxu0 0.0
    %2218 = vmatmul.mubr.f32.gmra.mrb[0].mxu0 %v2148
    %v2219 = vpop.f32.mrb[0].mxu0
    %v2220 = vadd.f32 0.0, %v2219
    %v2221 = vpop.f32.mrb[0].mxu0
    %2222 = vmatprep.mubr.f32.mxu0 0.0
    %2223 = vmatmul.mubr.f32.gmra.mrb[0].mxu0 %v2151
    %v2224 = vpop.f32.mrb[0].mxu0
    %v2225 = vadd.f32 0.0, %v2224
    %v2226 = vpop.f32.mrb[0].mxu0
    %2227 = vdwg.mxu0
    %v2228 = vsub.f32 0.0, %v2220
    %v2229 = vsub.f32 0.0, %v2225
    %v2230 = vmul.f32 %v2228, 1.442695
    %v2231 = vpow.pop %v2230
    %v2232 = vmul.f32 %v2229, 1.442695
    %v2233 = vpow.pop %v2232
    %v2234 = vadd.f32 %v2231, 1.0
    %v2235 = vadd.f32 %v2233, 1.0
    %v2236 = vrcp.pop %v2234
    %v2237 = vrcp.pop %v2235
    %v2238 = vmul.f32 %v2220, %v2236
    %v2239 = vmul.f32 %v2225, %v2237
    %2242 = vrot.lane.b32.xlu0 %v2238, 64
    %v2243 = vpop.permute.xlu0 %2242
    %2244 = vrot.lane.b32.xlu0 %v2239, 64
    %v2245 = vpop.permute.xlu0 %2244
    %v2248 = vmul.f32 %v2220, %v2243
    %v2249 = vmul.f32 %v2225, %v2245
    %v2250 = vld [vmem:[%s11] sm:$0xff]
    %v2251 = vld [vmem:[%s11 + $0x8] sm:$0xff]
    %v2252 = vld [vmem:[%s11 + $0x10] sm:$0xff]
    %v2253 = vld [vmem:[%s11 + $0x18] sm:$0xff]
    %v2254 = vld [vmem:[%s11 + $0x20] sm:$0xff]
    %v2255 = vld [vmem:[%s11 + $0x28] sm:$0xff]
    %v2256 = vld [vmem:[%s11 + $0x30] sm:$0xff]
    %v2257 = vld [vmem:[%s11 + $0x38] sm:$0xff]
    %v2258 = vld [vmem:[%s12] sm:$0x1]
    %v2260 = vlaneseq
    %v2261 = vshrl.u32 %v2260, 7
    %v2262 = vsub.s32 0, %v2261
    %v2263 = vrot.slane %v2258, %v2262
    %v2266 = vsel %vm2146, %v2248, 0
    %v2269 = vsel %vm2146, %v2249, 0
    %2271 = vmatprep.subr.mxu0 0.0
    %2272 = vmatpush1.msra.mxu0 %v2250
    %2273 = vmatprep.subr.mxu0 0.0
    %2274 = vmatpush1.msra.mxu0 %v2251
    %2275 = vmatprep.subr.mxu0 0.0
    %2276 = vmatpush1.msra.mxu0 %v2252
    %2277 = vmatprep.subr.mxu0 0.0
    %2278 = vmatpush1.msra.mxu0 %v2253
    %2279 = vmatprep.subr.mxu0 0.0
    %2280 = vmatpush1.msra.mxu0 %v2254
    %2281 = vmatprep.subr.mxu0 0.0
    %2282 = vmatpush1.msra.mxu0 %v2255
    %2283 = vmatprep.subr.mxu0 0.0
    %2284 = vmatpush1.msra.mxu0 %v2256
    %2285 = vmatprep.subr.mxu0 0.0
    %2286 = vmatpush1.msra.mxu0 %v2257
    %2287 = vmatprep.subr.mxu0 0.0
    %2288 = vmatpush1.msra.mxu0 0.0
    %2289 = vmatprep.subr.mxu0 0.0
    %2290 = vmatpush1.msra.mxu0 0.0
    %2291 = vmatprep.subr.mxu0 0.0
    %2292 = vmatpush1.msra.mxu0 0.0
    %2293 = vmatprep.subr.mxu0 0.0
    %2294 = vmatpush1.msra.mxu0 0.0
    %2295 = vmatprep.subr.mxu0 0.0
    %2296 = vmatpush1.msra.mxu0 0.0
    %2297 = vmatprep.subr.mxu0 0.0
    %2298 = vmatpush1.msra.mxu0 0.0
    %2299 = vmatprep.subr.mxu0 0.0
    %2300 = vmatpush1.msra.mxu0 0.0
    %2301 = vmatprep.subr.mxu0 0.0
    %2302 = vmatpush1.msra.mxu0 0.0
    %2303 = vmatprep.subr.mxu0 0.0
    %2304 = vmatpush1.msra.mxu0 0.0
    %2305 = vmatprep.subr.mxu0 0.0
    %2306 = vmatpush1.msra.mxu0 0.0
    %2307 = vmatprep.subr.mxu0 0.0
    %2308 = vmatpush1.msra.mxu0 0.0
    %2309 = vmatprep.subr.mxu0 0.0
    %2310 = vmatpush1.msra.mxu0 0.0
    %2311 = vmatprep.subr.mxu0 0.0
    %2312 = vmatpush1.msra.mxu0 0.0
    %2313 = vmatprep.subr.mxu0 0.0
    %2314 = vmatpush1.msra.mxu0 0.0
    %2315 = vmatprep.subr.mxu0 0.0
    %2316 = vmatpush1.msra.mxu0 0.0
    %2317 = vmatprep.subr.mxu0 0.0
    %2318 = vmatpush1.msra.mxu0 0.0
    %2319 = vmatprep.subr.mxu0 0.0
    %2320 = vmatpush1.msra.mxu0 0.0
    %2321 = vmatprep.subr.mxu0 0.0
    %2322 = vmatpush1.msra.mxu0 0.0
    %2323 = vmatprep.subr.mxu0 0.0
    %2324 = vmatpush1.msra.mxu0 0.0
    %2325 = vmatprep.subr.mxu0 0.0
    %2326 = vmatpush1.msra.mxu0 0.0
    %2327 = vmatprep.subr.mxu0 0.0
    %2328 = vmatpush1.msra.mxu0 0.0
    %2329 = vmatprep.subr.mxu0 0.0
    %2330 = vmatpush1.msra.mxu0 0.0
    %2331 = vmatprep.subr.mxu0 0.0
    %2332 = vmatpush1.msra.mxu0 0.0
    %2333 = vmatprep.subr.mxu0 0.0
    %2334 = vmatpush1.msra.mxu0 0.0
    %2335 = vmatprep.mubr.f32.mxu0 0.0
    %2336 = vmatmul.mubr.f32.gmra.mrb[0].mxu0 %v2266
    %v2337 = vpop.f32.mrb[0].mxu0
    %v2338 = vadd.f32 %v2263, %v2337
    %v2339 = vpop.f32.mrb[0].mxu0
    %2340 = vmatprep.mubr.f32.mxu0 0.0
    %2341 = vmatmul.mubr.f32.gmra.mrb[0].mxu0 %v2269
    %v2342 = vpop.f32.mrb[0].mxu0
    %v2343 = vadd.f32 %v2263, %v2342
    %v2344 = vpop.f32.mrb[0].mxu0
    %2345 = vdwg.mxu0
    %v2346 = vadd.f32 %v2044, %v2338
    %v2347 = vadd.f32 %v2045, %v2343
    %s2348 = scalar_lea.vmem %s6, 1
    %v2349 = vld [vmem:[%s2348] sm:$0x1]
    %v2350 = vmul.f32 %v2346, %v2346
    %v2351 = vmul.f32 %v2347, %v2347
    %v2352 = vsel %vm176, %v2350, 0.0
    %2353 = vadd.xlane.f32.xlu0 %v2352
    %v2354 = vpop.xlane.xlu0 %2353
    %v2355 = vsel %vm176, %v2351, 0.0
    %2356 = vadd.xlane.f32.xlu0 %v2355
    %v2357 = vpop.xlane.xlu0 %2356
    %v2358 = vmul.f32 %v2354, %v183
    %v2359 = vmul.f32 %v2357, %v183
    %v2360 = vadd.f32 %v2358, 1.1920929e-07
    %v2361 = vadd.f32 %v2359, 1.1920929e-07
    %v2362 = vrsqrt.pop %v2360
    %v2363 = vrsqrt.pop %v2361
    %v2364 = vmul.f32 %v2346, %v2362
    %v2365 = vmul.f32 %v2347, %v2363
    %v2367 = vlaneseq
    %v2368 = vshrl.u32 %v2367, 7
    %v2369 = vsub.s32 0, %v2368
    %v2370 = vrot.slane %v2349, %v2369
    %v2372 = vmul.f32 %v2364, %v2370
    %v2373 = vmul.f32 %v2365, %v2370
    %s2374 = scalar_lea.vmem %s2, 64
    %v2375 = vld [vmem:[%s2374] sm:$0xff]
    %v2376 = vld [vmem:[%s2374 + $0x8] sm:$0xff]
    %v2377 = vld [vmem:[%s2374 + $0x10] sm:$0xff]
    %v2378 = vld [vmem:[%s2374 + $0x18] sm:$0xff]
    %v2379 = vld [vmem:[%s2374 + $0x20] sm:$0xff]
    %v2380 = vld [vmem:[%s2374 + $0x28] sm:$0xff]
    %v2381 = vld [vmem:[%s2374 + $0x30] sm:$0xff]
    %v2382 = vld [vmem:[%s2374 + $0x38] sm:$0xff]
    %s2383 = scalar_lea.vmem %s3, 2
    %v2384 = vld [vmem:[%s2383] sm:$0x3]
    %v2386 = vlaneseq
    %v2387 = vshrl.u32 %v2386, 7
    %v2388 = vsub.s32 0, %v2387
    %v2389 = vrot.slane %v2384, %v2388
    %v2390 = vlaneseq
    %v2391 = vshrl.u32 %v2390, 7
    %v2392 = vsub.s32 1, %v2391
    %v2393 = vrot.slane %v2384, %v2392
    %v2397 = vsel %vm176, %v2372, 0
    %v2400 = vsel %vm176, %v2373, 0
    %2402 = vmatprep.subr.mxu0 %v2376
    %2403 = vmatpush1.msra.mxu0 %v2375
    %2404 = vmatprep.subr.mxu0 %v2378
    %2405 = vmatpush1.msra.mxu0 %v2377
    %2406 = vmatprep.subr.mxu0 %v2380
    %2407 = vmatpush1.msra.mxu0 %v2379
    %2408 = vmatprep.subr.mxu0 %v2382
    %2409 = vmatpush1.msra.mxu0 %v2381
    %2410 = vmatprep.subr.mxu0 0.0
    %2411 = vmatpush1.msra.mxu0 0.0
    %2412 = vmatprep.subr.mxu0 0.0
    %2413 = vmatpush1.msra.mxu0 0.0
    %2414 = vmatprep.subr.mxu0 0.0
    %2415 = vmatpush1.msra.mxu0 0.0
    %2416 = vmatprep.subr.mxu0 0.0
    %2417 = vmatpush1.msra.mxu0 0.0
    %2418 = vmatprep.subr.mxu0 0.0
    %2419 = vmatpush1.msra.mxu0 0.0
    %2420 = vmatprep.subr.mxu0 0.0
    %2421 = vmatpush1.msra.mxu0 0.0
    %2422 = vmatprep.subr.mxu0 0.0
    %2423 = vmatpush1.msra.mxu0 0.0
    %2424 = vmatprep.subr.mxu0 0.0
    %2425 = vmatpush1.msra.mxu0 0.0
    %2426 = vmatprep.subr.mxu0 0.0
    %2427 = vmatpush1.msra.mxu0 0.0
    %2428 = vmatprep.subr.mxu0 0.0
    %2429 = vmatpush1.msra.mxu0 0.0
    %2430 = vmatprep.subr.mxu0 0.0
    %2431 = vmatpush1.msra.mxu0 0.0
    %2432 = vmatprep.subr.mxu0 0.0
    %2433 = vmatpush1.msra.mxu0 0.0
    %2434 = vmatprep.subr.mxu0 0.0
    %2435 = vmatpush1.msra.mxu0 0.0
    %2436 = vmatprep.subr.mxu0 0.0
    %2437 = vmatpush1.msra.mxu0 0.0
    %2438 = vmatprep.subr.mxu0 0.0
    %2439 = vmatpush1.msra.mxu0 0.0
    %2440 = vmatprep.subr.mxu0 0.0
    %2441 = vmatpush1.msra.mxu0 0.0
    %2442 = vmatprep.subr.mxu0 0.0
    %2443 = vmatpush1.msra.mxu0 0.0
    %2444 = vmatprep.subr.mxu0 0.0
    %2445 = vmatpush1.msra.mxu0 0.0
    %2446 = vmatprep.subr.mxu0 0.0
    %2447 = vmatpush1.msra.mxu0 0.0
    %2448 = vmatprep.subr.mxu0 0.0
    %2449 = vmatpush1.msra.mxu0 0.0
    %2450 = vmatprep.subr.mxu0 0.0
    %2451 = vmatpush1.msra.mxu0 0.0
    %2452 = vmatprep.subr.mxu0 0.0
    %2453 = vmatpush1.msra.mxu0 0.0
    %2454 = vmatprep.subr.mxu0 0.0
    %2455 = vmatpush1.msra.mxu0 0.0
    %2456 = vmatprep.subr.mxu0 0.0
    %2457 = vmatpush1.msra.mxu0 0.0
    %2458 = vmatprep.subr.mxu0 0.0
    %2459 = vmatpush1.msra.mxu0 0.0
    %2460 = vmatprep.subr.mxu0 0.0
    %2461 = vmatpush1.msra.mxu0 0.0
    %2462 = vmatprep.subr.mxu0 0.0
    %2463 = vmatpush1.msra.mxu0 0.0
    %2464 = vmatprep.subr.mxu0 0.0
    %2465 = vmatpush1.msra.mxu0 0.0
    %2466 = vmatprep.mubr.f32.mxu0 0.0
    %2467 = vmatmul.mubr.f32.gmra.mrb[0].mxu0 %v2397
    %v2468 = vpop.f32.mrb[0].mxu0
    %v2469 = vadd.f32 %v2389, %v2468
    %v2470 = vpop.f32.mrb[0].mxu0
    %v2471 = vadd.f32 %v2393, %v2470
    %2472 = vmatprep.mubr.f32.mxu0 0.0
    %2473 = vmatmul.mubr.f32.gmra.mrb[0].mxu0 %v2400
    %v2474 = vpop.f32.mrb[0].mxu0
    %v2475 = vadd.f32 %v2389, %v2474
    %v2476 = vpop.f32.mrb[0].mxu0
    %v2477 = vadd.f32 %v2393, %v2476
    %2478 = vdwg.mxu0
    %v2479 = vmul.f32 %v2469, %v169
    %v2480 = vmul.f32 %v2475, %v170
    %v2481 = vmul.f32 %v2469, %v308
    %v2482 = vmul.f32 %v2475, %v310
    %2485 = vrot.lane.b32.xlu0 %v2481, 32
    %v2486 = vpop.permute.xlu0 %2485
    %2487 = vrot.lane.b32.xlu0 %v2482, 32
    %v2488 = vpop.permute.xlu0 %2487
    %v2491 = vadd.f32 %v2479, %v2486
    %v2492 = vadd.f32 %v2480, %v2488
    %v2493 = vmul.f32 %v2469, %v328
    %v2494 = vmul.f32 %v2475, %v330
    %v2495 = vmul.f32 %v2471, %v171
    %v2496 = vmul.f32 %v2477, %v172
    %2499 = vrot.lane.b32.xlu0 %v2495, 32
    %v2500 = vpop.permute.xlu0 %2499
    %2501 = vrot.lane.b32.xlu0 %v2496, 32
    %v2502 = vpop.permute.xlu0 %2501
    %v2505 = vadd.f32 %v2493, %v2500
    %v2506 = vadd.f32 %v2494, %v2502
    %s2507 = scalar_lea.vmem %s4, 32
    %v2508 = vld [vmem:[%s2507] sm:$0xff]
    %v2509 = vld [vmem:[%s2507 + $0x8] sm:$0xff]
    %v2510 = vld [vmem:[%s2507 + $0x10] sm:$0xff]
    %v2511 = vld [vmem:[%s2507 + $0x18] sm:$0xff]
    %2513 = vrot.lane.b32.xlu0 %v2505, 96
    %v2514 = vpop.permute.xlu0 %2513
    %v2516 = vsel %vm354, %v2491, 0
    %v2518 = vsel %vm354, %v2514, 0
    %2520 = vmatprep.subr.mxu0 0.0
    %2521 = vmatpush1.xpose.msra.mxu0 %v2518
    %2522 = vmatprep.subr.mxu0 0.0
    %2523 = vmatpush1.xpose.msra.mxu0 0.0
    %2524 = vmatprep.subr.mxu0 0.0
    %2525 = vmatpush1.xpose.msra.mxu0 0.0
    %2526 = vmatprep.subr.mxu0 0.0
    %2527 = vmatpush1.xpose.msra.mxu0 0.0
    %2528 = vmatprep.subr.mxu0 0.0
    %2529 = vmatpush1.xpose.msra.mxu0 0.0
    %2530 = vmatprep.subr.mxu0 0.0
    %2531 = vmatpush1.xpose.msra.mxu0 0.0
    %2532 = vmatprep.subr.mxu0 0.0
    %2533 = vmatpush1.xpose.msra.mxu0 0.0
    %2534 = vmatprep.subr.mxu0 0.0
    %2535 = vmatpush1.xpose.msra.mxu0 0.0
    %2536 = vmatprep.subr.mxu0 0.0
    %2537 = vmatpush1.xpose.msra.mxu0 0.0
    %2538 = vmatprep.subr.mxu0 0.0
    %2539 = vmatpush1.xpose.msra.mxu0 0.0
    %2540 = vmatprep.subr.mxu0 0.0
    %2541 = vmatpush1.xpose.msra.mxu0 0.0
    %2542 = vmatprep.subr.mxu0 0.0
    %2543 = vmatpush1.xpose.msra.mxu0 0.0
    %2544 = vmatprep.subr.mxu0 0.0
    %2545 = vmatpush1.xpose.msra.mxu0 0.0
    %2546 = vmatprep.subr.mxu0 0.0
    %2547 = vmatpush1.xpose.msra.mxu0 0.0
    %2548 = vmatprep.subr.mxu0 0.0
    %2549 = vmatpush1.xpose.msra.mxu0 0.0
    %2550 = vmatprep.subr.mxu0 0.0
    %2551 = vmatpush1.xpose.msra.mxu0 0.0
    %2552 = vmatprep.subr.mxu0 0.0
    %2553 = vmatpush1.xpose.msra.mxu0 0.0
    %2554 = vmatprep.subr.mxu0 0.0
    %2555 = vmatpush1.xpose.msra.mxu0 0.0
    %2556 = vmatprep.subr.mxu0 0.0
    %2557 = vmatpush1.xpose.msra.mxu0 0.0
    %2558 = vmatprep.subr.mxu0 0.0
    %2559 = vmatpush1.xpose.msra.mxu0 0.0
    %2560 = vmatprep.subr.mxu0 0.0
    %2561 = vmatpush1.xpose.msra.mxu0 0.0
    %2562 = vmatprep.subr.mxu0 0.0
    %2563 = vmatpush1.xpose.msra.mxu0 0.0
    %2564 = vmatprep.subr.mxu0 0.0
    %2565 = vmatpush1.xpose.msra.mxu0 0.0
    %2566 = vmatprep.subr.mxu0 0.0
    %2567 = vmatpush1.xpose.msra.mxu0 0.0
    %2568 = vmatprep.subr.mxu0 0.0
    %2569 = vmatpush1.xpose.msra.mxu0 0.0
    %2570 = vmatprep.subr.mxu0 0.0
    %2571 = vmatpush1.xpose.msra.mxu0 0.0
    %2572 = vmatprep.subr.mxu0 0.0
    %2573 = vmatpush1.xpose.msra.mxu0 0.0
    %2574 = vmatprep.subr.mxu0 0.0
    %2575 = vmatpush1.xpose.msra.mxu0 0.0
    %2576 = vmatprep.subr.mxu0 0.0
    %2577 = vmatpush1.xpose.msra.mxu0 0.0
    %2578 = vmatprep.subr.mxu0 0.0
    %2579 = vmatpush1.xpose.msra.mxu0 0.0
    %2580 = vmatprep.subr.mxu0 0.0
    %2581 = vmatpush1.xpose.msra.mxu0 0.0
    %2582 = vmatprep.subr.mxu0 0.0
    %2583 = vmatpush1.xpose.msra.mxu0 0.0
    %2584 = vmatprep.mubr.f32.mxu0 0.0
    %2585 = vmatmul.mubr.f32.gmra.mrb[0].mxu0 %v2516
    %v2586 = vpop.f32.mrb[0].mxu0
    %v2587 = vadd.f32 0.0, %v2586
    %v2588 = vpop.f32.mrb[0].mxu0
    %2589 = vdwg.mxu0
    %2591 = vrot.lane.b32.xlu0 %v2506, 96
    %v2592 = vpop.permute.xlu0 %2591
    %v2594 = vsel %vm354, %v2492, 0
    %v2596 = vsel %vm354, %v2592, 0
    %2598 = vmatprep.subr.mxu0 0.0
    %2599 = vmatpush1.xpose.msra.mxu0 %v2596
    %2600 = vmatprep.subr.mxu0 0.0
    %2601 = vmatpush1.xpose.msra.mxu0 0.0
    %2602 = vmatprep.subr.mxu0 0.0
    %2603 = vmatpush1.xpose.msra.mxu0 0.0
    %2604 = vmatprep.subr.mxu0 0.0
    %2605 = vmatpush1.xpose.msra.mxu0 0.0
    %2606 = vmatprep.subr.mxu0 0.0
    %2607 = vmatpush1.xpose.msra.mxu0 0.0
    %2608 = vmatprep.subr.mxu0 0.0
    %2609 = vmatpush1.xpose.msra.mxu0 0.0
    %2610 = vmatprep.subr.mxu0 0.0
    %2611 = vmatpush1.xpose.msra.mxu0 0.0
    %2612 = vmatprep.subr.mxu0 0.0
    %2613 = vmatpush1.xpose.msra.mxu0 0.0
    %2614 = vmatprep.subr.mxu0 0.0
    %2615 = vmatpush1.xpose.msra.mxu0 0.0
    %2616 = vmatprep.subr.mxu0 0.0
    %2617 = vmatpush1.xpose.msra.mxu0 0.0
    %2618 = vmatprep.subr.mxu0 0.0
    %2619 = vmatpush1.xpose.msra.mxu0 0.0
    %2620 = vmatprep.subr.mxu0 0.0
    %2621 = vmatpush1.xpose.msra.mxu0 0.0
    %2622 = vmatprep.subr.mxu0 0.0
    %2623 = vmatpush1.xpose.msra.mxu0 0.0
    %2624 = vmatprep.subr.mxu0 0.0
    %2625 = vmatpush1.xpose.msra.mxu0 0.0
    %2626 = vmatprep.subr.mxu0 0.0
    %2627 = vmatpush1.xpose.msra.mxu0 0.0
    %2628 = vmatprep.subr.mxu0 0.0
    %2629 = vmatpush1.xpose.msra.mxu0 0.0
    %2630 = vmatprep.subr.mxu0 0.0
    %2631 = vmatpush1.xpose.msra.mxu0 0.0
    %2632 = vmatprep.subr.mxu0 0.0
    %2633 = vmatpush1.xpose.msra.mxu0 0.0
    %2634 = vmatprep.subr.mxu0 0.0
    %2635 = vmatpush1.xpose.msra.mxu0 0.0
    %2636 = vmatprep.subr.mxu0 0.0
    %2637 = vmatpush1.xpose.msra.mxu0 0.0
    %2638 = vmatprep.subr.mxu0 0.0
    %2639 = vmatpush1.xpose.msra.mxu0 0.0
    %2640 = vmatprep.subr.mxu0 0.0
    %2641 = vmatpush1.xpose.msra.mxu0 0.0
    %2642 = vmatprep.subr.mxu0 0.0
    %2643 = vmatpush1.xpose.msra.mxu0 0.0
    %2644 = vmatprep.subr.mxu0 0.0
    %2645 = vmatpush1.xpose.msra.mxu0 0.0
    %2646 = vmatprep.subr.mxu0 0.0
    %2647 = vmatpush1.xpose.msra.mxu0 0.0
    %2648 = vmatprep.subr.mxu0 0.0
    %2649 = vmatpush1.xpose.msra.mxu0 0.0
    %2650 = vmatprep.subr.mxu0 0.0
    %2651 = vmatpush1.xpose.msra.mxu0 0.0
    %2652 = vmatprep.subr.mxu0 0.0
    %2653 = vmatpush1.xpose.msra.mxu0 0.0
    %2654 = vmatprep.subr.mxu0 0.0
    %2655 = vmatpush1.xpose.msra.mxu0 0.0
    %2656 = vmatprep.subr.mxu0 0.0
    %2657 = vmatpush1.xpose.msra.mxu0 0.0
    %2658 = vmatprep.subr.mxu0 0.0
    %2659 = vmatpush1.xpose.msra.mxu0 0.0
    %2660 = vmatprep.subr.mxu0 0.0
    %2661 = vmatpush1.xpose.msra.mxu0 0.0
    %2662 = vmatprep.mubr.f32.mxu0 0.0
    %2663 = vmatmul.mubr.f32.gmra.mrb[0].mxu0 %v2594
    %v2664 = vpop.f32.mrb[0].mxu0
    %v2665 = vadd.f32 0.0, %v2664
    %v2666 = vpop.f32.mrb[0].mxu0
    %2667 = vdwg.mxu0
    %v2668 = vmul.f32 %v2587, 0.35355338
    %v2669 = vmul.f32 %v2665, 0.35355338
    %v2670 = vsel %vm354, %v2668, -inf
    %2671 = vmax.xlane.f32.xlu0 %v2670
    %v2672 = vpop.xlane.xlu0 %2671
    %v2673 = vsel %vm354, %v2669, -inf
    %2674 = vmax.xlane.f32.xlu0 %v2673
    %v2675 = vpop.xlane.xlu0 %2674
    %v2676 = vsub.f32 %v2668, %v2672
    %v2677 = vsub.f32 %v2669, %v2675
    %v2678 = vmul.f32 %v2676, 1.442695
    %v2679 = vpow.pop %v2678
    %v2680 = vmul.f32 %v2677, 1.442695
    %v2681 = vpow.pop %v2680
    %v2682 = vsel %vm354, %v2679, 0.0
    %2683 = vadd.xlane.f32.xlu0 %v2682
    %v2684 = vpop.xlane.xlu0 %2683
    %v2685 = vsel %vm354, %v2681, 0.0
    %2686 = vadd.xlane.f32.xlu0 %v2685
    %v2687 = vpop.xlane.xlu0 %2686
    %v2688 = vrcp.pop %v2684
    %v2689 = vrcp.pop %v2687
    %v2690 = vmul.f32 %v2679, %v2688
    %v2691 = vmul.f32 %v2681, %v2689
    %2693 = vrot.lane.b32.xlu0 %v2469, 64
    %v2694 = vpop.permute.xlu0 %2693
    %v2697 = vsel %vm354, %v2690, 0
    %2699 = vmatprep.subr.mxu0 0.0
    %2700 = vmatpush1.msra.mxu0 %v2694
    %2701 = vmatprep.subr.mxu0 0.0
    %2702 = vmatpush1.msra.mxu0 0.0
    %2703 = vmatprep.subr.mxu0 0.0
    %2704 = vmatpush1.msra.mxu0 0.0
    %2705 = vmatprep.subr.mxu0 0.0
    %2706 = vmatpush1.msra.mxu0 0.0
    %2707 = vmatprep.subr.mxu0 0.0
    %2708 = vmatpush1.msra.mxu0 0.0
    %2709 = vmatprep.subr.mxu0 0.0
    %2710 = vmatpush1.msra.mxu0 0.0
    %2711 = vmatprep.subr.mxu0 0.0
    %2712 = vmatpush1.msra.mxu0 0.0
    %2713 = vmatprep.subr.mxu0 0.0
    %2714 = vmatpush1.msra.mxu0 0.0
    %2715 = vmatprep.subr.mxu0 0.0
    %2716 = vmatpush1.msra.mxu0 0.0
    %2717 = vmatprep.subr.mxu0 0.0
    %2718 = vmatpush1.msra.mxu0 0.0
    %2719 = vmatprep.subr.mxu0 0.0
    %2720 = vmatpush1.msra.mxu0 0.0
    %2721 = vmatprep.subr.mxu0 0.0
    %2722 = vmatpush1.msra.mxu0 0.0
    %2723 = vmatprep.subr.mxu0 0.0
    %2724 = vmatpush1.msra.mxu0 0.0
    %2725 = vmatprep.subr.mxu0 0.0
    %2726 = vmatpush1.msra.mxu0 0.0
    %2727 = vmatprep.subr.mxu0 0.0
    %2728 = vmatpush1.msra.mxu0 0.0
    %2729 = vmatprep.subr.mxu0 0.0
    %2730 = vmatpush1.msra.mxu0 0.0
    %2731 = vmatprep.subr.mxu0 0.0
    %2732 = vmatpush1.msra.mxu0 0.0
    %2733 = vmatprep.subr.mxu0 0.0
    %2734 = vmatpush1.msra.mxu0 0.0
    %2735 = vmatprep.subr.mxu0 0.0
    %2736 = vmatpush1.msra.mxu0 0.0
    %2737 = vmatprep.subr.mxu0 0.0
    %2738 = vmatpush1.msra.mxu0 0.0
    %2739 = vmatprep.subr.mxu0 0.0
    %2740 = vmatpush1.msra.mxu0 0.0
    %2741 = vmatprep.subr.mxu0 0.0
    %2742 = vmatpush1.msra.mxu0 0.0
    %2743 = vmatprep.subr.mxu0 0.0
    %2744 = vmatpush1.msra.mxu0 0.0
    %2745 = vmatprep.subr.mxu0 0.0
    %2746 = vmatpush1.msra.mxu0 0.0
    %2747 = vmatprep.subr.mxu0 0.0
    %2748 = vmatpush1.msra.mxu0 0.0
    %2749 = vmatprep.subr.mxu0 0.0
    %2750 = vmatpush1.msra.mxu0 0.0
    %2751 = vmatprep.subr.mxu0 0.0
    %2752 = vmatpush1.msra.mxu0 0.0
    %2753 = vmatprep.subr.mxu0 0.0
    %2754 = vmatpush1.msra.mxu0 0.0
    %2755 = vmatprep.subr.mxu0 0.0
    %2756 = vmatpush1.msra.mxu0 0.0
    %2757 = vmatprep.subr.mxu0 0.0
    %2758 = vmatpush1.msra.mxu0 0.0
    %2759 = vmatprep.subr.mxu0 0.0
    %2760 = vmatpush1.msra.mxu0 0.0
    %2761 = vmatprep.subr.mxu0 0.0
    %2762 = vmatpush1.msra.mxu0 0.0
    %2763 = vmatprep.mubr.f32.mxu0 0.0
    %2764 = vmatmul.mubr.f32.gmra.mrb[0].mxu0 %v2697
    %v2765 = vpop.f32.mrb[0].mxu0
    %v2766 = vadd.f32 0.0, %v2765
    %v2767 = vpop.f32.mrb[0].mxu0
    %2768 = vdwg.mxu0
    %2770 = vrot.lane.b32.xlu0 %v2475, 64
    %v2771 = vpop.permute.xlu0 %2770
    %v2774 = vsel %vm354, %v2691, 0
    %2776 = vmatprep.subr.mxu0 0.0
    %2777 = vmatpush1.msra.mxu0 %v2771
    %2778 = vmatprep.subr.mxu0 0.0
    %2779 = vmatpush1.msra.mxu0 0.0
    %2780 = vmatprep.subr.mxu0 0.0
    %2781 = vmatpush1.msra.mxu0 0.0
    %2782 = vmatprep.subr.mxu0 0.0
    %2783 = vmatpush1.msra.mxu0 0.0
    %2784 = vmatprep.subr.mxu0 0.0
    %2785 = vmatpush1.msra.mxu0 0.0
    %2786 = vmatprep.subr.mxu0 0.0
    %2787 = vmatpush1.msra.mxu0 0.0
    %2788 = vmatprep.subr.mxu0 0.0
    %2789 = vmatpush1.msra.mxu0 0.0
    %2790 = vmatprep.subr.mxu0 0.0
    %2791 = vmatpush1.msra.mxu0 0.0
    %2792 = vmatprep.subr.mxu0 0.0
    %2793 = vmatpush1.msra.mxu0 0.0
    %2794 = vmatprep.subr.mxu0 0.0
    %2795 = vmatpush1.msra.mxu0 0.0
    %2796 = vmatprep.subr.mxu0 0.0
    %2797 = vmatpush1.msra.mxu0 0.0
    %2798 = vmatprep.subr.mxu0 0.0
    %2799 = vmatpush1.msra.mxu0 0.0
    %2800 = vmatprep.subr.mxu0 0.0
    %2801 = vmatpush1.msra.mxu0 0.0
    %2802 = vmatprep.subr.mxu0 0.0
    %2803 = vmatpush1.msra.mxu0 0.0
    %2804 = vmatprep.subr.mxu0 0.0
    %2805 = vmatpush1.msra.mxu0 0.0
    %2806 = vmatprep.subr.mxu0 0.0
    %2807 = vmatpush1.msra.mxu0 0.0
    %2808 = vmatprep.subr.mxu0 0.0
    %2809 = vmatpush1.msra.mxu0 0.0
    %2810 = vmatprep.subr.mxu0 0.0
    %2811 = vmatpush1.msra.mxu0 0.0
    %2812 = vmatprep.subr.mxu0 0.0
    %2813 = vmatpush1.msra.mxu0 0.0
    %2814 = vmatprep.subr.mxu0 0.0
    %2815 = vmatpush1.msra.mxu0 0.0
    %2816 = vmatprep.subr.mxu0 0.0
    %2817 = vmatpush1.msra.mxu0 0.0
    %2818 = vmatprep.subr.mxu0 0.0
    %2819 = vmatpush1.msra.mxu0 0.0
    %2820 = vmatprep.subr.mxu0 0.0
    %2821 = vmatpush1.msra.mxu0 0.0
    %2822 = vmatprep.subr.mxu0 0.0
    %2823 = vmatpush1.msra.mxu0 0.0
    %2824 = vmatprep.subr.mxu0 0.0
    %2825 = vmatpush1.msra.mxu0 0.0
    %2826 = vmatprep.subr.mxu0 0.0
    %2827 = vmatpush1.msra.mxu0 0.0
    %2828 = vmatprep.subr.mxu0 0.0
    %2829 = vmatpush1.msra.mxu0 0.0
    %2830 = vmatprep.subr.mxu0 0.0
    %2831 = vmatpush1.msra.mxu0 0.0
    %2832 = vmatprep.subr.mxu0 0.0
    %2833 = vmatpush1.msra.mxu0 0.0
    %2834 = vmatprep.subr.mxu0 0.0
    %2835 = vmatpush1.msra.mxu0 0.0
    %2836 = vmatprep.subr.mxu0 0.0
    %2837 = vmatpush1.msra.mxu0 0.0
    %2838 = vmatprep.subr.mxu0 0.0
    %2839 = vmatpush1.msra.mxu0 0.0
    %2840 = vmatprep.mubr.f32.mxu0 0.0
    %2841 = vmatmul.mubr.f32.gmra.mrb[0].mxu0 %v2774
    %v2842 = vpop.f32.mrb[0].mxu0
    %v2843 = vadd.f32 0.0, %v2842
    %v2844 = vpop.f32.mrb[0].mxu0
    %2845 = vdwg.mxu0
    %2846 = vrot.lane.b32.xlu0 %v2491, 120
    %v2847 = vpop.permute.xlu0 %2846
    %2848 = vrot.lane.b32.xlu0 %v2505, 88
    %v2849 = vpop.permute.xlu0 %2848
    %v2850 = vsel %vm354, %v2847, 0
    %v2852 = vsel %vm354, %v2849, 0
    %2854 = vmatprep.subr.mxu0 0.0
    %2855 = vmatpush1.xpose.msra.mxu0 %v2852
    %2856 = vmatprep.subr.mxu0 0.0
    %2857 = vmatpush1.xpose.msra.mxu0 0.0
    %2858 = vmatprep.subr.mxu0 0.0
    %2859 = vmatpush1.xpose.msra.mxu0 0.0
    %2860 = vmatprep.subr.mxu0 0.0
    %2861 = vmatpush1.xpose.msra.mxu0 0.0
    %2862 = vmatprep.subr.mxu0 0.0
    %2863 = vmatpush1.xpose.msra.mxu0 0.0
    %2864 = vmatprep.subr.mxu0 0.0
    %2865 = vmatpush1.xpose.msra.mxu0 0.0
    %2866 = vmatprep.subr.mxu0 0.0
    %2867 = vmatpush1.xpose.msra.mxu0 0.0
    %2868 = vmatprep.subr.mxu0 0.0
    %2869 = vmatpush1.xpose.msra.mxu0 0.0
    %2870 = vmatprep.subr.mxu0 0.0
    %2871 = vmatpush1.xpose.msra.mxu0 0.0
    %2872 = vmatprep.subr.mxu0 0.0
    %2873 = vmatpush1.xpose.msra.mxu0 0.0
    %2874 = vmatprep.subr.mxu0 0.0
    %2875 = vmatpush1.xpose.msra.mxu0 0.0
    %2876 = vmatprep.subr.mxu0 0.0
    %2877 = vmatpush1.xpose.msra.mxu0 0.0
    %2878 = vmatprep.subr.mxu0 0.0
    %2879 = vmatpush1.xpose.msra.mxu0 0.0
    %2880 = vmatprep.subr.mxu0 0.0
    %2881 = vmatpush1.xpose.msra.mxu0 0.0
    %2882 = vmatprep.subr.mxu0 0.0
    %2883 = vmatpush1.xpose.msra.mxu0 0.0
    %2884 = vmatprep.subr.mxu0 0.0
    %2885 = vmatpush1.xpose.msra.mxu0 0.0
    %2886 = vmatprep.subr.mxu0 0.0
    %2887 = vmatpush1.xpose.msra.mxu0 0.0
    %2888 = vmatprep.subr.mxu0 0.0
    %2889 = vmatpush1.xpose.msra.mxu0 0.0
    %2890 = vmatprep.subr.mxu0 0.0
    %2891 = vmatpush1.xpose.msra.mxu0 0.0
    %2892 = vmatprep.subr.mxu0 0.0
    %2893 = vmatpush1.xpose.msra.mxu0 0.0
    %2894 = vmatprep.subr.mxu0 0.0
    %2895 = vmatpush1.xpose.msra.mxu0 0.0
    %2896 = vmatprep.subr.mxu0 0.0
    %2897 = vmatpush1.xpose.msra.mxu0 0.0
    %2898 = vmatprep.subr.mxu0 0.0
    %2899 = vmatpush1.xpose.msra.mxu0 0.0
    %2900 = vmatprep.subr.mxu0 0.0
    %2901 = vmatpush1.xpose.msra.mxu0 0.0
    %2902 = vmatprep.subr.mxu0 0.0
    %2903 = vmatpush1.xpose.msra.mxu0 0.0
    %2904 = vmatprep.subr.mxu0 0.0
    %2905 = vmatpush1.xpose.msra.mxu0 0.0
    %2906 = vmatprep.subr.mxu0 0.0
    %2907 = vmatpush1.xpose.msra.mxu0 0.0
    %2908 = vmatprep.subr.mxu0 0.0
    %2909 = vmatpush1.xpose.msra.mxu0 0.0
    %2910 = vmatprep.subr.mxu0 0.0
    %2911 = vmatpush1.xpose.msra.mxu0 0.0
    %2912 = vmatprep.subr.mxu0 0.0
    %2913 = vmatpush1.xpose.msra.mxu0 0.0
    %2914 = vmatprep.subr.mxu0 0.0
    %2915 = vmatpush1.xpose.msra.mxu0 0.0
    %2916 = vmatprep.subr.mxu0 0.0
    %2917 = vmatpush1.xpose.msra.mxu0 0.0
    %2918 = vmatprep.mubr.f32.mxu0 0.0
    %2919 = vmatmul.mubr.f32.gmra.mrb[0].mxu0 %v2850
    %v2920 = vpop.f32.mrb[0].mxu0
    %v2921 = vadd.f32 0.0, %v2920
    %v2922 = vpop.f32.mrb[0].mxu0
    %2923 = vdwg.mxu0
    %2924 = vrot.lane.b32.xlu0 %v2492, 120
    %v2925 = vpop.permute.xlu0 %2924
    %2926 = vrot.lane.b32.xlu0 %v2506, 88
    %v2927 = vpop.permute.xlu0 %2926
    %v2928 = vsel %vm354, %v2925, 0
    %v2930 = vsel %vm354, %v2927, 0
    %2932 = vmatprep.subr.mxu0 0.0
    %2933 = vmatpush1.xpose.msra.mxu0 %v2930
    %2934 = vmatprep.subr.mxu0 0.0
    %2935 = vmatpush1.xpose.msra.mxu0 0.0
    %2936 = vmatprep.subr.mxu0 0.0
    %2937 = vmatpush1.xpose.msra.mxu0 0.0
    %2938 = vmatprep.subr.mxu0 0.0
    %2939 = vmatpush1.xpose.msra.mxu0 0.0
    %2940 = vmatprep.subr.mxu0 0.0
    %2941 = vmatpush1.xpose.msra.mxu0 0.0
    %2942 = vmatprep.subr.mxu0 0.0
    %2943 = vmatpush1.xpose.msra.mxu0 0.0
    %2944 = vmatprep.subr.mxu0 0.0
    %2945 = vmatpush1.xpose.msra.mxu0 0.0
    %2946 = vmatprep.subr.mxu0 0.0
    %2947 = vmatpush1.xpose.msra.mxu0 0.0
    %2948 = vmatprep.subr.mxu0 0.0
    %2949 = vmatpush1.xpose.msra.mxu0 0.0
    %2950 = vmatprep.subr.mxu0 0.0
    %2951 = vmatpush1.xpose.msra.mxu0 0.0
    %2952 = vmatprep.subr.mxu0 0.0
    %2953 = vmatpush1.xpose.msra.mxu0 0.0
    %2954 = vmatprep.subr.mxu0 0.0
    %2955 = vmatpush1.xpose.msra.mxu0 0.0
    %2956 = vmatprep.subr.mxu0 0.0
    %2957 = vmatpush1.xpose.msra.mxu0 0.0
    %2958 = vmatprep.subr.mxu0 0.0
    %2959 = vmatpush1.xpose.msra.mxu0 0.0
    %2960 = vmatprep.subr.mxu0 0.0
    %2961 = vmatpush1.xpose.msra.mxu0 0.0
    %2962 = vmatprep.subr.mxu0 0.0
    %2963 = vmatpush1.xpose.msra.mxu0 0.0
    %2964 = vmatprep.subr.mxu0 0.0
    %2965 = vmatpush1.xpose.msra.mxu0 0.0
    %2966 = vmatprep.subr.mxu0 0.0
    %2967 = vmatpush1.xpose.msra.mxu0 0.0
    %2968 = vmatprep.subr.mxu0 0.0
    %2969 = vmatpush1.xpose.msra.mxu0 0.0
    %2970 = vmatprep.subr.mxu0 0.0
    %2971 = vmatpush1.xpose.msra.mxu0 0.0
    %2972 = vmatprep.subr.mxu0 0.0
    %2973 = vmatpush1.xpose.msra.mxu0 0.0
    %2974 = vmatprep.subr.mxu0 0.0
    %2975 = vmatpush1.xpose.msra.mxu0 0.0
    %2976 = vmatprep.subr.mxu0 0.0
    %2977 = vmatpush1.xpose.msra.mxu0 0.0
    %2978 = vmatprep.subr.mxu0 0.0
    %2979 = vmatpush1.xpose.msra.mxu0 0.0
    %2980 = vmatprep.subr.mxu0 0.0
    %2981 = vmatpush1.xpose.msra.mxu0 0.0
    %2982 = vmatprep.subr.mxu0 0.0
    %2983 = vmatpush1.xpose.msra.mxu0 0.0
    %2984 = vmatprep.subr.mxu0 0.0
    %2985 = vmatpush1.xpose.msra.mxu0 0.0
    %2986 = vmatprep.subr.mxu0 0.0
    %2987 = vmatpush1.xpose.msra.mxu0 0.0
    %2988 = vmatprep.subr.mxu0 0.0
    %2989 = vmatpush1.xpose.msra.mxu0 0.0
    %2990 = vmatprep.subr.mxu0 0.0
    %2991 = vmatpush1.xpose.msra.mxu0 0.0
    %2992 = vmatprep.subr.mxu0 0.0
    %2993 = vmatpush1.xpose.msra.mxu0 0.0
    %2994 = vmatprep.subr.mxu0 0.0
    %2995 = vmatpush1.xpose.msra.mxu0 0.0
    %2996 = vmatprep.mubr.f32.mxu0 0.0
    %2997 = vmatmul.mubr.f32.gmra.mrb[0].mxu0 %v2928
    %v2998 = vpop.f32.mrb[0].mxu0
    %v2999 = vadd.f32 0.0, %v2998
    %v3000 = vpop.f32.mrb[0].mxu0
    %3001 = vdwg.mxu0
    %v3002 = vmul.f32 %v2921, 0.35355338
    %v3003 = vmul.f32 %v2999, 0.35355338
    %v3004 = vsel %vm354, %v3002, -inf
    %3005 = vmax.xlane.f32.xlu0 %v3004
    %v3006 = vpop.xlane.xlu0 %3005
    %v3007 = vsel %vm354, %v3003, -inf
    %3008 = vmax.xlane.f32.xlu0 %v3007
    %v3009 = vpop.xlane.xlu0 %3008
    %v3010 = vsub.f32 %v3002, %v3006
    %v3011 = vsub.f32 %v3003, %v3009
    %v3012 = vmul.f32 %v3010, 1.442695
    %v3013 = vpow.pop %v3012
    %v3014 = vmul.f32 %v3011, 1.442695
    %v3015 = vpow.pop %v3014
    %v3016 = vsel %vm354, %v3013, 0.0
    %3017 = vadd.xlane.f32.xlu0 %v3016
    %v3018 = vpop.xlane.xlu0 %3017
    %v3019 = vsel %vm354, %v3015, 0.0
    %3020 = vadd.xlane.f32.xlu0 %v3019
    %v3021 = vpop.xlane.xlu0 %3020
    %v3022 = vrcp.pop %v3018
    %v3023 = vrcp.pop %v3021
    %v3024 = vmul.f32 %v3013, %v3022
    %v3025 = vmul.f32 %v3015, %v3023
    %3026 = vrot.lane.b32.xlu0 %v2469, 56
    %v3027 = vpop.permute.xlu0 %3026
    %v3030 = vsel %vm354, %v3024, 0
    %3032 = vmatprep.subr.mxu0 0.0
    %3033 = vmatpush1.msra.mxu0 %v3027
    %3034 = vmatprep.subr.mxu0 0.0
    %3035 = vmatpush1.msra.mxu0 0.0
    %3036 = vmatprep.subr.mxu0 0.0
    %3037 = vmatpush1.msra.mxu0 0.0
    %3038 = vmatprep.subr.mxu0 0.0
    %3039 = vmatpush1.msra.mxu0 0.0
    %3040 = vmatprep.subr.mxu0 0.0
    %3041 = vmatpush1.msra.mxu0 0.0
    %3042 = vmatprep.subr.mxu0 0.0
    %3043 = vmatpush1.msra.mxu0 0.0
    %3044 = vmatprep.subr.mxu0 0.0
    %3045 = vmatpush1.msra.mxu0 0.0
    %3046 = vmatprep.subr.mxu0 0.0
    %3047 = vmatpush1.msra.mxu0 0.0
    %3048 = vmatprep.subr.mxu0 0.0
    %3049 = vmatpush1.msra.mxu0 0.0
    %3050 = vmatprep.subr.mxu0 0.0
    %3051 = vmatpush1.msra.mxu0 0.0
    %3052 = vmatprep.subr.mxu0 0.0
    %3053 = vmatpush1.msra.mxu0 0.0
    %3054 = vmatprep.subr.mxu0 0.0
    %3055 = vmatpush1.msra.mxu0 0.0
    %3056 = vmatprep.subr.mxu0 0.0
    %3057 = vmatpush1.msra.mxu0 0.0
    %3058 = vmatprep.subr.mxu0 0.0
    %3059 = vmatpush1.msra.mxu0 0.0
    %3060 = vmatprep.subr.mxu0 0.0
    %3061 = vmatpush1.msra.mxu0 0.0
    %3062 = vmatprep.subr.mxu0 0.0
    %3063 = vmatpush1.msra.mxu0 0.0
    %3064 = vmatprep.subr.mxu0 0.0
    %3065 = vmatpush1.msra.mxu0 0.0
    %3066 = vmatprep.subr.mxu0 0.0
    %3067 = vmatpush1.msra.mxu0 0.0
    %3068 = vmatprep.subr.mxu0 0.0
    %3069 = vmatpush1.msra.mxu0 0.0
    %3070 = vmatprep.subr.mxu0 0.0
    %3071 = vmatpush1.msra.mxu0 0.0
    %3072 = vmatprep.subr.mxu0 0.0
    %3073 = vmatpush1.msra.mxu0 0.0
    %3074 = vmatprep.subr.mxu0 0.0
    %3075 = vmatpush1.msra.mxu0 0.0
    %3076 = vmatprep.subr.mxu0 0.0
    %3077 = vmatpush1.msra.mxu0 0.0
    %3078 = vmatprep.subr.mxu0 0.0
    %3079 = vmatpush1.msra.mxu0 0.0
    %3080 = vmatprep.subr.mxu0 0.0
    %3081 = vmatpush1.msra.mxu0 0.0
    %3082 = vmatprep.subr.mxu0 0.0
    %3083 = vmatpush1.msra.mxu0 0.0
    %3084 = vmatprep.subr.mxu0 0.0
    %3085 = vmatpush1.msra.mxu0 0.0
    %3086 = vmatprep.subr.mxu0 0.0
    %3087 = vmatpush1.msra.mxu0 0.0
    %3088 = vmatprep.subr.mxu0 0.0
    %3089 = vmatpush1.msra.mxu0 0.0
    %3090 = vmatprep.subr.mxu0 0.0
    %3091 = vmatpush1.msra.mxu0 0.0
    %3092 = vmatprep.subr.mxu0 0.0
    %3093 = vmatpush1.msra.mxu0 0.0
    %3094 = vmatprep.subr.mxu0 0.0
    %3095 = vmatpush1.msra.mxu0 0.0
    %3096 = vmatprep.mubr.f32.mxu0 0.0
    %3097 = vmatmul.mubr.f32.gmra.mrb[0].mxu0 %v3030
    %v3098 = vpop.f32.mrb[0].mxu0
    %v3099 = vadd.f32 0.0, %v3098
    %v3100 = vpop.f32.mrb[0].mxu0
    %3101 = vdwg.mxu0
    %3102 = vrot.lane.b32.xlu0 %v2475, 56
    %v3103 = vpop.permute.xlu0 %3102
    %v3106 = vsel %vm354, %v3025, 0
    %3108 = vmatprep.subr.mxu0 0.0
    %3109 = vmatpush1.msra.mxu0 %v3103
    %3110 = vmatprep.subr.mxu0 0.0
    %3111 = vmatpush1.msra.mxu0 0.0
    %3112 = vmatprep.subr.mxu0 0.0
    %3113 = vmatpush1.msra.mxu0 0.0
    %3114 = vmatprep.subr.mxu0 0.0
    %3115 = vmatpush1.msra.mxu0 0.0
    %3116 = vmatprep.subr.mxu0 0.0
    %3117 = vmatpush1.msra.mxu0 0.0
    %3118 = vmatprep.subr.mxu0 0.0
    %3119 = vmatpush1.msra.mxu0 0.0
    %3120 = vmatprep.subr.mxu0 0.0
    %3121 = vmatpush1.msra.mxu0 0.0
    %3122 = vmatprep.subr.mxu0 0.0
    %3123 = vmatpush1.msra.mxu0 0.0
    %3124 = vmatprep.subr.mxu0 0.0
    %3125 = vmatpush1.msra.mxu0 0.0
    %3126 = vmatprep.subr.mxu0 0.0
    %3127 = vmatpush1.msra.mxu0 0.0
    %3128 = vmatprep.subr.mxu0 0.0
    %3129 = vmatpush1.msra.mxu0 0.0
    %3130 = vmatprep.subr.mxu0 0.0
    %3131 = vmatpush1.msra.mxu0 0.0
    %3132 = vmatprep.subr.mxu0 0.0
    %3133 = vmatpush1.msra.mxu0 0.0
    %3134 = vmatprep.subr.mxu0 0.0
    %3135 = vmatpush1.msra.mxu0 0.0
    %3136 = vmatprep.subr.mxu0 0.0
    %3137 = vmatpush1.msra.mxu0 0.0
    %3138 = vmatprep.subr.mxu0 0.0
    %3139 = vmatpush1.msra.mxu0 0.0
    %3140 = vmatprep.subr.mxu0 0.0
    %3141 = vmatpush1.msra.mxu0 0.0
    %3142 = vmatprep.subr.mxu0 0.0
    %3143 = vmatpush1.msra.mxu0 0.0
    %3144 = vmatprep.subr.mxu0 0.0
    %3145 = vmatpush1.msra.mxu0 0.0
    %3146 = vmatprep.subr.mxu0 0.0
    %3147 = vmatpush1.msra.mxu0 0.0
    %3148 = vmatprep.subr.mxu0 0.0
    %3149 = vmatpush1.msra.mxu0 0.0
    %3150 = vmatprep.subr.mxu0 0.0
    %3151 = vmatpush1.msra.mxu0 0.0
    %3152 = vmatprep.subr.mxu0 0.0
    %3153 = vmatpush1.msra.mxu0 0.0
    %3154 = vmatprep.subr.mxu0 0.0
    %3155 = vmatpush1.msra.mxu0 0.0
    %3156 = vmatprep.subr.mxu0 0.0
    %3157 = vmatpush1.msra.mxu0 0.0
    %3158 = vmatprep.subr.mxu0 0.0
    %3159 = vmatpush1.msra.mxu0 0.0
    %3160 = vmatprep.subr.mxu0 0.0
    %3161 = vmatpush1.msra.mxu0 0.0
    %3162 = vmatprep.subr.mxu0 0.0
    %3163 = vmatpush1.msra.mxu0 0.0
    %3164 = vmatprep.subr.mxu0 0.0
    %3165 = vmatpush1.msra.mxu0 0.0
    %3166 = vmatprep.subr.mxu0 0.0
    %3167 = vmatpush1.msra.mxu0 0.0
    %3168 = vmatprep.subr.mxu0 0.0
    %3169 = vmatpush1.msra.mxu0 0.0
    %3170 = vmatprep.subr.mxu0 0.0
    %3171 = vmatpush1.msra.mxu0 0.0
    %3172 = vmatprep.mubr.f32.mxu0 0.0
    %3173 = vmatmul.mubr.f32.gmra.mrb[0].mxu0 %v3106
    %v3174 = vpop.f32.mrb[0].mxu0
    %v3175 = vadd.f32 0.0, %v3174
    %v3176 = vpop.f32.mrb[0].mxu0
    %3177 = vdwg.mxu0
    %v3179 = vsel %vm354, %v3099, 0
    %v3182 = vsel %vm354, %v3175, 0
    %3184 = vmatprep.subr.mxu0 0.0
    %3185 = vmatpush1.msra.mxu0 %v2509
    %3186 = vmatprep.subr.mxu0 0.0
    %3187 = vmatpush1.msra.mxu0 0.0
    %3188 = vmatprep.subr.mxu0 0.0
    %3189 = vmatpush1.msra.mxu0 0.0
    %3190 = vmatprep.subr.mxu0 0.0
    %3191 = vmatpush1.msra.mxu0 0.0
    %3192 = vmatprep.subr.mxu0 0.0
    %3193 = vmatpush1.msra.mxu0 0.0
    %3194 = vmatprep.subr.mxu0 0.0
    %3195 = vmatpush1.msra.mxu0 0.0
    %3196 = vmatprep.subr.mxu0 0.0
    %3197 = vmatpush1.msra.mxu0 0.0
    %3198 = vmatprep.subr.mxu0 0.0
    %3199 = vmatpush1.msra.mxu0 0.0
    %3200 = vmatprep.subr.mxu0 0.0
    %3201 = vmatpush1.msra.mxu0 0.0
    %3202 = vmatprep.subr.mxu0 0.0
    %3203 = vmatpush1.msra.mxu0 0.0
    %3204 = vmatprep.subr.mxu0 0.0
    %3205 = vmatpush1.msra.mxu0 0.0
    %3206 = vmatprep.subr.mxu0 0.0
    %3207 = vmatpush1.msra.mxu0 0.0
    %3208 = vmatprep.subr.mxu0 0.0
    %3209 = vmatpush1.msra.mxu0 0.0
    %3210 = vmatprep.subr.mxu0 0.0
    %3211 = vmatpush1.msra.mxu0 0.0
    %3212 = vmatprep.subr.mxu0 0.0
    %3213 = vmatpush1.msra.mxu0 0.0
    %3214 = vmatprep.subr.mxu0 0.0
    %3215 = vmatpush1.msra.mxu0 0.0
    %3216 = vmatprep.subr.mxu0 0.0
    %3217 = vmatpush1.msra.mxu0 0.0
    %3218 = vmatprep.subr.mxu0 0.0
    %3219 = vmatpush1.msra.mxu0 0.0
    %3220 = vmatprep.subr.mxu0 0.0
    %3221 = vmatpush1.msra.mxu0 0.0
    %3222 = vmatprep.subr.mxu0 0.0
    %3223 = vmatpush1.msra.mxu0 0.0
    %3224 = vmatprep.subr.mxu0 0.0
    %3225 = vmatpush1.msra.mxu0 0.0
    %3226 = vmatprep.subr.mxu0 0.0
    %3227 = vmatpush1.msra.mxu0 0.0
    %3228 = vmatprep.subr.mxu0 0.0
    %3229 = vmatpush1.msra.mxu0 0.0
    %3230 = vmatprep.subr.mxu0 0.0
    %3231 = vmatpush1.msra.mxu0 0.0
    %3232 = vmatprep.subr.mxu0 0.0
    %3233 = vmatpush1.msra.mxu0 0.0
    %3234 = vmatprep.subr.mxu0 0.0
    %3235 = vmatpush1.msra.mxu0 0.0
    %3236 = vmatprep.subr.mxu0 0.0
    %3237 = vmatpush1.msra.mxu0 0.0
    %3238 = vmatprep.subr.mxu0 0.0
    %3239 = vmatpush1.msra.mxu0 0.0
    %3240 = vmatprep.subr.mxu0 0.0
    %3241 = vmatpush1.msra.mxu0 0.0
    %3242 = vmatprep.subr.mxu0 0.0
    %3243 = vmatpush1.msra.mxu0 0.0
    %3244 = vmatprep.subr.mxu0 0.0
    %3245 = vmatpush1.msra.mxu0 0.0
    %3246 = vmatprep.subr.mxu0 0.0
    %3247 = vmatpush1.msra.mxu0 0.0
    %3248 = vmatprep.mubr.f32.mxu0 0.0
    %3249 = vmatmul.mubr.f32.gmra.mrb[0].mxu0 %v3179
    %v3250 = vpop.f32.mrb[0].mxu0
    %v3251 = vadd.f32 0.0, %v3250
    %v3252 = vpop.f32.mrb[0].mxu0
    %3253 = vmatprep.mubr.f32.mxu0 0.0
    %3254 = vmatmul.mubr.f32.gmra.mrb[0].mxu0 %v3182
    %v3255 = vpop.f32.mrb[0].mxu0
    %v3256 = vadd.f32 0.0, %v3255
    %v3257 = vpop.f32.mrb[0].mxu0
    %3258 = vdwg.mxu0
    %v3260 = vsel %vm354, %v2766, 0
    %v3263 = vsel %vm354, %v2843, 0
    %3265 = vmatprep.subr.mxu0 0.0
    %3266 = vmatpush1.msra.mxu0 %v2508
    %3267 = vmatprep.subr.mxu0 0.0
    %3268 = vmatpush1.msra.mxu0 0.0
    %3269 = vmatprep.subr.mxu0 0.0
    %3270 = vmatpush1.msra.mxu0 0.0
    %3271 = vmatprep.subr.mxu0 0.0
    %3272 = vmatpush1.msra.mxu0 0.0
    %3273 = vmatprep.subr.mxu0 0.0
    %3274 = vmatpush1.msra.mxu0 0.0
    %3275 = vmatprep.subr.mxu0 0.0
    %3276 = vmatpush1.msra.mxu0 0.0
    %3277 = vmatprep.subr.mxu0 0.0
    %3278 = vmatpush1.msra.mxu0 0.0
    %3279 = vmatprep.subr.mxu0 0.0
    %3280 = vmatpush1.msra.mxu0 0.0
    %3281 = vmatprep.subr.mxu0 0.0
    %3282 = vmatpush1.msra.mxu0 0.0
    %3283 = vmatprep.subr.mxu0 0.0
    %3284 = vmatpush1.msra.mxu0 0.0
    %3285 = vmatprep.subr.mxu0 0.0
    %3286 = vmatpush1.msra.mxu0 0.0
    %3287 = vmatprep.subr.mxu0 0.0
    %3288 = vmatpush1.msra.mxu0 0.0
    %3289 = vmatprep.subr.mxu0 0.0
    %3290 = vmatpush1.msra.mxu0 0.0
    %3291 = vmatprep.subr.mxu0 0.0
    %3292 = vmatpush1.msra.mxu0 0.0
    %3293 = vmatprep.subr.mxu0 0.0
    %3294 = vmatpush1.msra.mxu0 0.0
    %3295 = vmatprep.subr.mxu0 0.0
    %3296 = vmatpush1.msra.mxu0 0.0
    %3297 = vmatprep.subr.mxu0 0.0
    %3298 = vmatpush1.msra.mxu0 0.0
    %3299 = vmatprep.subr.mxu0 0.0
    %3300 = vmatpush1.msra.mxu0 0.0
    %3301 = vmatprep.subr.mxu0 0.0
    %3302 = vmatpush1.msra.mxu0 0.0
    %3303 = vmatprep.subr.mxu0 0.0
    %3304 = vmatpush1.msra.mxu0 0.0
    %3305 = vmatprep.subr.mxu0 0.0
    %3306 = vmatpush1.msra.mxu0 0.0
    %3307 = vmatprep.subr.mxu0 0.0
    %3308 = vmatpush1.msra.mxu0 0.0
    %3309 = vmatprep.subr.mxu0 0.0
    %3310 = vmatpush1.msra.mxu0 0.0
    %3311 = vmatprep.subr.mxu0 0.0
    %3312 = vmatpush1.msra.mxu0 0.0
    %3313 = vmatprep.subr.mxu0 0.0
    %3314 = vmatpush1.msra.mxu0 0.0
    %3315 = vmatprep.subr.mxu0 0.0
    %3316 = vmatpush1.msra.mxu0 0.0
    %3317 = vmatprep.subr.mxu0 0.0
    %3318 = vmatpush1.msra.mxu0 0.0
    %3319 = vmatprep.subr.mxu0 0.0
    %3320 = vmatpush1.msra.mxu0 0.0
    %3321 = vmatprep.subr.mxu0 0.0
    %3322 = vmatpush1.msra.mxu0 0.0
    %3323 = vmatprep.subr.mxu0 0.0
    %3324 = vmatpush1.msra.mxu0 0.0
    %3325 = vmatprep.subr.mxu0 0.0
    %3326 = vmatpush1.msra.mxu0 0.0
    %3327 = vmatprep.subr.mxu0 0.0
    %3328 = vmatpush1.msra.mxu0 0.0
    %3329 = vmatprep.mubr.f32.mxu0 0.0
    %3330 = vmatmul.mubr.f32.gmra.mrb[0].mxu0 %v3260
    %v3331 = vpop.f32.mrb[0].mxu0
    %v3332 = vadd.f32 %v3251, %v3331
    %v3333 = vpop.f32.mrb[0].mxu0
    %3334 = vmatprep.mubr.f32.mxu0 0.0
    %3335 = vmatmul.mubr.f32.gmra.mrb[0].mxu0 %v3263
    %v3336 = vpop.f32.mrb[0].mxu0
    %v3337 = vadd.f32 %v3256, %v3336
    %v3338 = vpop.f32.mrb[0].mxu0
    %3339 = vdwg.mxu0
    %3340 = vrot.lane.b32.xlu0 %v2491, 112
    %v3341 = vpop.permute.xlu0 %3340
    %3342 = vrot.lane.b32.xlu0 %v2505, 80
    %v3343 = vpop.permute.xlu0 %3342
    %v3344 = vsel %vm354, %v3341, 0
    %v3346 = vsel %vm354, %v3343, 0
    %3348 = vmatprep.subr.mxu0 0.0
    %3349 = vmatpush1.xpose.msra.mxu0 %v3346
    %3350 = vmatprep.subr.mxu0 0.0
    %3351 = vmatpush1.xpose.msra.mxu0 0.0
    %3352 = vmatprep.subr.mxu0 0.0
    %3353 = vmatpush1.xpose.msra.mxu0 0.0
    %3354 = vmatprep.subr.mxu0 0.0
    %3355 = vmatpush1.xpose.msra.mxu0 0.0
    %3356 = vmatprep.subr.mxu0 0.0
    %3357 = vmatpush1.xpose.msra.mxu0 0.0
    %3358 = vmatprep.subr.mxu0 0.0
    %3359 = vmatpush1.xpose.msra.mxu0 0.0
    %3360 = vmatprep.subr.mxu0 0.0
    %3361 = vmatpush1.xpose.msra.mxu0 0.0
    %3362 = vmatprep.subr.mxu0 0.0
    %3363 = vmatpush1.xpose.msra.mxu0 0.0
    %3364 = vmatprep.subr.mxu0 0.0
    %3365 = vmatpush1.xpose.msra.mxu0 0.0
    %3366 = vmatprep.subr.mxu0 0.0
    %3367 = vmatpush1.xpose.msra.mxu0 0.0
    %3368 = vmatprep.subr.mxu0 0.0
    %3369 = vmatpush1.xpose.msra.mxu0 0.0
    %3370 = vmatprep.subr.mxu0 0.0
    %3371 = vmatpush1.xpose.msra.mxu0 0.0
    %3372 = vmatprep.subr.mxu0 0.0
    %3373 = vmatpush1.xpose.msra.mxu0 0.0
    %3374 = vmatprep.subr.mxu0 0.0
    %3375 = vmatpush1.xpose.msra.mxu0 0.0
    %3376 = vmatprep.subr.mxu0 0.0
    %3377 = vmatpush1.xpose.msra.mxu0 0.0
    %3378 = vmatprep.subr.mxu0 0.0
    %3379 = vmatpush1.xpose.msra.mxu0 0.0
    %3380 = vmatprep.subr.mxu0 0.0
    %3381 = vmatpush1.xpose.msra.mxu0 0.0
    %3382 = vmatprep.subr.mxu0 0.0
    %3383 = vmatpush1.xpose.msra.mxu0 0.0
    %3384 = vmatprep.subr.mxu0 0.0
    %3385 = vmatpush1.xpose.msra.mxu0 0.0
    %3386 = vmatprep.subr.mxu0 0.0
    %3387 = vmatpush1.xpose.msra.mxu0 0.0
    %3388 = vmatprep.subr.mxu0 0.0
    %3389 = vmatpush1.xpose.msra.mxu0 0.0
    %3390 = vmatprep.subr.mxu0 0.0
    %3391 = vmatpush1.xpose.msra.mxu0 0.0
    %3392 = vmatprep.subr.mxu0 0.0
    %3393 = vmatpush1.xpose.msra.mxu0 0.0
    %3394 = vmatprep.subr.mxu0 0.0
    %3395 = vmatpush1.xpose.msra.mxu0 0.0
    %3396 = vmatprep.subr.mxu0 0.0
    %3397 = vmatpush1.xpose.msra.mxu0 0.0
    %3398 = vmatprep.subr.mxu0 0.0
    %3399 = vmatpush1.xpose.msra.mxu0 0.0
    %3400 = vmatprep.subr.mxu0 0.0
    %3401 = vmatpush1.xpose.msra.mxu0 0.0
    %3402 = vmatprep.subr.mxu0 0.0
    %3403 = vmatpush1.xpose.msra.mxu0 0.0
    %3404 = vmatprep.subr.mxu0 0.0
    %3405 = vmatpush1.xpose.msra.mxu0 0.0
    %3406 = vmatprep.subr.mxu0 0.0
    %3407 = vmatpush1.xpose.msra.mxu0 0.0
    %3408 = vmatprep.subr.mxu0 0.0
    %3409 = vmatpush1.xpose.msra.mxu0 0.0
    %3410 = vmatprep.subr.mxu0 0.0
    %3411 = vmatpush1.xpose.msra.mxu0 0.0
    %3412 = vmatprep.mubr.f32.mxu0 0.0
    %3413 = vmatmul.mubr.f32.gmra.mrb[0].mxu0 %v3344
    %v3414 = vpop.f32.mrb[0].mxu0
    %v3415 = vadd.f32 0.0, %v3414
    %v3416 = vpop.f32.mrb[0].mxu0
    %3417 = vdwg.mxu0
    %3418 = vrot.lane.b32.xlu0 %v2492, 112
    %v3419 = vpop.permute.xlu0 %3418
    %3420 = vrot.lane.b32.xlu0 %v2506, 80
    %v3421 = vpop.permute.xlu0 %3420
    %v3422 = vsel %vm354, %v3419, 0
    %v3424 = vsel %vm354, %v3421, 0
    %3426 = vmatprep.subr.mxu0 0.0
    %3427 = vmatpush1.xpose.msra.mxu0 %v3424
    %3428 = vmatprep.subr.mxu0 0.0
    %3429 = vmatpush1.xpose.msra.mxu0 0.0
    %3430 = vmatprep.subr.mxu0 0.0
    %3431 = vmatpush1.xpose.msra.mxu0 0.0
    %3432 = vmatprep.subr.mxu0 0.0
    %3433 = vmatpush1.xpose.msra.mxu0 0.0
    %3434 = vmatprep.subr.mxu0 0.0
    %3435 = vmatpush1.xpose.msra.mxu0 0.0
    %3436 = vmatprep.subr.mxu0 0.0
    %3437 = vmatpush1.xpose.msra.mxu0 0.0
    %3438 = vmatprep.subr.mxu0 0.0
    %3439 = vmatpush1.xpose.msra.mxu0 0.0
    %3440 = vmatprep.subr.mxu0 0.0
    %3441 = vmatpush1.xpose.msra.mxu0 0.0
    %3442 = vmatprep.subr.mxu0 0.0
    %3443 = vmatpush1.xpose.msra.mxu0 0.0
    %3444 = vmatprep.subr.mxu0 0.0
    %3445 = vmatpush1.xpose.msra.mxu0 0.0
    %3446 = vmatprep.subr.mxu0 0.0
    %3447 = vmatpush1.xpose.msra.mxu0 0.0
    %3448 = vmatprep.subr.mxu0 0.0
    %3449 = vmatpush1.xpose.msra.mxu0 0.0
    %3450 = vmatprep.subr.mxu0 0.0
    %3451 = vmatpush1.xpose.msra.mxu0 0.0
    %3452 = vmatprep.subr.mxu0 0.0
    %3453 = vmatpush1.xpose.msra.mxu0 0.0
    %3454 = vmatprep.subr.mxu0 0.0
    %3455 = vmatpush1.xpose.msra.mxu0 0.0
    %3456 = vmatprep.subr.mxu0 0.0
    %3457 = vmatpush1.xpose.msra.mxu0 0.0
    %3458 = vmatprep.subr.mxu0 0.0
    %3459 = vmatpush1.xpose.msra.mxu0 0.0
    %3460 = vmatprep.subr.mxu0 0.0
    %3461 = vmatpush1.xpose.msra.mxu0 0.0
    %3462 = vmatprep.subr.mxu0 0.0
    %3463 = vmatpush1.xpose.msra.mxu0 0.0
    %3464 = vmatprep.subr.mxu0 0.0
    %3465 = vmatpush1.xpose.msra.mxu0 0.0
    %3466 = vmatprep.subr.mxu0 0.0
    %3467 = vmatpush1.xpose.msra.mxu0 0.0
    %3468 = vmatprep.subr.mxu0 0.0
    %3469 = vmatpush1.xpose.msra.mxu0 0.0
    %3470 = vmatprep.subr.mxu0 0.0
    %3471 = vmatpush1.xpose.msra.mxu0 0.0
    %3472 = vmatprep.subr.mxu0 0.0
    %3473 = vmatpush1.xpose.msra.mxu0 0.0
    %3474 = vmatprep.subr.mxu0 0.0
    %3475 = vmatpush1.xpose.msra.mxu0 0.0
    %3476 = vmatprep.subr.mxu0 0.0
    %3477 = vmatpush1.xpose.msra.mxu0 0.0
    %3478 = vmatprep.subr.mxu0 0.0
    %3479 = vmatpush1.xpose.msra.mxu0 0.0
    %3480 = vmatprep.subr.mxu0 0.0
    %3481 = vmatpush1.xpose.msra.mxu0 0.0
    %3482 = vmatprep.subr.mxu0 0.0
    %3483 = vmatpush1.xpose.msra.mxu0 0.0
    %3484 = vmatprep.subr.mxu0 0.0
    %3485 = vmatpush1.xpose.msra.mxu0 0.0
    %3486 = vmatprep.subr.mxu0 0.0
    %3487 = vmatpush1.xpose.msra.mxu0 0.0
    %3488 = vmatprep.subr.mxu0 0.0
    %3489 = vmatpush1.xpose.msra.mxu0 0.0
    %3490 = vmatprep.mubr.f32.mxu0 0.0
    %3491 = vmatmul.mubr.f32.gmra.mrb[0].mxu0 %v3422
    %v3492 = vpop.f32.mrb[0].mxu0
    %v3493 = vadd.f32 0.0, %v3492
    %v3494 = vpop.f32.mrb[0].mxu0
    %3495 = vdwg.mxu0
    %v3496 = vmul.f32 %v3415, 0.35355338
    %v3497 = vmul.f32 %v3493, 0.35355338
    %v3498 = vsel %vm354, %v3496, -inf
    %3499 = vmax.xlane.f32.xlu0 %v3498
    %v3500 = vpop.xlane.xlu0 %3499
    %v3501 = vsel %vm354, %v3497, -inf
    %3502 = vmax.xlane.f32.xlu0 %v3501
    %v3503 = vpop.xlane.xlu0 %3502
    %v3504 = vsub.f32 %v3496, %v3500
    %v3505 = vsub.f32 %v3497, %v3503
    %v3506 = vmul.f32 %v3504, 1.442695
    %v3507 = vpow.pop %v3506
    %v3508 = vmul.f32 %v3505, 1.442695
    %v3509 = vpow.pop %v3508
    %v3510 = vsel %vm354, %v3507, 0.0
    %3511 = vadd.xlane.f32.xlu0 %v3510
    %v3512 = vpop.xlane.xlu0 %3511
    %v3513 = vsel %vm354, %v3509, 0.0
    %3514 = vadd.xlane.f32.xlu0 %v3513
    %v3515 = vpop.xlane.xlu0 %3514
    %v3516 = vrcp.pop %v3512
    %v3517 = vrcp.pop %v3515
    %v3518 = vmul.f32 %v3507, %v3516
    %v3519 = vmul.f32 %v3509, %v3517
    %3520 = vrot.lane.b32.xlu0 %v2469, 48
    %v3521 = vpop.permute.xlu0 %3520
    %v3524 = vsel %vm354, %v3518, 0
    %3526 = vmatprep.subr.mxu0 0.0
    %3527 = vmatpush1.msra.mxu0 %v3521
    %3528 = vmatprep.subr.mxu0 0.0
    %3529 = vmatpush1.msra.mxu0 0.0
    %3530 = vmatprep.subr.mxu0 0.0
    %3531 = vmatpush1.msra.mxu0 0.0
    %3532 = vmatprep.subr.mxu0 0.0
    %3533 = vmatpush1.msra.mxu0 0.0
    %3534 = vmatprep.subr.mxu0 0.0
    %3535 = vmatpush1.msra.mxu0 0.0
    %3536 = vmatprep.subr.mxu0 0.0
    %3537 = vmatpush1.msra.mxu0 0.0
    %3538 = vmatprep.subr.mxu0 0.0
    %3539 = vmatpush1.msra.mxu0 0.0
    %3540 = vmatprep.subr.mxu0 0.0
    %3541 = vmatpush1.msra.mxu0 0.0
    %3542 = vmatprep.subr.mxu0 0.0
    %3543 = vmatpush1.msra.mxu0 0.0
    %3544 = vmatprep.subr.mxu0 0.0
    %3545 = vmatpush1.msra.mxu0 0.0
    %3546 = vmatprep.subr.mxu0 0.0
    %3547 = vmatpush1.msra.mxu0 0.0
    %3548 = vmatprep.subr.mxu0 0.0
    %3549 = vmatpush1.msra.mxu0 0.0
    %3550 = vmatprep.subr.mxu0 0.0
    %3551 = vmatpush1.msra.mxu0 0.0
    %3552 = vmatprep.subr.mxu0 0.0
    %3553 = vmatpush1.msra.mxu0 0.0
    %3554 = vmatprep.subr.mxu0 0.0
    %3555 = vmatpush1.msra.mxu0 0.0
    %3556 = vmatprep.subr.mxu0 0.0
    %3557 = vmatpush1.msra.mxu0 0.0
    %3558 = vmatprep.subr.mxu0 0.0
    %3559 = vmatpush1.msra.mxu0 0.0
    %3560 = vmatprep.subr.mxu0 0.0
    %3561 = vmatpush1.msra.mxu0 0.0
    %3562 = vmatprep.subr.mxu0 0.0
    %3563 = vmatpush1.msra.mxu0 0.0
    %3564 = vmatprep.subr.mxu0 0.0
    %3565 = vmatpush1.msra.mxu0 0.0
    %3566 = vmatprep.subr.mxu0 0.0
    %3567 = vmatpush1.msra.mxu0 0.0
    %3568 = vmatprep.subr.mxu0 0.0
    %3569 = vmatpush1.msra.mxu0 0.0
    %3570 = vmatprep.subr.mxu0 0.0
    %3571 = vmatpush1.msra.mxu0 0.0
    %3572 = vmatprep.subr.mxu0 0.0
    %3573 = vmatpush1.msra.mxu0 0.0
    %3574 = vmatprep.subr.mxu0 0.0
    %3575 = vmatpush1.msra.mxu0 0.0
    %3576 = vmatprep.subr.mxu0 0.0
    %3577 = vmatpush1.msra.mxu0 0.0
    %3578 = vmatprep.subr.mxu0 0.0
    %3579 = vmatpush1.msra.mxu0 0.0
    %3580 = vmatprep.subr.mxu0 0.0
    %3581 = vmatpush1.msra.mxu0 0.0
    %3582 = vmatprep.subr.mxu0 0.0
    %3583 = vmatpush1.msra.mxu0 0.0
    %3584 = vmatprep.subr.mxu0 0.0
    %3585 = vmatpush1.msra.mxu0 0.0
    %3586 = vmatprep.subr.mxu0 0.0
    %3587 = vmatpush1.msra.mxu0 0.0
    %3588 = vmatprep.subr.mxu0 0.0
    %3589 = vmatpush1.msra.mxu0 0.0
    %3590 = vmatprep.mubr.f32.mxu0 0.0
    %3591 = vmatmul.mubr.f32.gmra.mrb[0].mxu0 %v3524
    %v3592 = vpop.f32.mrb[0].mxu0
    %v3593 = vadd.f32 0.0, %v3592
    %v3594 = vpop.f32.mrb[0].mxu0
    %3595 = vdwg.mxu0
    %3596 = vrot.lane.b32.xlu0 %v2475, 48
    %v3597 = vpop.permute.xlu0 %3596
    %v3600 = vsel %vm354, %v3519, 0
    %3602 = vmatprep.subr.mxu0 0.0
    %3603 = vmatpush1.msra.mxu0 %v3597
    %3604 = vmatprep.subr.mxu0 0.0
    %3605 = vmatpush1.msra.mxu0 0.0
    %3606 = vmatprep.subr.mxu0 0.0
    %3607 = vmatpush1.msra.mxu0 0.0
    %3608 = vmatprep.subr.mxu0 0.0
    %3609 = vmatpush1.msra.mxu0 0.0
    %3610 = vmatprep.subr.mxu0 0.0
    %3611 = vmatpush1.msra.mxu0 0.0
    %3612 = vmatprep.subr.mxu0 0.0
    %3613 = vmatpush1.msra.mxu0 0.0
    %3614 = vmatprep.subr.mxu0 0.0
    %3615 = vmatpush1.msra.mxu0 0.0
    %3616 = vmatprep.subr.mxu0 0.0
    %3617 = vmatpush1.msra.mxu0 0.0
    %3618 = vmatprep.subr.mxu0 0.0
    %3619 = vmatpush1.msra.mxu0 0.0
    %3620 = vmatprep.subr.mxu0 0.0
    %3621 = vmatpush1.msra.mxu0 0.0
    %3622 = vmatprep.subr.mxu0 0.0
    %3623 = vmatpush1.msra.mxu0 0.0
    %3624 = vmatprep.subr.mxu0 0.0
    %3625 = vmatpush1.msra.mxu0 0.0
    %3626 = vmatprep.subr.mxu0 0.0
    %3627 = vmatpush1.msra.mxu0 0.0
    %3628 = vmatprep.subr.mxu0 0.0
    %3629 = vmatpush1.msra.mxu0 0.0
    %3630 = vmatprep.subr.mxu0 0.0
    %3631 = vmatpush1.msra.mxu0 0.0
    %3632 = vmatprep.subr.mxu0 0.0
    %3633 = vmatpush1.msra.mxu0 0.0
    %3634 = vmatprep.subr.mxu0 0.0
    %3635 = vmatpush1.msra.mxu0 0.0
    %3636 = vmatprep.subr.mxu0 0.0
    %3637 = vmatpush1.msra.mxu0 0.0
    %3638 = vmatprep.subr.mxu0 0.0
    %3639 = vmatpush1.msra.mxu0 0.0
    %3640 = vmatprep.subr.mxu0 0.0
    %3641 = vmatpush1.msra.mxu0 0.0
    %3642 = vmatprep.subr.mxu0 0.0
    %3643 = vmatpush1.msra.mxu0 0.0
    %3644 = vmatprep.subr.mxu0 0.0
    %3645 = vmatpush1.msra.mxu0 0.0
    %3646 = vmatprep.subr.mxu0 0.0
    %3647 = vmatpush1.msra.mxu0 0.0
    %3648 = vmatprep.subr.mxu0 0.0
    %3649 = vmatpush1.msra.mxu0 0.0
    %3650 = vmatprep.subr.mxu0 0.0
    %3651 = vmatpush1.msra.mxu0 0.0
    %3652 = vmatprep.subr.mxu0 0.0
    %3653 = vmatpush1.msra.mxu0 0.0
    %3654 = vmatprep.subr.mxu0 0.0
    %3655 = vmatpush1.msra.mxu0 0.0
    %3656 = vmatprep.subr.mxu0 0.0
    %3657 = vmatpush1.msra.mxu0 0.0
    %3658 = vmatprep.subr.mxu0 0.0
    %3659 = vmatpush1.msra.mxu0 0.0
    %3660 = vmatprep.subr.mxu0 0.0
    %3661 = vmatpush1.msra.mxu0 0.0
    %3662 = vmatprep.subr.mxu0 0.0
    %3663 = vmatpush1.msra.mxu0 0.0
    %3664 = vmatprep.subr.mxu0 0.0
    %3665 = vmatpush1.msra.mxu0 0.0
    %3666 = vmatprep.mubr.f32.mxu0 0.0
    %3667 = vmatmul.mubr.f32.gmra.mrb[0].mxu0 %v3600
    %v3668 = vpop.f32.mrb[0].mxu0
    %v3669 = vadd.f32 0.0, %v3668
    %v3670 = vpop.f32.mrb[0].mxu0
    %3671 = vdwg.mxu0
    %v3673 = vsel %vm354, %v3593, 0
    %v3676 = vsel %vm354, %v3669, 0
    %3678 = vmatprep.subr.mxu0 0.0
    %3679 = vmatpush1.msra.mxu0 %v2510
    %3680 = vmatprep.subr.mxu0 0.0
    %3681 = vmatpush1.msra.mxu0 0.0
    %3682 = vmatprep.subr.mxu0 0.0
    %3683 = vmatpush1.msra.mxu0 0.0
    %3684 = vmatprep.subr.mxu0 0.0
    %3685 = vmatpush1.msra.mxu0 0.0
    %3686 = vmatprep.subr.mxu0 0.0
    %3687 = vmatpush1.msra.mxu0 0.0
    %3688 = vmatprep.subr.mxu0 0.0
    %3689 = vmatpush1.msra.mxu0 0.0
    %3690 = vmatprep.subr.mxu0 0.0
    %3691 = vmatpush1.msra.mxu0 0.0
    %3692 = vmatprep.subr.mxu0 0.0
    %3693 = vmatpush1.msra.mxu0 0.0
    %3694 = vmatprep.subr.mxu0 0.0
    %3695 = vmatpush1.msra.mxu0 0.0
    %3696 = vmatprep.subr.mxu0 0.0
    %3697 = vmatpush1.msra.mxu0 0.0
    %3698 = vmatprep.subr.mxu0 0.0
    %3699 = vmatpush1.msra.mxu0 0.0
    %3700 = vmatprep.subr.mxu0 0.0
    %3701 = vmatpush1.msra.mxu0 0.0
    %3702 = vmatprep.subr.mxu0 0.0
    %3703 = vmatpush1.msra.mxu0 0.0
    %3704 = vmatprep.subr.mxu0 0.0
    %3705 = vmatpush1.msra.mxu0 0.0
    %3706 = vmatprep.subr.mxu0 0.0
    %3707 = vmatpush1.msra.mxu0 0.0
    %3708 = vmatprep.subr.mxu0 0.0
    %3709 = vmatpush1.msra.mxu0 0.0
    %3710 = vmatprep.subr.mxu0 0.0
    %3711 = vmatpush1.msra.mxu0 0.0
    %3712 = vmatprep.subr.mxu0 0.0
    %3713 = vmatpush1.msra.mxu0 0.0
    %3714 = vmatprep.subr.mxu0 0.0
    %3715 = vmatpush1.msra.mxu0 0.0
    %3716 = vmatprep.subr.mxu0 0.0
    %3717 = vmatpush1.msra.mxu0 0.0
    %3718 = vmatprep.subr.mxu0 0.0
    %3719 = vmatpush1.msra.mxu0 0.0
    %3720 = vmatprep.subr.mxu0 0.0
    %3721 = vmatpush1.msra.mxu0 0.0
    %3722 = vmatprep.subr.mxu0 0.0
    %3723 = vmatpush1.msra.mxu0 0.0
    %3724 = vmatprep.subr.mxu0 0.0
    %3725 = vmatpush1.msra.mxu0 0.0
    %3726 = vmatprep.subr.mxu0 0.0
    %3727 = vmatpush1.msra.mxu0 0.0
    %3728 = vmatprep.subr.mxu0 0.0
    %3729 = vmatpush1.msra.mxu0 0.0
    %3730 = vmatprep.subr.mxu0 0.0
    %3731 = vmatpush1.msra.mxu0 0.0
    %3732 = vmatprep.subr.mxu0 0.0
    %3733 = vmatpush1.msra.mxu0 0.0
    %3734 = vmatprep.subr.mxu0 0.0
    %3735 = vmatpush1.msra.mxu0 0.0
    %3736 = vmatprep.subr.mxu0 0.0
    %3737 = vmatpush1.msra.mxu0 0.0
    %3738 = vmatprep.subr.mxu0 0.0
    %3739 = vmatpush1.msra.mxu0 0.0
    %3740 = vmatprep.subr.mxu0 0.0
    %3741 = vmatpush1.msra.mxu0 0.0
    %3742 = vmatprep.mubr.f32.mxu0 0.0
    %3743 = vmatmul.mubr.f32.gmra.mrb[0].mxu0 %v3673
    %v3744 = vpop.f32.mrb[0].mxu0
    %v3745 = vadd.f32 0.0, %v3744
    %v3746 = vpop.f32.mrb[0].mxu0
    %3747 = vmatprep.mubr.f32.mxu0 0.0
    %3748 = vmatmul.mubr.f32.gmra.mrb[0].mxu0 %v3676
    %v3749 = vpop.f32.mrb[0].mxu0
    %v3750 = vadd.f32 0.0, %v3749
    %v3751 = vpop.f32.mrb[0].mxu0
    %3752 = vdwg.mxu0
    %v3753 = vadd.f32 %v3332, %v3745
    %v3754 = vadd.f32 %v3337, %v3750
    %3755 = vrot.lane.b32.xlu0 %v2491, 104
    %v3756 = vpop.permute.xlu0 %3755
    %3757 = vrot.lane.b32.xlu0 %v2505, 72
    %v3758 = vpop.permute.xlu0 %3757
    %v3759 = vsel %vm354, %v3756, 0
    %v3761 = vsel %vm354, %v3758, 0
    %3763 = vmatprep.subr.mxu0 0.0
    %3764 = vmatpush1.xpose.msra.mxu0 %v3761
    %3765 = vmatprep.subr.mxu0 0.0
    %3766 = vmatpush1.xpose.msra.mxu0 0.0
    %3767 = vmatprep.subr.mxu0 0.0
    %3768 = vmatpush1.xpose.msra.mxu0 0.0
    %3769 = vmatprep.subr.mxu0 0.0
    %3770 = vmatpush1.xpose.msra.mxu0 0.0
    %3771 = vmatprep.subr.mxu0 0.0
    %3772 = vmatpush1.xpose.msra.mxu0 0.0
    %3773 = vmatprep.subr.mxu0 0.0
    %3774 = vmatpush1.xpose.msra.mxu0 0.0
    %3775 = vmatprep.subr.mxu0 0.0
    %3776 = vmatpush1.xpose.msra.mxu0 0.0
    %3777 = vmatprep.subr.mxu0 0.0
    %3778 = vmatpush1.xpose.msra.mxu0 0.0
    %3779 = vmatprep.subr.mxu0 0.0
    %3780 = vmatpush1.xpose.msra.mxu0 0.0
    %3781 = vmatprep.subr.mxu0 0.0
    %3782 = vmatpush1.xpose.msra.mxu0 0.0
    %3783 = vmatprep.subr.mxu0 0.0
    %3784 = vmatpush1.xpose.msra.mxu0 0.0
    %3785 = vmatprep.subr.mxu0 0.0
    %3786 = vmatpush1.xpose.msra.mxu0 0.0
    %3787 = vmatprep.subr.mxu0 0.0
    %3788 = vmatpush1.xpose.msra.mxu0 0.0
    %3789 = vmatprep.subr.mxu0 0.0
    %3790 = vmatpush1.xpose.msra.mxu0 0.0
    %3791 = vmatprep.subr.mxu0 0.0
    %3792 = vmatpush1.xpose.msra.mxu0 0.0
    %3793 = vmatprep.subr.mxu0 0.0
    %3794 = vmatpush1.xpose.msra.mxu0 0.0
    %3795 = vmatprep.subr.mxu0 0.0
    %3796 = vmatpush1.xpose.msra.mxu0 0.0
    %3797 = vmatprep.subr.mxu0 0.0
    %3798 = vmatpush1.xpose.msra.mxu0 0.0
    %3799 = vmatprep.subr.mxu0 0.0
    %3800 = vmatpush1.xpose.msra.mxu0 0.0
    %3801 = vmatprep.subr.mxu0 0.0
    %3802 = vmatpush1.xpose.msra.mxu0 0.0
    %3803 = vmatprep.subr.mxu0 0.0
    %3804 = vmatpush1.xpose.msra.mxu0 0.0
    %3805 = vmatprep.subr.mxu0 0.0
    %3806 = vmatpush1.xpose.msra.mxu0 0.0
    %3807 = vmatprep.subr.mxu0 0.0
    %3808 = vmatpush1.xpose.msra.mxu0 0.0
    %3809 = vmatprep.subr.mxu0 0.0
    %3810 = vmatpush1.xpose.msra.mxu0 0.0
    %3811 = vmatprep.subr.mxu0 0.0
    %3812 = vmatpush1.xpose.msra.mxu0 0.0
    %3813 = vmatprep.subr.mxu0 0.0
    %3814 = vmatpush1.xpose.msra.mxu0 0.0
    %3815 = vmatprep.subr.mxu0 0.0
    %3816 = vmatpush1.xpose.msra.mxu0 0.0
    %3817 = vmatprep.subr.mxu0 0.0
    %3818 = vmatpush1.xpose.msra.mxu0 0.0
    %3819 = vmatprep.subr.mxu0 0.0
    %3820 = vmatpush1.xpose.msra.mxu0 0.0
    %3821 = vmatprep.subr.mxu0 0.0
    %3822 = vmatpush1.xpose.msra.mxu0 0.0
    %3823 = vmatprep.subr.mxu0 0.0
    %3824 = vmatpush1.xpose.msra.mxu0 0.0
    %3825 = vmatprep.subr.mxu0 0.0
    %3826 = vmatpush1.xpose.msra.mxu0 0.0
    %3827 = vmatprep.mubr.f32.mxu0 0.0
    %3828 = vmatmul.mubr.f32.gmra.mrb[0].mxu0 %v3759
    %v3829 = vpop.f32.mrb[0].mxu0
    %v3830 = vadd.f32 0.0, %v3829
    %v3831 = vpop.f32.mrb[0].mxu0
    %3832 = vdwg.mxu0
    %3833 = vrot.lane.b32.xlu0 %v2492, 104
    %v3834 = vpop.permute.xlu0 %3833
    %3835 = vrot.lane.b32.xlu0 %v2506, 72
    %v3836 = vpop.permute.xlu0 %3835
    %v3837 = vsel %vm354, %v3834, 0
    %v3839 = vsel %vm354, %v3836, 0
    %3841 = vmatprep.subr.mxu0 0.0
    %3842 = vmatpush1.xpose.msra.mxu0 %v3839
    %3843 = vmatprep.subr.mxu0 0.0
    %3844 = vmatpush1.xpose.msra.mxu0 0.0
    %3845 = vmatprep.subr.mxu0 0.0
    %3846 = vmatpush1.xpose.msra.mxu0 0.0
    %3847 = vmatprep.subr.mxu0 0.0
    %3848 = vmatpush1.xpose.msra.mxu0 0.0
    %3849 = vmatprep.subr.mxu0 0.0
    %3850 = vmatpush1.xpose.msra.mxu0 0.0
    %3851 = vmatprep.subr.mxu0 0.0
    %3852 = vmatpush1.xpose.msra.mxu0 0.0
    %3853 = vmatprep.subr.mxu0 0.0
    %3854 = vmatpush1.xpose.msra.mxu0 0.0
    %3855 = vmatprep.subr.mxu0 0.0
    %3856 = vmatpush1.xpose.msra.mxu0 0.0
    %3857 = vmatprep.subr.mxu0 0.0
    %3858 = vmatpush1.xpose.msra.mxu0 0.0
    %3859 = vmatprep.subr.mxu0 0.0
    %3860 = vmatpush1.xpose.msra.mxu0 0.0
    %3861 = vmatprep.subr.mxu0 0.0
    %3862 = vmatpush1.xpose.msra.mxu0 0.0
    %3863 = vmatprep.subr.mxu0 0.0
    %3864 = vmatpush1.xpose.msra.mxu0 0.0
    %3865 = vmatprep.subr.mxu0 0.0
    %3866 = vmatpush1.xpose.msra.mxu0 0.0
    %3867 = vmatprep.subr.mxu0 0.0
    %3868 = vmatpush1.xpose.msra.mxu0 0.0
    %3869 = vmatprep.subr.mxu0 0.0
    %3870 = vmatpush1.xpose.msra.mxu0 0.0
    %3871 = vmatprep.subr.mxu0 0.0
    %3872 = vmatpush1.xpose.msra.mxu0 0.0
    %3873 = vmatprep.subr.mxu0 0.0
    %3874 = vmatpush1.xpose.msra.mxu0 0.0
    %3875 = vmatprep.subr.mxu0 0.0
    %3876 = vmatpush1.xpose.msra.mxu0 0.0
    %3877 = vmatprep.subr.mxu0 0.0
    %3878 = vmatpush1.xpose.msra.mxu0 0.0
    %3879 = vmatprep.subr.mxu0 0.0
    %3880 = vmatpush1.xpose.msra.mxu0 0.0
    %3881 = vmatprep.subr.mxu0 0.0
    %3882 = vmatpush1.xpose.msra.mxu0 0.0
    %3883 = vmatprep.subr.mxu0 0.0
    %3884 = vmatpush1.xpose.msra.mxu0 0.0
    %3885 = vmatprep.subr.mxu0 0.0
    %3886 = vmatpush1.xpose.msra.mxu0 0.0
    %3887 = vmatprep.subr.mxu0 0.0
    %3888 = vmatpush1.xpose.msra.mxu0 0.0
    %3889 = vmatprep.subr.mxu0 0.0
    %3890 = vmatpush1.xpose.msra.mxu0 0.0
    %3891 = vmatprep.subr.mxu0 0.0
    %3892 = vmatpush1.xpose.msra.mxu0 0.0
    %3893 = vmatprep.subr.mxu0 0.0
    %3894 = vmatpush1.xpose.msra.mxu0 0.0
    %3895 = vmatprep.subr.mxu0 0.0
    %3896 = vmatpush1.xpose.msra.mxu0 0.0
    %3897 = vmatprep.subr.mxu0 0.0
    %3898 = vmatpush1.xpose.msra.mxu0 0.0
    %3899 = vmatprep.subr.mxu0 0.0
    %3900 = vmatpush1.xpose.msra.mxu0 0.0
    %3901 = vmatprep.subr.mxu0 0.0
    %3902 = vmatpush1.xpose.msra.mxu0 0.0
    %3903 = vmatprep.subr.mxu0 0.0
    %3904 = vmatpush1.xpose.msra.mxu0 0.0
    %3905 = vmatprep.mubr.f32.mxu0 0.0
    %3906 = vmatmul.mubr.f32.gmra.mrb[0].mxu0 %v3837
    %v3907 = vpop.f32.mrb[0].mxu0
    %v3908 = vadd.f32 0.0, %v3907
    %v3909 = vpop.f32.mrb[0].mxu0
    %3910 = vdwg.mxu0
    %v3911 = vmul.f32 %v3830, 0.35355338
    %v3912 = vmul.f32 %v3908, 0.35355338
    %v3913 = vsel %vm354, %v3911, -inf
    %3914 = vmax.xlane.f32.xlu0 %v3913
    %v3915 = vpop.xlane.xlu0 %3914
    %v3916 = vsel %vm354, %v3912, -inf
    %3917 = vmax.xlane.f32.xlu0 %v3916
    %v3918 = vpop.xlane.xlu0 %3917
    %v3919 = vsub.f32 %v3911, %v3915
    %v3920 = vsub.f32 %v3912, %v3918
    %v3921 = vmul.f32 %v3919, 1.442695
    %v3922 = vpow.pop %v3921
    %v3923 = vmul.f32 %v3920, 1.442695
    %v3924 = vpow.pop %v3923
    %v3925 = vsel %vm354, %v3922, 0.0
    %3926 = vadd.xlane.f32.xlu0 %v3925
    %v3927 = vpop.xlane.xlu0 %3926
    %v3928 = vsel %vm354, %v3924, 0.0
    %3929 = vadd.xlane.f32.xlu0 %v3928
    %v3930 = vpop.xlane.xlu0 %3929
    %v3931 = vrcp.pop %v3927
    %v3932 = vrcp.pop %v3930
    %v3933 = vmul.f32 %v3922, %v3931
    %v3934 = vmul.f32 %v3924, %v3932
    %3935 = vrot.lane.b32.xlu0 %v2469, 40
    %v3936 = vpop.permute.xlu0 %3935
    %v3939 = vsel %vm354, %v3933, 0
    %3941 = vmatprep.subr.mxu0 0.0
    %3942 = vmatpush1.msra.mxu0 %v3936
    %3943 = vmatprep.subr.mxu0 0.0
    %3944 = vmatpush1.msra.mxu0 0.0
    %3945 = vmatprep.subr.mxu0 0.0
    %3946 = vmatpush1.msra.mxu0 0.0
    %3947 = vmatprep.subr.mxu0 0.0
    %3948 = vmatpush1.msra.mxu0 0.0
    %3949 = vmatprep.subr.mxu0 0.0
    %3950 = vmatpush1.msra.mxu0 0.0
    %3951 = vmatprep.subr.mxu0 0.0
    %3952 = vmatpush1.msra.mxu0 0.0
    %3953 = vmatprep.subr.mxu0 0.0
    %3954 = vmatpush1.msra.mxu0 0.0
    %3955 = vmatprep.subr.mxu0 0.0
    %3956 = vmatpush1.msra.mxu0 0.0
    %3957 = vmatprep.subr.mxu0 0.0
    %3958 = vmatpush1.msra.mxu0 0.0
    %3959 = vmatprep.subr.mxu0 0.0
    %3960 = vmatpush1.msra.mxu0 0.0
    %3961 = vmatprep.subr.mxu0 0.0
    %3962 = vmatpush1.msra.mxu0 0.0
    %3963 = vmatprep.subr.mxu0 0.0
    %3964 = vmatpush1.msra.mxu0 0.0
    %3965 = vmatprep.subr.mxu0 0.0
    %3966 = vmatpush1.msra.mxu0 0.0
    %3967 = vmatprep.subr.mxu0 0.0
    %3968 = vmatpush1.msra.mxu0 0.0
    %3969 = vmatprep.subr.mxu0 0.0
    %3970 = vmatpush1.msra.mxu0 0.0
    %3971 = vmatprep.subr.mxu0 0.0
    %3972 = vmatpush1.msra.mxu0 0.0
    %3973 = vmatprep.subr.mxu0 0.0
    %3974 = vmatpush1.msra.mxu0 0.0
    %3975 = vmatprep.subr.mxu0 0.0
    %3976 = vmatpush1.msra.mxu0 0.0
    %3977 = vmatprep.subr.mxu0 0.0
    %3978 = vmatpush1.msra.mxu0 0.0
    %3979 = vmatprep.subr.mxu0 0.0
    %3980 = vmatpush1.msra.mxu0 0.0
    %3981 = vmatprep.subr.mxu0 0.0
    %3982 = vmatpush1.msra.mxu0 0.0
    %3983 = vmatprep.subr.mxu0 0.0
    %3984 = vmatpush1.msra.mxu0 0.0
    %3985 = vmatprep.subr.mxu0 0.0
    %3986 = vmatpush1.msra.mxu0 0.0
    %3987 = vmatprep.subr.mxu0 0.0
    %3988 = vmatpush1.msra.mxu0 0.0
    %3989 = vmatprep.subr.mxu0 0.0
    %3990 = vmatpush1.msra.mxu0 0.0
    %3991 = vmatprep.subr.mxu0 0.0
    %3992 = vmatpush1.msra.mxu0 0.0
    %3993 = vmatprep.subr.mxu0 0.0
    %3994 = vmatpush1.msra.mxu0 0.0
    %3995 = vmatprep.subr.mxu0 0.0
    %3996 = vmatpush1.msra.mxu0 0.0
    %3997 = vmatprep.subr.mxu0 0.0
    %3998 = vmatpush1.msra.mxu0 0.0
    %3999 = vmatprep.subr.mxu0 0.0
    %4000 = vmatpush1.msra.mxu0 0.0
    %4001 = vmatprep.subr.mxu0 0.0
    %4002 = vmatpush1.msra.mxu0 0.0
    %4003 = vmatprep.subr.mxu0 0.0
    %4004 = vmatpush1.msra.mxu0 0.0
    %4005 = vmatprep.mubr.f32.mxu0 0.0
    %4006 = vmatmul.mubr.f32.gmra.mrb[0].mxu0 %v3939
    %v4007 = vpop.f32.mrb[0].mxu0
    %v4008 = vadd.f32 0.0, %v4007
    %v4009 = vpop.f32.mrb[0].mxu0
    %4010 = vdwg.mxu0
    %4011 = vrot.lane.b32.xlu0 %v2475, 40
    %v4012 = vpop.permute.xlu0 %4011
    %v4015 = vsel %vm354, %v3934, 0
    %4017 = vmatprep.subr.mxu0 0.0
    %4018 = vmatpush1.msra.mxu0 %v4012
    %4019 = vmatprep.subr.mxu0 0.0
    %4020 = vmatpush1.msra.mxu0 0.0
    %4021 = vmatprep.subr.mxu0 0.0
    %4022 = vmatpush1.msra.mxu0 0.0
    %4023 = vmatprep.subr.mxu0 0.0
    %4024 = vmatpush1.msra.mxu0 0.0
    %4025 = vmatprep.subr.mxu0 0.0
    %4026 = vmatpush1.msra.mxu0 0.0
    %4027 = vmatprep.subr.mxu0 0.0
    %4028 = vmatpush1.msra.mxu0 0.0
    %4029 = vmatprep.subr.mxu0 0.0
    %4030 = vmatpush1.msra.mxu0 0.0
    %4031 = vmatprep.subr.mxu0 0.0
    %4032 = vmatpush1.msra.mxu0 0.0
    %4033 = vmatprep.subr.mxu0 0.0
    %4034 = vmatpush1.msra.mxu0 0.0
    %4035 = vmatprep.subr.mxu0 0.0
    %4036 = vmatpush1.msra.mxu0 0.0
    %4037 = vmatprep.subr.mxu0 0.0
    %4038 = vmatpush1.msra.mxu0 0.0
    %4039 = vmatprep.subr.mxu0 0.0
    %4040 = vmatpush1.msra.mxu0 0.0
    %4041 = vmatprep.subr.mxu0 0.0
    %4042 = vmatpush1.msra.mxu0 0.0
    %4043 = vmatprep.subr.mxu0 0.0
    %4044 = vmatpush1.msra.mxu0 0.0
    %4045 = vmatprep.subr.mxu0 0.0
    %4046 = vmatpush1.msra.mxu0 0.0
    %4047 = vmatprep.subr.mxu0 0.0
    %4048 = vmatpush1.msra.mxu0 0.0
    %4049 = vmatprep.subr.mxu0 0.0
    %4050 = vmatpush1.msra.mxu0 0.0
    %4051 = vmatprep.subr.mxu0 0.0
    %4052 = vmatpush1.msra.mxu0 0.0
    %4053 = vmatprep.subr.mxu0 0.0
    %4054 = vmatpush1.msra.mxu0 0.0
    %4055 = vmatprep.subr.mxu0 0.0
    %4056 = vmatpush1.msra.mxu0 0.0
    %4057 = vmatprep.subr.mxu0 0.0
    %4058 = vmatpush1.msra.mxu0 0.0
    %4059 = vmatprep.subr.mxu0 0.0
    %4060 = vmatpush1.msra.mxu0 0.0
    %4061 = vmatprep.subr.mxu0 0.0
    %4062 = vmatpush1.msra.mxu0 0.0
    %4063 = vmatprep.subr.mxu0 0.0
    %4064 = vmatpush1.msra.mxu0 0.0
    %4065 = vmatprep.subr.mxu0 0.0
    %4066 = vmatpush1.msra.mxu0 0.0
    %4067 = vmatprep.subr.mxu0 0.0
    %4068 = vmatpush1.msra.mxu0 0.0
    %4069 = vmatprep.subr.mxu0 0.0
    %4070 = vmatpush1.msra.mxu0 0.0
    %4071 = vmatprep.subr.mxu0 0.0
    %4072 = vmatpush1.msra.mxu0 0.0
    %4073 = vmatprep.subr.mxu0 0.0
    %4074 = vmatpush1.msra.mxu0 0.0
    %4075 = vmatprep.subr.mxu0 0.0
    %4076 = vmatpush1.msra.mxu0 0.0
    %4077 = vmatprep.subr.mxu0 0.0
    %4078 = vmatpush1.msra.mxu0 0.0
    %4079 = vmatprep.subr.mxu0 0.0
    %4080 = vmatpush1.msra.mxu0 0.0
    %4081 = vmatprep.mubr.f32.mxu0 0.0
    %4082 = vmatmul.mubr.f32.gmra.mrb[0].mxu0 %v4015
    %v4083 = vpop.f32.mrb[0].mxu0
    %v4084 = vadd.f32 0.0, %v4083
    %v4085 = vpop.f32.mrb[0].mxu0
    %4086 = vdwg.mxu0
    %v4088 = vsel %vm354, %v4008, 0
    %v4091 = vsel %vm354, %v4084, 0
    %4093 = vmatprep.subr.mxu0 0.0
    %4094 = vmatpush1.msra.mxu0 %v2511
    %4095 = vmatprep.subr.mxu0 0.0
    %4096 = vmatpush1.msra.mxu0 0.0
    %4097 = vmatprep.subr.mxu0 0.0
    %4098 = vmatpush1.msra.mxu0 0.0
    %4099 = vmatprep.subr.mxu0 0.0
    %4100 = vmatpush1.msra.mxu0 0.0
    %4101 = vmatprep.subr.mxu0 0.0
    %4102 = vmatpush1.msra.mxu0 0.0
    %4103 = vmatprep.subr.mxu0 0.0
    %4104 = vmatpush1.msra.mxu0 0.0
    %4105 = vmatprep.subr.mxu0 0.0
    %4106 = vmatpush1.msra.mxu0 0.0
    %4107 = vmatprep.subr.mxu0 0.0
    %4108 = vmatpush1.msra.mxu0 0.0
    %4109 = vmatprep.subr.mxu0 0.0
    %4110 = vmatpush1.msra.mxu0 0.0
    %4111 = vmatprep.subr.mxu0 0.0
    %4112 = vmatpush1.msra.mxu0 0.0
    %4113 = vmatprep.subr.mxu0 0.0
    %4114 = vmatpush1.msra.mxu0 0.0
    %4115 = vmatprep.subr.mxu0 0.0
    %4116 = vmatpush1.msra.mxu0 0.0
    %4117 = vmatprep.subr.mxu0 0.0
    %4118 = vmatpush1.msra.mxu0 0.0
    %4119 = vmatprep.subr.mxu0 0.0
    %4120 = vmatpush1.msra.mxu0 0.0
    %4121 = vmatprep.subr.mxu0 0.0
    %4122 = vmatpush1.msra.mxu0 0.0
    %4123 = vmatprep.subr.mxu0 0.0
    %4124 = vmatpush1.msra.mxu0 0.0
    %4125 = vmatprep.subr.mxu0 0.0
    %4126 = vmatpush1.msra.mxu0 0.0
    %4127 = vmatprep.subr.mxu0 0.0
    %4128 = vmatpush1.msra.mxu0 0.0
    %4129 = vmatprep.subr.mxu0 0.0
    %4130 = vmatpush1.msra.mxu0 0.0
    %4131 = vmatprep.subr.mxu0 0.0
    %4132 = vmatpush1.msra.mxu0 0.0
    %4133 = vmatprep.subr.mxu0 0.0
    %4134 = vmatpush1.msra.mxu0 0.0
    %4135 = vmatprep.subr.mxu0 0.0
    %4136 = vmatpush1.msra.mxu0 0.0
    %4137 = vmatprep.subr.mxu0 0.0
    %4138 = vmatpush1.msra.mxu0 0.0
    %4139 = vmatprep.subr.mxu0 0.0
    %4140 = vmatpush1.msra.mxu0 0.0
    %4141 = vmatprep.subr.mxu0 0.0
    %4142 = vmatpush1.msra.mxu0 0.0
    %4143 = vmatprep.subr.mxu0 0.0
    %4144 = vmatpush1.msra.mxu0 0.0
    %4145 = vmatprep.subr.mxu0 0.0
    %4146 = vmatpush1.msra.mxu0 0.0
    %4147 = vmatprep.subr.mxu0 0.0
    %4148 = vmatpush1.msra.mxu0 0.0
    %4149 = vmatprep.subr.mxu0 0.0
    %4150 = vmatpush1.msra.mxu0 0.0
    %4151 = vmatprep.subr.mxu0 0.0
    %4152 = vmatpush1.msra.mxu0 0.0
    %4153 = vmatprep.subr.mxu0 0.0
    %4154 = vmatpush1.msra.mxu0 0.0
    %4155 = vmatprep.subr.mxu0 0.0
    %4156 = vmatpush1.msra.mxu0 0.0
    %4157 = vmatprep.mubr.f32.mxu0 0.0
    %4158 = vmatmul.mubr.f32.gmra.mrb[0].mxu0 %v4088
    %v4159 = vpop.f32.mrb[0].mxu0
    %v4160 = vadd.f32 0.0, %v4159
    %v4161 = vpop.f32.mrb[0].mxu0
    %4162 = vmatprep.mubr.f32.mxu0 0.0
    %4163 = vmatmul.mubr.f32.gmra.mrb[0].mxu0 %v4091
    %v4164 = vpop.f32.mrb[0].mxu0
    %v4165 = vadd.f32 0.0, %v4164
    %v4166 = vpop.f32.mrb[0].mxu0
    %4167 = vdwg.mxu0
    %v4168 = vadd.f32 %v3753, %v4160
    %v4169 = vadd.f32 %v3754, %v4165
    %s4170 = scalar_lea.vmem %s5, 1
    %v4171 = vld [vmem:[%s4170] sm:$0x1]
    %v4173 = vlaneseq
    %v4174 = vshrl.u32 %v4173, 7
    %v4175 = vsub.s32 0, %v4174
    %v4176 = vrot.slane %v4171, %v4175
    %v4178 = vadd.f32 %v4168, %v4176
    %v4179 = vadd.f32 %v4169, %v4176
    %v4180 = vadd.f32 %v2346, %v4178
    %v4181 = vadd.f32 %v2347, %v4179
    %s4182 = scalar_lea.vmem %s7, 1
    %v4183 = vld [vmem:[%s4182] sm:$0x1]
    %v4184 = vmul.f32 %v4180, %v4180
    %v4185 = vmul.f32 %v4181, %v4181
    %v4186 = vsel %vm176, %v4184, 0.0
    %4187 = vadd.xlane.f32.xlu0 %v4186
    %v4188 = vpop.xlane.xlu0 %4187
    %v4189 = vsel %vm176, %v4185, 0.0
    %4190 = vadd.xlane.f32.xlu0 %v4189
    %v4191 = vpop.xlane.xlu0 %4190
    %v4192 = vmul.f32 %v4188, %v183
    %v4193 = vmul.f32 %v4191, %v183
    %v4194 = vadd.f32 %v4192, 1.1920929e-07
    %v4195 = vadd.f32 %v4193, 1.1920929e-07
    %v4196 = vrsqrt.pop %v4194
    %v4197 = vrsqrt.pop %v4195
    %v4198 = vmul.f32 %v4180, %v4196
    %v4199 = vmul.f32 %v4181, %v4197
    %v4201 = vlaneseq
    %v4202 = vshrl.u32 %v4201, 7
    %v4203 = vsub.s32 0, %v4202
    %v4204 = vrot.slane %v4183, %v4203
    %v4206 = vmul.f32 %v4198, %v4204
    %v4207 = vmul.f32 %v4199, %v4204
    %s4208 = scalar_lea.vmem %s8, 32
    %v4209 = vld [vmem:[%s4208] sm:$0xff]
    %v4210 = vld [vmem:[%s4208 + $0x8] sm:$0xff]
    %v4211 = vld [vmem:[%s4208 + $0x10] sm:$0xff]
    %v4212 = vld [vmem:[%s4208 + $0x18] sm:$0xff]
    %s4213 = scalar_lea.vmem %s9, 1
    %v4214 = vld [vmem:[%s4213] sm:$0x1]
    %v4216 = vlaneseq
    %v4217 = vshrl.u32 %v4216, 7
    %v4218 = vsub.s32 0, %v4217
    %v4219 = vrot.slane %v4214, %v4218
    %v4222 = vsel %vm176, %v4206, 0
    %v4225 = vsel %vm176, %v4207, 0
    %4227 = vmatprep.subr.mxu0 0.0
    %4228 = vmatpush1.msra.mxu0 %v4209
    %4229 = vmatprep.subr.mxu0 0.0
    %4230 = vmatpush1.msra.mxu0 %v4210
    %4231 = vmatprep.subr.mxu0 0.0
    %4232 = vmatpush1.msra.mxu0 %v4211
    %4233 = vmatprep.subr.mxu0 0.0
    %4234 = vmatpush1.msra.mxu0 %v4212
    %4235 = vmatprep.subr.mxu0 0.0
    %4236 = vmatpush1.msra.mxu0 0.0
    %4237 = vmatprep.subr.mxu0 0.0
    %4238 = vmatpush1.msra.mxu0 0.0
    %4239 = vmatprep.subr.mxu0 0.0
    %4240 = vmatpush1.msra.mxu0 0.0
    %4241 = vmatprep.subr.mxu0 0.0
    %4242 = vmatpush1.msra.mxu0 0.0
    %4243 = vmatprep.subr.mxu0 0.0
    %4244 = vmatpush1.msra.mxu0 0.0
    %4245 = vmatprep.subr.mxu0 0.0
    %4246 = vmatpush1.msra.mxu0 0.0
    %4247 = vmatprep.subr.mxu0 0.0
    %4248 = vmatpush1.msra.mxu0 0.0
    %4249 = vmatprep.subr.mxu0 0.0
    %4250 = vmatpush1.msra.mxu0 0.0
    %4251 = vmatprep.subr.mxu0 0.0
    %4252 = vmatpush1.msra.mxu0 0.0
    %4253 = vmatprep.subr.mxu0 0.0
    %4254 = vmatpush1.msra.mxu0 0.0
    %4255 = vmatprep.subr.mxu0 0.0
    %4256 = vmatpush1.msra.mxu0 0.0
    %4257 = vmatprep.subr.mxu0 0.0
    %4258 = vmatpush1.msra.mxu0 0.0
    %4259 = vmatprep.subr.mxu0 0.0
    %4260 = vmatpush1.msra.mxu0 0.0
    %4261 = vmatprep.subr.mxu0 0.0
    %4262 = vmatpush1.msra.mxu0 0.0
    %4263 = vmatprep.subr.mxu0 0.0
    %4264 = vmatpush1.msra.mxu0 0.0
    %4265 = vmatprep.subr.mxu0 0.0
    %4266 = vmatpush1.msra.mxu0 0.0
    %4267 = vmatprep.subr.mxu0 0.0
    %4268 = vmatpush1.msra.mxu0 0.0
    %4269 = vmatprep.subr.mxu0 0.0
    %4270 = vmatpush1.msra.mxu0 0.0
    %4271 = vmatprep.subr.mxu0 0.0
    %4272 = vmatpush1.msra.mxu0 0.0
    %4273 = vmatprep.subr.mxu0 0.0
    %4274 = vmatpush1.msra.mxu0 0.0
    %4275 = vmatprep.subr.mxu0 0.0
    %4276 = vmatpush1.msra.mxu0 0.0
    %4277 = vmatprep.subr.mxu0 0.0
    %4278 = vmatpush1.msra.mxu0 0.0
    %4279 = vmatprep.subr.mxu0 0.0
    %4280 = vmatpush1.msra.mxu0 0.0
    %4281 = vmatprep.subr.mxu0 0.0
    %4282 = vmatpush1.msra.mxu0 0.0
    %4283 = vmatprep.subr.mxu0 0.0
    %4284 = vmatpush1.msra.mxu0 0.0
    %4285 = vmatprep.subr.mxu0 0.0
    %4286 = vmatpush1.msra.mxu0 0.0
    %4287 = vmatprep.subr.mxu0 0.0
    %4288 = vmatpush1.msra.mxu0 0.0
    %4289 = vmatprep.subr.mxu0 0.0
    %4290 = vmatpush1.msra.mxu0 0.0
    %4291 = vmatprep.mubr.f32.mxu0 0.0
    %4292 = vmatmul.mubr.f32.gmra.mrb[0].mxu0 %v4222
    %v4293 = vpop.f32.mrb[0].mxu0
    %v4294 = vadd.f32 %v4219, %v4293
    %v4295 = vpop.f32.mrb[0].mxu0
    %4296 = vmatprep.mubr.f32.mxu0 0.0
    %4297 = vmatmul.mubr.f32.gmra.mrb[0].mxu0 %v4225
    %v4298 = vpop.f32.mrb[0].mxu0
    %v4299 = vadd.f32 %v4219, %v4298
    %v4300 = vpop.f32.mrb[0].mxu0
    %4301 = vdwg.mxu0
    %s4302 = scalar_lea.vmem %s10, 64
    %v4303 = vld [vmem:[%s4302] sm:$0xff]
    %v4304 = vld [vmem:[%s4302 + $0x8] sm:$0xff]
    %v4305 = vld [vmem:[%s4302 + $0x10] sm:$0xff]
    %v4306 = vld [vmem:[%s4302 + $0x18] sm:$0xff]
    %v4307 = vld [vmem:[%s4302 + $0x20] sm:$0xff]
    %v4308 = vld [vmem:[%s4302 + $0x28] sm:$0xff]
    %v4309 = vld [vmem:[%s4302 + $0x30] sm:$0xff]
    %v4310 = vld [vmem:[%s4302 + $0x38] sm:$0xff]
    %v4312 = vsel %vm2146, %v4294, 0
    %v4315 = vsel %vm2146, %v4299, 0
    %4317 = vmatprep.subr.mxu0 0.0
    %4318 = vmatpush1.msra.mxu0 %v4303
    %4319 = vmatprep.subr.mxu0 0.0
    %4320 = vmatpush1.msra.mxu0 %v4304
    %4321 = vmatprep.subr.mxu0 0.0
    %4322 = vmatpush1.msra.mxu0 %v4305
    %4323 = vmatprep.subr.mxu0 0.0
    %4324 = vmatpush1.msra.mxu0 %v4306
    %4325 = vmatprep.subr.mxu0 0.0
    %4326 = vmatpush1.msra.mxu0 %v4307
    %4327 = vmatprep.subr.mxu0 0.0
    %4328 = vmatpush1.msra.mxu0 %v4308
    %4329 = vmatprep.subr.mxu0 0.0
    %4330 = vmatpush1.msra.mxu0 %v4309
    %4331 = vmatprep.subr.mxu0 0.0
    %4332 = vmatpush1.msra.mxu0 %v4310
    %4333 = vmatprep.subr.mxu0 0.0
    %4334 = vmatpush1.msra.mxu0 0.0
    %4335 = vmatprep.subr.mxu0 0.0
    %4336 = vmatpush1.msra.mxu0 0.0
    %4337 = vmatprep.subr.mxu0 0.0
    %4338 = vmatpush1.msra.mxu0 0.0
    %4339 = vmatprep.subr.mxu0 0.0
    %4340 = vmatpush1.msra.mxu0 0.0
    %4341 = vmatprep.subr.mxu0 0.0
    %4342 = vmatpush1.msra.mxu0 0.0
    %4343 = vmatprep.subr.mxu0 0.0
    %4344 = vmatpush1.msra.mxu0 0.0
    %4345 = vmatprep.subr.mxu0 0.0
    %4346 = vmatpush1.msra.mxu0 0.0
    %4347 = vmatprep.subr.mxu0 0.0
    %4348 = vmatpush1.msra.mxu0 0.0
    %4349 = vmatprep.subr.mxu0 0.0
    %4350 = vmatpush1.msra.mxu0 0.0
    %4351 = vmatprep.subr.mxu0 0.0
    %4352 = vmatpush1.msra.mxu0 0.0
    %4353 = vmatprep.subr.mxu0 0.0
    %4354 = vmatpush1.msra.mxu0 0.0
    %4355 = vmatprep.subr.mxu0 0.0
    %4356 = vmatpush1.msra.mxu0 0.0
    %4357 = vmatprep.subr.mxu0 0.0
    %4358 = vmatpush1.msra.mxu0 0.0
    %4359 = vmatprep.subr.mxu0 0.0
    %4360 = vmatpush1.msra.mxu0 0.0
    %4361 = vmatprep.subr.mxu0 0.0
    %4362 = vmatpush1.msra.mxu0 0.0
    %4363 = vmatprep.subr.mxu0 0.0
    %4364 = vmatpush1.msra.mxu0 0.0
    %4365 = vmatprep.subr.mxu0 0.0
    %4366 = vmatpush1.msra.mxu0 0.0
    %4367 = vmatprep.subr.mxu0 0.0
    %4368 = vmatpush1.msra.mxu0 0.0
    %4369 = vmatprep.subr.mxu0 0.0
    %4370 = vmatpush1.msra.mxu0 0.0
    %4371 = vmatprep.subr.mxu0 0.0
    %4372 = vmatpush1.msra.mxu0 0.0
    %4373 = vmatprep.subr.mxu0 0.0
    %4374 = vmatpush1.msra.mxu0 0.0
    %4375 = vmatprep.subr.mxu0 0.0
    %4376 = vmatpush1.msra.mxu0 0.0
    %4377 = vmatprep.subr.mxu0 0.0
    %4378 = vmatpush1.msra.mxu0 0.0
    %4379 = vmatprep.subr.mxu0 0.0
    %4380 = vmatpush1.msra.mxu0 0.0
    %4381 = vmatprep.mubr.f32.mxu0 0.0
    %4382 = vmatmul.mubr.f32.gmra.mrb[0].mxu0 %v4312
    %v4383 = vpop.f32.mrb[0].mxu0
    %v4384 = vadd.f32 0.0, %v4383
    %v4385 = vpop.f32.mrb[0].mxu0
    %4386 = vmatprep.mubr.f32.mxu0 0.0
    %4387 = vmatmul.mubr.f32.gmra.mrb[0].mxu0 %v4315
    %v4388 = vpop.f32.mrb[0].mxu0
    %v4389 = vadd.f32 0.0, %v4388
    %v4390 = vpop.f32.mrb[0].mxu0
    %4391 = vdwg.mxu0
    %v4392 = vsub.f32 0.0, %v4384
    %v4393 = vsub.f32 0.0, %v4389
    %v4394 = vmul.f32 %v4392, 1.442695
    %v4395 = vpow.pop %v4394
    %v4396 = vmul.f32 %v4393, 1.442695
    %v4397 = vpow.pop %v4396
    %v4398 = vadd.f32 %v4395, 1.0
    %v4399 = vadd.f32 %v4397, 1.0
    %v4400 = vrcp.pop %v4398
    %v4401 = vrcp.pop %v4399
    %v4402 = vmul.f32 %v4384, %v4400
    %v4403 = vmul.f32 %v4389, %v4401
    %4406 = vrot.lane.b32.xlu0 %v4402, 64
    %v4407 = vpop.permute.xlu0 %4406
    %4408 = vrot.lane.b32.xlu0 %v4403, 64
    %v4409 = vpop.permute.xlu0 %4408
    %v4412 = vmul.f32 %v4384, %v4407
    %v4413 = vmul.f32 %v4389, %v4409
    %s4414 = scalar_lea.vmem %s11, 64
    %v4415 = vld [vmem:[%s4414] sm:$0xff]
    %v4416 = vld [vmem:[%s4414 + $0x8] sm:$0xff]
    %v4417 = vld [vmem:[%s4414 + $0x10] sm:$0xff]
    %v4418 = vld [vmem:[%s4414 + $0x18] sm:$0xff]
    %v4419 = vld [vmem:[%s4414 + $0x20] sm:$0xff]
    %v4420 = vld [vmem:[%s4414 + $0x28] sm:$0xff]
    %v4421 = vld [vmem:[%s4414 + $0x30] sm:$0xff]
    %v4422 = vld [vmem:[%s4414 + $0x38] sm:$0xff]
    %s4423 = scalar_lea.vmem %s12, 1
    %v4424 = vld [vmem:[%s4423] sm:$0x1]
    %v4426 = vlaneseq
    %v4427 = vshrl.u32 %v4426, 7
    %v4428 = vsub.s32 0, %v4427
    %v4429 = vrot.slane %v4424, %v4428
    %v4432 = vsel %vm2146, %v4412, 0
    %v4435 = vsel %vm2146, %v4413, 0
    %4437 = vmatprep.subr.mxu0 0.0
    %4438 = vmatpush1.msra.mxu0 %v4415
    %4439 = vmatprep.subr.mxu0 0.0
    %4440 = vmatpush1.msra.mxu0 %v4416
    %4441 = vmatprep.subr.mxu0 0.0
    %4442 = vmatpush1.msra.mxu0 %v4417
    %4443 = vmatprep.subr.mxu0 0.0
    %4444 = vmatpush1.msra.mxu0 %v4418
    %4445 = vmatprep.subr.mxu0 0.0
    %4446 = vmatpush1.msra.mxu0 %v4419
    %4447 = vmatprep.subr.mxu0 0.0
    %4448 = vmatpush1.msra.mxu0 %v4420
    %4449 = vmatprep.subr.mxu0 0.0
    %4450 = vmatpush1.msra.mxu0 %v4421
    %4451 = vmatprep.subr.mxu0 0.0
    %4452 = vmatpush1.msra.mxu0 %v4422
    %4453 = vmatprep.subr.mxu0 0.0
    %4454 = vmatpush1.msra.mxu0 0.0
    %4455 = vmatprep.subr.mxu0 0.0
    %4456 = vmatpush1.msra.mxu0 0.0
    %4457 = vmatprep.subr.mxu0 0.0
    %4458 = vmatpush1.msra.mxu0 0.0
    %4459 = vmatprep.subr.mxu0 0.0
    %4460 = vmatpush1.msra.mxu0 0.0
    %4461 = vmatprep.subr.mxu0 0.0
    %4462 = vmatpush1.msra.mxu0 0.0
    %4463 = vmatprep.subr.mxu0 0.0
    %4464 = vmatpush1.msra.mxu0 0.0
    %4465 = vmatprep.subr.mxu0 0.0
    %4466 = vmatpush1.msra.mxu0 0.0
    %4467 = vmatprep.subr.mxu0 0.0
    %4468 = vmatpush1.msra.mxu0 0.0
    %4469 = vmatprep.subr.mxu0 0.0
    %4470 = vmatpush1.msra.mxu0 0.0
    %4471 = vmatprep.subr.mxu0 0.0
    %4472 = vmatpush1.msra.mxu0 0.0
    %4473 = vmatprep.subr.mxu0 0.0
    %4474 = vmatpush1.msra.mxu0 0.0
    %4475 = vmatprep.subr.mxu0 0.0
    %4476 = vmatpush1.msra.mxu0 0.0
    %4477 = vmatprep.subr.mxu0 0.0
    %4478 = vmatpush1.msra.mxu0 0.0
    %4479 = vmatprep.subr.mxu0 0.0
    %4480 = vmatpush1.msra.mxu0 0.0
    %4481 = vmatprep.subr.mxu0 0.0
    %4482 = vmatpush1.msra.mxu0 0.0
    %4483 = vmatprep.subr.mxu0 0.0
    %4484 = vmatpush1.msra.mxu0 0.0
    %4485 = vmatprep.subr.mxu0 0.0
    %4486 = vmatpush1.msra.mxu0 0.0
    %4487 = vmatprep.subr.mxu0 0.0
    %4488 = vmatpush1.msra.mxu0 0.0
    %4489 = vmatprep.subr.mxu0 0.0
    %4490 = vmatpush1.msra.mxu0 0.0
    %4491 = vmatprep.subr.mxu0 0.0
    %4492 = vmatpush1.msra.mxu0 0.0
    %4493 = vmatprep.subr.mxu0 0.0
    %4494 = vmatpush1.msra.mxu0 0.0
    %4495 = vmatprep.subr.mxu0 0.0
    %4496 = vmatpush1.msra.mxu0 0.0
    %4497 = vmatprep.subr.mxu0 0.0
    %4498 = vmatpush1.msra.mxu0 0.0
    %4499 = vmatprep.subr.mxu0 0.0
    %4500 = vmatpush1.msra.mxu0 0.0
    %4501 = vmatprep.mubr.f32.mxu0 0.0
    %4502 = vmatmul.mubr.f32.gmra.mrb[0].mxu0 %v4432
    %v4503 = vpop.f32.mrb[0].mxu0
    %v4504 = vadd.f32 %v4429, %v4503
    %v4505 = vpop.f32.mrb[0].mxu0
    %4506 = vmatprep.mubr.f32.mxu0 0.0
    %4507 = vmatmul.mubr.f32.gmra.mrb[0].mxu0 %v4435
    %v4508 = vpop.f32.mrb[0].mxu0
    %v4509 = vadd.f32 %v4429, %v4508
    %v4510 = vpop.f32.mrb[0].mxu0
    %4511 = vdwg.mxu0
    %v4512 = vadd.f32 %v4206, %v4504
    %v4513 = vadd.f32 %v4207, %v4509
    %v4514 = vld [vmem:[%s13] sm:$0x1]
    %v4515 = vmul.f32 %v4512, %v4512
    %v4516 = vmul.f32 %v4513, %v4513
    %v4519 = vrot.slane %v4516, 7
    %vm4520 = vcmask 1041409
    %v4521 = vsel %vm4520, %v4519, %v4515
    %vm4523 = vcmask 254976
    %v4524 = vsel %vm4523, %v4521, 0.0
    %4525 = vadd.xlane.f32.xlu0 %v4524
    %v4526 = vpop.xlane.xlu0 %4525
    %v4527 = vmul.f32 %v4526, %v183
    %v4528 = vadd.f32 %v4527, 1.1920929e-07
    %v4529 = vrsqrt.pop %v4528
    %v4531 = vrot.slane %v4529, 1
    %v4534 = vmul.f32 %v4512, %v4529
    %v4535 = vmul.f32 %v4513, %v4531
    %v4537 = vlaneseq
    %v4538 = vshrl.u32 %v4537, 7
    %v4539 = vsub.s32 0, %v4538
    %v4540 = vrot.slane %v4514, %v4539
    %v4542 = vmul.f32 %v4534, %v4540
    %v4543 = vmul.f32 %v4535, %v4540
    %v4544 = vld [vmem:[%s14] sm:$0xff]
    %v4545 = vld [vmem:[%s14 + $0x8] sm:$0xff]
    %v4546 = vld [vmem:[%s14 + $0x10] sm:$0xff]
    %v4547 = vld [vmem:[%s14 + $0x18] sm:$0xff]
    %v4548 = vld [vmem:[%s15] sm:$0x1]
    %v4550 = vlaneseq
    %v4551 = vshrl.u32 %v4550, 7
    %v4552 = vsub.s32 0, %v4551
    %v4553 = vrot.slane %v4548, %v4552
    %v4557 = vrot.slane %v4543, 7
    %v4558 = vsel %vm4520, %v4557, %v4542
    %v4559 = vsel %vm176, %v4558, 0
    %4561 = vmatprep.subr.mxu0 0.0
    %4562 = vmatpush1.msra.mxu0 %v4544
    %4563 = vmatprep.subr.mxu0 0.0
    %4564 = vmatpush1.msra.mxu0 %v4545
    %4565 = vmatprep.subr.mxu0 0.0
    %4566 = vmatpush1.msra.mxu0 %v4546
    %4567 = vmatprep.subr.mxu0 0.0
    %4568 = vmatpush1.msra.mxu0 %v4547
    %4569 = vmatprep.subr.mxu0 0.0
    %4570 = vmatpush1.msra.mxu0 0.0
    %4571 = vmatprep.subr.mxu0 0.0
    %4572 = vmatpush1.msra.mxu0 0.0
    %4573 = vmatprep.subr.mxu0 0.0
    %4574 = vmatpush1.msra.mxu0 0.0
    %4575 = vmatprep.subr.mxu0 0.0
    %4576 = vmatpush1.msra.mxu0 0.0
    %4577 = vmatprep.subr.mxu0 0.0
    %4578 = vmatpush1.msra.mxu0 0.0
    %4579 = vmatprep.subr.mxu0 0.0
    %4580 = vmatpush1.msra.mxu0 0.0
    %4581 = vmatprep.subr.mxu0 0.0
    %4582 = vmatpush1.msra.mxu0 0.0
    %4583 = vmatprep.subr.mxu0 0.0
    %4584 = vmatpush1.msra.mxu0 0.0
    %4585 = vmatprep.subr.mxu0 0.0
    %4586 = vmatpush1.msra.mxu0 0.0
    %4587 = vmatprep.subr.mxu0 0.0
    %4588 = vmatpush1.msra.mxu0 0.0
    %4589 = vmatprep.subr.mxu0 0.0
    %4590 = vmatpush1.msra.mxu0 0.0
    %4591 = vmatprep.subr.mxu0 0.0
    %4592 = vmatpush1.msra.mxu0 0.0
    %4593 = vmatprep.subr.mxu0 0.0
    %4594 = vmatpush1.msra.mxu0 0.0
    %4595 = vmatprep.subr.mxu0 0.0
    %4596 = vmatpush1.msra.mxu0 0.0
    %4597 = vmatprep.subr.mxu0 0.0
    %4598 = vmatpush1.msra.mxu0 0.0
    %4599 = vmatprep.subr.mxu0 0.0
    %4600 = vmatpush1.msra.mxu0 0.0
    %4601 = vmatprep.subr.mxu0 0.0
    %4602 = vmatpush1.msra.mxu0 0.0
    %4603 = vmatprep.subr.mxu0 0.0
    %4604 = vmatpush1.msra.mxu0 0.0
    %4605 = vmatprep.subr.mxu0 0.0
    %4606 = vmatpush1.msra.mxu0 0.0
    %4607 = vmatprep.subr.mxu0 0.0
    %4608 = vmatpush1.msra.mxu0 0.0
    %4609 = vmatprep.subr.mxu0 0.0
    %4610 = vmatpush1.msra.mxu0 0.0
    %4611 = vmatprep.subr.mxu0 0.0
    %4612 = vmatpush1.msra.mxu0 0.0
    %4613 = vmatprep.subr.mxu0 0.0
    %4614 = vmatpush1.msra.mxu0 0.0
    %4615 = vmatprep.subr.mxu0 0.0
    %4616 = vmatpush1.msra.mxu0 0.0
    %4617 = vmatprep.subr.mxu0 0.0
    %4618 = vmatpush1.msra.mxu0 0.0
    %4619 = vmatprep.subr.mxu0 0.0
    %4620 = vmatpush1.msra.mxu0 0.0
    %4621 = vmatprep.subr.mxu0 0.0
    %4622 = vmatpush1.msra.mxu0 0.0
    %4623 = vmatprep.subr.mxu0 0.0
    %4624 = vmatpush1.msra.mxu0 0.0
    %4625 = vmatprep.mubr.f32.mxu0 0.0
    %4626 = vmatmul.mubr.f32.gmra.mrb[0].mxu0 %v4559
    %v4627 = vpop.f32.mrb[0].mxu0
    %v4628 = vadd.f32 %v4553, %v4627
    %v4629 = vpop.f32.mrb[0].mxu0
    %4630 = vdwg.mxu0
    %4631 = vst [vmem:[#allocation2] sm:$0x3] %v4628
    // Predicated region
    $region74: #{policy_forward.1} parent=1 // pred_check
      _
    $region75: #{policy_forward.1} parent=1 // pred_check_branch
      %4633 = sbr.rel (0) target = $region77
    $region76: #{policy_forward.1} parent=1 // pred_region
      %s4635 = ssub.s32 32, 32
      %4636 = vsyncadd [#allocation3], %s4635
      %s4638 = sshll.u32 [#allocation2], 4
      %s4639 = int_to_ptr.vmem [resolvable:$true] %s4638
      %4641 = dma.vmem_to_hbm [thread:$0]  %s4639, 32, %s18, [#allocation3]
    $region77: #{policy_forward.1} parent=1 // pred_fallthru
      _
    // Predicated region
    $region78: #{policy_forward.1} parent=1 // pred_check
      _
    $region79: #{policy_forward.1} parent=1 // pred_check_branch
      %4643 = sbr.rel (0) target = $region81
    $region80: #{policy_forward.1} parent=1 // pred_region
      %4644 = dma.done [#allocation3], 32
    $region81: #{policy_forward.1} parent=1 // pred_fallthru
      _
    %4645 = vsyncpa [#allocation3], 1

</llo_original>
